<compile_context>
chip_gen: v6e
topology: v6e:2x2x1
jax: 0.10.0
libtpu: 0.0.40
codegen_flags: <defaults>
</compile_context>

<pallas_src>
import math
import functools

import jax
import jax.numpy as jnp
from jax.experimental import pallas as pl
from jax.experimental.pallas import tpu as pltpu


# ----------------------------- Pallas kernel -----------------------------

def _local_attn_kernel(x_ref, mask_ref, cos_ref, sin_ref, wqkv_ref, wo_ref,
                       out_ref, *, num_heads):
    # x_ref:    (1, C, H)        one (batch, chunk) tile of the hidden states
    # mask_ref: (1, 1, C, C)     diagonal C x C block of the additive mask
    # cos/sin:  (C, hd) f32      rotary tables for positions 0..C-1
    # wqkv_ref: (nh, H, 3*hd)    head-leading fused [Q | K | V] projection,
    #                            1/sqrt(hd) pre-folded into the Q columns
    # wo_ref:   (H, H)           output projection (pre-transposed)
    # out_ref:  (1, C, H)
    _, C, H = x_ref.shape
    nh = num_heads
    hd = H // nh
    half = hd // 2
    cdt = x_ref.dtype                    # MXU input dtype (bf16 in production)

    # ---- head-batched fused QKV projection (one leading-batch MXU einsum) --
    # Output is already head-major (nh, C, 3*hd): no per-head slicing of a
    # seq-major QKV slab and no (C, H) -> (nh, C, hd) transpose in-kernel.
    x = jnp.broadcast_to(x_ref[...], (nh, C, H)).astype(cdt)
    qkv = jnp.einsum('hck,hkd->hcd', x, wqkv_ref[...],
                     preferred_element_type=jnp.float32)      # (nh, C, 3hd) f32

    q = qkv[..., :hd]                                         # (nh, C, hd) f32
    k = qkv[..., hd:2 * hd]
    v = qkv[..., 2 * hd:].astype(cdt)

    # ---- rotary embedding (positions restart at 0 inside every chunk) ------
    cos = cos_ref[...][None]                                  # (1, C, hd) f32
    sin = sin_ref[...][None]

    def rot_half(t):                                          # rotate_half
        return jnp.concatenate([-t[..., half:], t[..., :half]], axis=-1)

    q = (q * cos + rot_half(q) * sin).astype(cdt)
    k = (k * cos + rot_half(k) * sin).astype(cdt)

    # ---- head-batched attention core (leading batch dim = heads) -----------
    mask = mask_ref[...][0, 0].astype(jnp.float32)            # (C, C) additive
    s = jnp.einsum('hqd,hkd->hqk', q, k,
                   preferred_element_type=jnp.float32) + mask[None]
    s = s - jnp.max(s, axis=-1, keepdims=True)
    p = jnp.exp(s)
    p = p * pl.reciprocal(jnp.sum(p, axis=-1, keepdims=True), approx=True)

    o = jnp.einsum('hqk,hkd->hqd', p.astype(cdt), v,
                   preferred_element_type=jnp.float32)        # (nh, C, hd) f32

    # ---- merge heads into one lane-dense (C, H) slab + output projection ---
    attn = jnp.concatenate([o[h] for h in range(nh)], axis=-1).astype(cdt)
    out = jnp.dot(attn, wo_ref[...], preferred_element_type=jnp.float32)
    out_ref[0] = out.astype(out_ref.dtype)                    # single dense store


# ------------------------------ wrapper ----------------------------------

def llama_local_attention(hidden_states, attention_mask,
                          wq_t, wk_t, wv_t, wo_t,
                          *, num_heads, chunk_width, rope_base=10000.0,
                          vmem_limit_bytes=None):
    B, S, H = hidden_states.shape
    nh = num_heads
    hd = H // nh
    C = chunk_width
    assert S % C == 0, "seq length must be a multiple of the chunk width"
    nc = S // C

    # rotary tables for positions 0..C-1 (glue, plain JAX)
    inv_freq = 1.0 / (rope_base ** (jnp.arange(0, hd, 2, dtype=jnp.float32) / hd))
    t = jnp.arange(C, dtype=jnp.float32)
    freqs = jnp.outer(t, inv_freq)
    emb = jnp.concatenate([freqs, freqs], axis=-1)            # (C, hd)
    cos = jnp.cos(emb)
    sin = jnp.sin(emb)

    # Head-leading fused QKV weight (nh, H, 3*hd): per-head columns [Q|K|V].
    # The 1/sqrt(hd) score scale is folded into the Q columns (exact: scaling
    # commutes with the rotary rotation), removing a per-score-tile multiply.
    scale = 1.0 / math.sqrt(hd)
    wq_h = (wq_t * scale).reshape(H, nh, hd).transpose(1, 0, 2)   # (nh, H, hd)
    wk_h = wk_t.reshape(H, nh, hd).transpose(1, 0, 2)
    wv_h = wv_t.reshape(H, nh, hd).transpose(1, 0, 2)
    wqkv_hl = jnp.concatenate([wq_h, wk_h, wv_h], axis=-1)        # (nh, H, 3hd)

    kernel = functools.partial(_local_attn_kernel, num_heads=nh)

    grid_spec = pltpu.PrefetchScalarGridSpec(
        num_scalar_prefetch=0,
        grid=(B, nc),                                         # both parallel
        in_specs=[
            pl.BlockSpec((1, C, H), lambda b, i: (b, i, 0)),        # x tile
            pl.BlockSpec((1, 1, C, C), lambda b, i: (b, 0, i, i)),  # diag mask
            pl.BlockSpec((C, hd), lambda b, i: (0, 0)),             # cos
            pl.BlockSpec((C, hd), lambda b, i: (0, 0)),             # sin
            pl.BlockSpec((nh, H, 3 * hd), lambda b, i: (0, 0, 0)),  # wqkv (hl)
            pl.BlockSpec((H, H), lambda b, i: (0, 0)),              # wo^T
        ],
        out_specs=pl.BlockSpec((1, C, H), lambda b, i: (b, i, 0)),
    )

    return pl.pallas_call(
        kernel,
        out_shape=jax.ShapeDtypeStruct((B, S, H), hidden_states.dtype),
        grid_spec=grid_spec,
        compiler_params=pltpu.CompilerParams(
            dimension_semantics=("parallel", "parallel"),
            vmem_limit_bytes=vmem_limit_bytes),
    )(hidden_states, attention_mask, cos, sin, wqkv_hl, wo_t)


# --------------------------- pure-JAX reference ---------------------------

def _reference(hidden_states, attention_mask, wq_t, wk_t, wv_t, wo_t,
               *, num_heads, chunk_width, rope_base=10000.0):
    B, S, H = hidden_states.shape
    hd = H // num_heads
    C = chunk_width
    nc = S // C
    half = hd // 2

    inv_freq = 1.0 / (rope_base ** (jnp.arange(0, hd, 2, dtype=jnp.float32) / hd))
    t = jnp.arange(C, dtype=jnp.float32)
    freqs = jnp.outer(t, inv_freq)
    emb = jnp.concatenate([freqs, freqs], axis=-1)
    cos = jnp.cos(emb)[None, None]      # (1,1,C,hd)
    sin = jnp.sin(emb)[None, None]

    def rot_half(x):
        return jnp.concatenate([-x[..., half:], x[..., :half]], axis=-1)

    fmin = jnp.finfo(jnp.float32).min
    outs = []
    for i in range(nc):
        x = hidden_states[:, i * C:(i + 1) * C]
        m = attention_mask[:, :, i * C:(i + 1) * C, i * C:(i + 1) * C]
        q = (x @ wq_t).reshape(B, C, num_heads, hd).transpose(0, 2, 1, 3)
        k = (x @ wk_t).reshape(B, C, num_heads, hd).transpose(0, 2, 1, 3)
        v = (x @ wv_t).reshape(B, C, num_heads, hd).transpose(0, 2, 1, 3)
        q = q * cos + rot_half(q) * sin
        k = k * cos + rot_half(k) * sin
        s = jnp.einsum('bhqd,bhkd->bhqk', q, k) / math.sqrt(hd) + m
        s = jnp.maximum(s, fmin)
        p = jax.nn.softmax(s.astype(jnp.float32), axis=-1)
        o = jnp.einsum('bhqk,bhkd->bhqd', p, v)
        outs.append(o.transpose(0, 2, 1, 3).reshape(B, C, H))
    return jnp.concatenate(outs, axis=1) @ wo_t


# --------------------------------- main -----------------------------------

if __name__ == "__main__":
    # Tile-aligned shapes (C multiple of 128, H multiple of 128).
    B, S, H = 2, 256, 128        # batch, seq, hidden
    NUM_HEADS = 4                # head_dim = 32
    CHUNK = 128                  # attend_from/to_chunk_width == stride

    key = jax.random.PRNGKey(0)
    k_x, k_m, k_q, k_k, k_v, k_o = jax.random.split(key, 6)

    hidden_states = jax.random.normal(k_x, (B, S, H), dtype=jnp.float32)
    # additive attention mask (B, 1, S, S): 0 = attend, -1e9 = masked
    attention_mask = jnp.where(
        jax.random.uniform(k_m, (B, 1, S, S)) > 0.25, 0.0, -1e9
    ).astype(jnp.float32)

    # deterministic weight init; stored pre-transposed (in, out) so y = x @ W
    scale = 0.05
    wq_t = scale * jax.random.normal(k_q, (H, H), dtype=jnp.float32)
    wk_t = scale * jax.random.normal(k_k, (H, H), dtype=jnp.float32)
    wv_t = scale * jax.random.normal(k_v, (H, H), dtype=jnp.float32)
    wo_t = scale * jax.random.normal(k_o, (H, H), dtype=jnp.float32)

    out = llama_local_attention(hidden_states, attention_mask,
                                wq_t, wk_t, wv_t, wo_t,
                                num_heads=NUM_HEADS, chunk_width=CHUNK)
    out = jax.block_until_ready(out)

    with jax.default_matmul_precision("float32"):
        ref = _reference(hidden_states, attention_mask, wq_t, wk_t, wv_t, wo_t,
                         num_heads=NUM_HEADS, chunk_width=CHUNK)
    ref = jax.block_until_ready(ref)

    assert out.shape == (B, S, H)
    assert jnp.allclose(out, ref, atol=2e-3, rtol=2e-2), \
        f"max abs err = {float(jnp.max(jnp.abs(out - ref)))}"

    # TODO(synk): output_attentions / past_key_value / use_cache paths of the
    # PyTorch module are not implemented (only the default forward output).
    print("KERNEL_OK")
</pallas_src>

<mosaic_0001>
module attributes {stable_mosaic.version = 11 : i64} {
  func.func @_local_attn_kernel(%arg0: i32, %arg1: i32, %arg2: memref<1x128x128xf32, #tpu.memory_space<vmem>>, %arg3: memref<1x1x128x128xf32, #tpu.memory_space<vmem>>, %arg4: memref<128x32xf32, #tpu.memory_space<vmem>>, %arg5: memref<128x32xf32, #tpu.memory_space<vmem>>, %arg6: memref<4x128x96xf32, #tpu.memory_space<vmem>>, %arg7: memref<128x128xf32, #tpu.memory_space<vmem>>, %arg8: memref<1x128x128xf32, #tpu.memory_space<vmem>>) attributes {dimension_semantics = [#tpu.dimension_semantics<parallel>, #tpu.dimension_semantics<parallel>], iteration_bounds = array<i64: 2, 2>, scalar_prefetch = 0 : i64, scratch_operands = 0 : i64, tpu.core_type = #tpu.core_type<tc>, window_params = [{transform_indices = @transform_0, window_bounds = array<i64: 1, 128, 128>}, {transform_indices = @transform_1, window_bounds = array<i64: 1, 1, 128, 128>}, {pipeline_mode = #tpu.pipeline_mode<synchronous>, transform_indices = @transform_2, window_bounds = array<i64: 128, 32>}, {pipeline_mode = #tpu.pipeline_mode<synchronous>, transform_indices = @transform_3, window_bounds = array<i64: 128, 32>}, {pipeline_mode = #tpu.pipeline_mode<synchronous>, transform_indices = @transform_4, window_bounds = array<i64: 4, 128, 96>}, {pipeline_mode = #tpu.pipeline_mode<synchronous>, transform_indices = @transform_5, window_bounds = array<i64: 128, 128>}, {transform_indices = @transform_6, window_bounds = array<i64: 1, 128, 128>}]} {
    %c0 = arith.constant 0 : index
    %c0_0 = arith.constant 0 : index
    %c0_1 = arith.constant 0 : index
    %0 = vector.load %arg2[%c0, %c0_0, %c0_1] : memref<1x128x128xf32, #tpu.memory_space<vmem>>, vector<1x128x128xf32>
    %1 = vector.shape_cast %0 : vector<1x128x128xf32> to vector<1x128x128xf32>
    %2 = vector.broadcast %1 : vector<1x128x128xf32> to vector<4x128x128xf32>
    %c0_2 = arith.constant 0 : index
    %c0_3 = arith.constant 0 : index
    %c0_4 = arith.constant 0 : index
    %3 = vector.load %arg6[%c0_2, %c0_3, %c0_4] : memref<4x128x96xf32, #tpu.memory_space<vmem>>, vector<4x128x96xf32>
    "tpu.trace_start"() <{level = 10 : i32, message = "hck,hkd->hcd"}> : () -> ()
    %cst = arith.constant dense<0.000000e+00> : vector<4x128x96xf32>
    %4 = tpu.matmul %2, %3, %cst {dimension_numbers = #tpu.dot_dimension_numbers<[2], [1], [1], [2], [0, 0, 0, 1, 1, 2], [0], [0]>} : vector<4x128x128xf32>, vector<4x128x96xf32>, vector<4x128x96xf32> -> vector<4x128x96xf32>
    "tpu.trace_stop"() : () -> ()
    %5 = vector.extract_strided_slice %4 {offsets = [0, 0, 0], sizes = [4, 128, 32], strides = [1, 1, 1]} : vector<4x128x96xf32> to vector<4x128x32xf32>
    %6 = vector.extract_strided_slice %4 {offsets = [0, 0, 32], sizes = [4, 128, 32], strides = [1, 1, 1]} : vector<4x128x96xf32> to vector<4x128x32xf32>
    %7 = vector.extract_strided_slice %4 {offsets = [0, 0, 64], sizes = [4, 128, 32], strides = [1, 1, 1]} : vector<4x128x96xf32> to vector<4x128x32xf32>
    %c0_5 = arith.constant 0 : index
    %c0_6 = arith.constant 0 : index
    %8 = vector.load %arg4[%c0_5, %c0_6] : memref<128x32xf32, #tpu.memory_space<vmem>>, vector<128x32xf32>
    %9 = vector.shape_cast %8 : vector<128x32xf32> to vector<1x128x32xf32>
    %c0_7 = arith.constant 0 : index
    %c0_8 = arith.constant 0 : index
    %10 = vector.load %arg5[%c0_7, %c0_8] : memref<128x32xf32, #tpu.memory_space<vmem>>, vector<128x32xf32>
    %11 = vector.shape_cast %10 : vector<128x32xf32> to vector<1x128x32xf32>
    %12 = vector.broadcast %9 : vector<1x128x32xf32> to vector<4x128x32xf32>
    %13 = arith.mulf %5, %12 : vector<4x128x32xf32>
    %14 = vector.extract_strided_slice %5 {offsets = [0, 0, 16], sizes = [4, 128, 16], strides = [1, 1, 1]} : vector<4x128x32xf32> to vector<4x128x16xf32>
    %cst_9 = arith.constant 0.000000e+00 : f32
    %15 = vector.broadcast %cst_9 : f32 to vector<4x128x16xf32>
    %16 = arith.subf %15, %14 : vector<4x128x16xf32>
    %17 = vector.extract_strided_slice %5 {offsets = [0, 0, 0], sizes = [4, 128, 16], strides = [1, 1, 1]} : vector<4x128x32xf32> to vector<4x128x16xf32>
    %18 = tpu.concatenate %16, %17 in 2 : vector<4x128x16xf32>, vector<4x128x16xf32> -> vector<4x128x32xf32>
    %19 = vector.broadcast %11 : vector<1x128x32xf32> to vector<4x128x32xf32>
    %20 = arith.mulf %18, %19 : vector<4x128x32xf32>
    %21 = arith.addf %13, %20 : vector<4x128x32xf32>
    %22 = vector.broadcast %9 : vector<1x128x32xf32> to vector<4x128x32xf32>
    %23 = arith.mulf %6, %22 : vector<4x128x32xf32>
    %24 = vector.extract_strided_slice %6 {offsets = [0, 0, 16], sizes = [4, 128, 16], strides = [1, 1, 1]} : vector<4x128x32xf32> to vector<4x128x16xf32>
    %cst_10 = arith.constant 0.000000e+00 : f32
    %25 = vector.broadcast %cst_10 : f32 to vector<4x128x16xf32>
    %26 = arith.subf %25, %24 : vector<4x128x16xf32>
    %27 = vector.extract_strided_slice %6 {offsets = [0, 0, 0], sizes = [4, 128, 16], strides = [1, 1, 1]} : vector<4x128x32xf32> to vector<4x128x16xf32>
    %28 = tpu.concatenate %26, %27 in 2 : vector<4x128x16xf32>, vector<4x128x16xf32> -> vector<4x128x32xf32>
    %29 = vector.broadcast %11 : vector<1x128x32xf32> to vector<4x128x32xf32>
    %30 = arith.mulf %28, %29 : vector<4x128x32xf32>
    %31 = arith.addf %23, %30 : vector<4x128x32xf32>
    %c0_11 = arith.constant 0 : index
    %c0_12 = arith.constant 0 : index
    %c0_13 = arith.constant 0 : index
    %c0_14 = arith.constant 0 : index
    %32 = vector.load %arg3[%c0_11, %c0_12, %c0_13, %c0_14] : memref<1x1x128x128xf32, #tpu.memory_space<vmem>>, vector<1x1x128x128xf32>
    %33 = vector.shape_cast %32 : vector<1x1x128x128xf32> to vector<128x128xf32>
    "tpu.trace_start"() <{level = 10 : i32, message = "hqd,hkd->hqk"}> : () -> ()
    %cst_15 = arith.constant dense<0.000000e+00> : vector<4x128x128xf32>
    %34 = tpu.matmul %21, %31, %cst_15 {dimension_numbers = #tpu.dot_dimension_numbers<[2], [2], [1], [1], [0, 0, 0, 1, 1, 1], [0], [0]>} : vector<4x128x32xf32>, vector<4x128x32xf32>, vector<4x128x128xf32> -> vector<4x128x128xf32>
    "tpu.trace_stop"() : () -> ()
    %35 = vector.shape_cast %33 : vector<128x128xf32> to vector<1x128x128xf32>
    %36 = vector.broadcast %35 : vector<1x128x128xf32> to vector<4x128x128xf32>
    %37 = arith.addf %34, %36 : vector<4x128x128xf32>
    %cst_16 = arith.constant dense<0xFF800000> : vector<4x128xf32>
    %38 = vector.multi_reduction <maximumf>, %37, %cst_16 [2] : vector<4x128x128xf32> to vector<4x128xf32>
    %39 = vector.shape_cast %38 : vector<4x128xf32> to vector<4x128x1xf32>
    %40 = vector.broadcast %39 : vector<4x128x1xf32> to vector<4x128x128xf32>
    %41 = arith.subf %37, %40 : vector<4x128x128xf32>
    %42 = math.exp %41 : vector<4x128x128xf32>
    %cst_17 = arith.constant dense<0.000000e+00> : vector<4x128xf32>
    %43 = vector.multi_reduction <add>, %42, %cst_17 [2] : vector<4x128x128xf32> to vector<4x128xf32>
    %44 = vector.shape_cast %43 : vector<4x128xf32> to vector<4x128x1xf32>
    %45 = tpu.reciprocal %44 {approx = true} : vector<4x128x1xf32> -> vector<4x128x1xf32>
    %46 = vector.broadcast %45 : vector<4x128x1xf32> to vector<4x128x128xf32>
    %47 = arith.mulf %42, %46 : vector<4x128x128xf32>
    "tpu.trace_start"() <{level = 10 : i32, message = "hqk,hkd->hqd"}> : () -> ()
    %cst_18 = arith.constant dense<0.000000e+00> : vector<4x128x32xf32>
    %48 = tpu.matmul %47, %7, %cst_18 {dimension_numbers = #tpu.dot_dimension_numbers<[2], [1], [1], [2], [0, 0, 0, 1, 1, 2], [0], [0]>} : vector<4x128x128xf32>, vector<4x128x32xf32>, vector<4x128x32xf32> -> vector<4x128x32xf32>
    "tpu.trace_stop"() : () -> ()
    %49 = vector.extract_strided_slice %48 {offsets = [0, 0, 0], sizes = [1, 128, 32], strides = [1, 1, 1]} : vector<4x128x32xf32> to vector<1x128x32xf32>
    %50 = vector.shape_cast %49 : vector<1x128x32xf32> to vector<128x32xf32>
    %51 = vector.extract_strided_slice %48 {offsets = [1, 0, 0], sizes = [1, 128, 32], strides = [1, 1, 1]} : vector<4x128x32xf32> to vector<1x128x32xf32>
    %52 = vector.shape_cast %51 : vector<1x128x32xf32> to vector<128x32xf32>
    %53 = vector.extract_strided_slice %48 {offsets = [2, 0, 0], sizes = [1, 128, 32], strides = [1, 1, 1]} : vector<4x128x32xf32> to vector<1x128x32xf32>
    %54 = vector.shape_cast %53 : vector<1x128x32xf32> to vector<128x32xf32>
    %55 = vector.extract_strided_slice %48 {offsets = [3, 0, 0], sizes = [1, 128, 32], strides = [1, 1, 1]} : vector<4x128x32xf32> to vector<1x128x32xf32>
    %56 = vector.shape_cast %55 : vector<1x128x32xf32> to vector<128x32xf32>
    %57 = tpu.concatenate %50, %52, %54, %56 in 1 : vector<128x32xf32>, vector<128x32xf32>, vector<128x32xf32>, vector<128x32xf32> -> vector<128x128xf32>
    %c0_19 = arith.constant 0 : index
    %c0_20 = arith.constant 0 : index
    %58 = vector.load %arg7[%c0_19, %c0_20] : memref<128x128xf32, #tpu.memory_space<vmem>>, vector<128x128xf32>
    %cst_21 = arith.constant dense<0.000000e+00> : vector<128x128xf32>
    %59 = tpu.matmul %57, %58, %cst_21 {dimension_numbers = #tpu.dot_dimension_numbers<[1], [0], [0], [1], [0, 0, 1, 1], [], []>} : vector<128x128xf32>, vector<128x128xf32>, vector<128x128xf32> -> vector<128x128xf32>
    %c0_22 = arith.constant 0 : index
    %c0_23 = arith.constant 0 : index
    %c0_24 = arith.constant 0 : index
    %60 = vector.load %arg8[%c0_22, %c0_23, %c0_24] : memref<1x128x128xf32, #tpu.memory_space<vmem>>, vector<1x128x128xf32>
    %61 = vector.shape_cast %60 : vector<1x128x128xf32> to vector<128x128xf32>
    %62 = vector.shape_cast %59 : vector<128x128xf32> to vector<1x128x128xf32>
    tpu.vector_store %arg8[%c0_22, %c0_23, %c0_24], %62 {strides = array<i32>} : memref<1x128x128xf32, #tpu.memory_space<vmem>>, vector<1x128x128xf32>,
    return
  }
  func.func @transform_0(%arg0: i32, %arg1: i32) -> (i32, i32, i32) {
    %c0_i32 = arith.constant 0 : i32
    %c0_i32_0 = arith.constant 0 : i32
    return %arg0, %arg1, %c0_i32 : i32, i32, i32
  }
  func.func @transform_1(%arg0: i32, %arg1: i32) -> (i32, i32, i32, i32) {
    %c0_i32 = arith.constant 0 : i32
    %c0_i32_0 = arith.constant 0 : i32
    return %arg0, %c0_i32, %arg1, %arg1 : i32, i32, i32, i32
  }
  func.func @transform_2(%arg0: i32, %arg1: i32) -> (i32, i32) {
    %c0_i32 = arith.constant 0 : i32
    %c0_i32_0 = arith.constant 0 : i32
    %c0_i32_1 = arith.constant 0 : i32
    return %c0_i32, %c0_i32_0 : i32, i32
  }
  func.func @transform_3(%arg0: i32, %arg1: i32) -> (i32, i32) {
    %c0_i32 = arith.constant 0 : i32
    %c0_i32_0 = arith.constant 0 : i32
    %c0_i32_1 = arith.constant 0 : i32
    return %c0_i32, %c0_i32_0 : i32, i32
  }
  func.func @transform_4(%arg0: i32, %arg1: i32) -> (i32, i32, i32) {
    %c0_i32 = arith.constant 0 : i32
    %c0_i32_0 = arith.constant 0 : i32
    %c0_i32_1 = arith.constant 0 : i32
    %c0_i32_2 = arith.constant 0 : i32
    return %c0_i32, %c0_i32_0, %c0_i32_1 : i32, i32, i32
  }
  func.func @transform_5(%arg0: i32, %arg1: i32) -> (i32, i32) {
    %c0_i32 = arith.constant 0 : i32
    %c0_i32_0 = arith.constant 0 : i32
    %c0_i32_1 = arith.constant 0 : i32
    return %c0_i32, %c0_i32_0 : i32, i32
  }
  func.func @transform_6(%arg0: i32, %arg1: i32) -> (i32, i32, i32) {
    %c0_i32 = arith.constant 0 : i32
    %c0_i32_0 = arith.constant 0 : i32
    return %arg0, %arg1, %c0_i32 : i32, i32, i32
  }
}

</mosaic_0001>

<llo_original>
// kernel: tpu_custom_call.1
$region0: #{tpu_custom_call.1}
  #allocation0 [shape = 'u32[]', space=smem, size = 0x4, offset = 0x4, fixed_abs, tag = 'smem constant byte address 0x4 - core index']
  #allocation1 [shape = 'u32[144,128]{1,0:T(1,128)}', space=vmem, size = 0x12000, scoped, tag = 'internal scratch']
  %s0 = inlined_call_operand.hbm [shape: f32[2,256,128], index: 0, kind: input, shape index: {}]
  %s1 = inlined_call_operand.vmem [shape: f32[2,1,256,256], index: 1, kind: input, shape index: {}]
  %s2 = inlined_call_operand.vmem [shape: f32[128,32], index: 2, kind: input, shape index: {}]
  %s3 = inlined_call_operand.vmem [shape: f32[128,32], index: 3, kind: input, shape index: {}]
  %s4 = inlined_call_operand.vmem [shape: f32[4,128,96], index: 4, kind: input, shape index: {}]
  %s5 = inlined_call_operand.vmem [shape: f32[128,128], index: 5, kind: input, shape index: {}]
  %s6 = inlined_call_operand.hbm [shape: f32[2,256,128], index: 6, kind: output, shape index: {}]
  %s7 = sld [smem:[#allocation0]]
  $region99: #{tpu_custom_call.1} parent=0
    _
  %s9 = ssub.s32 1, %s7
  %s10 = scalar_select 0, %s9, %s7
  $region1: #{tpu_custom_call.1} parent=0
    #allocation2 [shape = 'u8[131072]{0}', space=vmem, size = 0x20000, scoped, tag = 'input window, operand 0']
    #allocation3 [shape = 's32[2]{0}', space=sflag, size = 0x8, scoped, tag = 'scoped memory for tpu_custom_call.1']
    #allocation4 [shape = 's32[2]{0}', space=sflag, size = 0x8, scoped, tag = 'scoped memory for tpu_custom_call.1']
    #allocation5 [shape = 'u8[131072]{0}', space=vmem, size = 0x20000, scoped, tag = 'input window, operand 1']
    #allocation6 [shape = 'u8[131072]{0}', space=vmem, size = 0x20000, scoped, tag = 'output window, operand 0']
    %11 = vsyncpa [#allocation3], 0
    %s12 = scalar_lea.sflag [#allocation3], 1
    %13 = vsyncpa %s12, 0
    %14 = vsyncpa [#allocation4], 0
    %s15 = scalar_lea.sflag [#allocation4], 1
    %16 = vsyncpa %s15, 0
    loop: start=0, step=1, limit=6
    $region2: #{tpu_custom_call.1} parent=1 // loop_pre_header
      _
    $region3: #{tpu_custom_call.1} parent=1 // loop_header
      %s18 = sphi 0, %s22
      %p19 = scmp.ge.s32.totalorder %s18, 6
      %s25 = sphi 0, %s37
      %s26 = sphi 0, %s33
      %s27 = sphi 0, %s25
      %s28 = sphi 0, %s26
      %s29 = sphi 0, %s27
      %s30 = sphi 0, %s28
      %s42 = sphi 0, %s44
      %s45 = sphi 0, %s42
      %s46 = sphi 0, %s45
      %s62 = sphi 0, %s46
      %s72 = sphi 0, %s74
      %s75 = sphi 0, %s72
      %s76 = sphi 0, %s75
      %s92 = sphi 0, %s76
      %s96 = sphi 0, %s96
      %s98 = sphi 0, %s96
      %s99 = sphi 0, %s98
      %s113 = sphi 0, %s99
      %s117 = sphi 0, %s117
      %s119 = sphi 0, %s117
      %s120 = sphi 0, %s119
      %s134 = sphi 0, %s120
      %s138 = sphi 0, %s138
      %s140 = sphi 0, %s138
      %s141 = sphi 0, %s140
      %s155 = sphi 0, %s141
      %s159 = sphi 0, %s159
      %s161 = sphi 0, %s159
      %s162 = sphi 0, %s161
      %s176 = sphi 0, %s162
      %s184 = sphi 0, %s186
      %s187 = sphi 0, %s184
      %s188 = sphi 0, %s187
      %s204 = sphi 0, %s188
    $region4: #{tpu_custom_call.1} parent=1 // loop_header_branch
      %21 = sbr.rel (%p19) target = $region8
    $region5: #{tpu_custom_call.1} parent=1 // loop_body
      %s23 = ssub.s32 %s18, 1
      %s24 = ssub.s32 %s18, 2
      %s31 = sadd.s32 1, %s26
      %p32 = scmp.ge.s32.totalorder %s31, 2
      %s33 = scalar_select %p32, 0, %s31
      %s34 = sadd.s32 1, %s25
      %s35 = scalar_select %p32, %s34, %s25
      %p36 = scmp.ge.s32.totalorder %s35, 2
      %s37 = scalar_select %p36, 0, %s35
      %s38 = ssub.s32 %s25, %s37
      %s39 = ssub.s32 %s26, %s33
      %s40 = sor.u32 %s38, %s39
      %p41 = scmp.eq.s32.totalorder %s40, 0
      %s43 = sadd.s32 %s42, 1
      %s44 = scalar_select %p41, %s42, %s43
      %p47 = pneg %p41
      %p48 = scmp.eq.s32.totalorder %s18, 3
      %p49 = por %p47, %p48
      %p50 = scmp.ne.s32.totalorder %s42, %s45
      %p51 = scmp.eq.s32.totalorder %s18, 0
      %p52 = por %p50, %p51
      %p53 = scmp.ne.s32.totalorder %s42, %s45
      %p54 = scmp.eq.s32.totalorder %s23, 3
      %p55 = por %p53, %p54
      %p56 = scmp.ne.s32.totalorder %s45, %s46
      %p57 = scmp.eq.s32.totalorder %s23, 0
      %p58 = por %p56, %p57
      %p59 = scmp.ne.s32.totalorder %s45, %s46
      %p60 = scmp.eq.s32.totalorder %s24, 3
      %p61 = por %p59, %p60
      %p63 = scmp.ne.s32.totalorder %s46, %s62
      %p64 = scmp.eq.s32.totalorder %s24, 0
      %p65 = por %p63, %p64
      %s66 = ssub.s32 %s25, %s37
      %s67 = ssub.s32 %s26, %s33
      %s68 = sor.u32 %s66, %s67
      %s69 = ssub.s32 %s26, %s33
      %s70 = sor.u32 %s68, %s69
      %p71 = scmp.eq.s32.totalorder %s70, 0
      %s73 = sadd.s32 %s72, 1
      %s74 = scalar_select %p71, %s72, %s73
      %p77 = pneg %p71
      %p78 = scmp.eq.s32.totalorder %s18, 3
      %p79 = por %p77, %p78
      %p80 = scmp.ne.s32.totalorder %s72, %s75
      %p81 = scmp.eq.s32.totalorder %s18, 0
      %p82 = por %p80, %p81
      %p83 = scmp.ne.s32.totalorder %s72, %s75
      %p84 = scmp.eq.s32.totalorder %s23, 3
      %p85 = por %p83, %p84
      %p86 = scmp.ne.s32.totalorder %s75, %s76
      %p87 = scmp.eq.s32.totalorder %s23, 0
      %p88 = por %p86, %p87
      %p89 = scmp.ne.s32.totalorder %s75, %s76
      %p90 = scmp.eq.s32.totalorder %s24, 3
      %p91 = por %p89, %p90
      %p93 = scmp.ne.s32.totalorder %s76, %s92
      %p94 = scmp.eq.s32.totalorder %s24, 0
      %p95 = por %p93, %p94
      %s97 = sadd.s32 %s96, 1
      %p100 = scmp.eq.s32.totalorder %s18, 3
      %p101 = scmp.ne.s32.totalorder %s96, %s98
      %p102 = scmp.eq.s32.totalorder %s18, 0
      %p103 = por %p101, %p102
      %p104 = scmp.ne.s32.totalorder %s96, %s98
      %p105 = scmp.eq.s32.totalorder %s23, 3
      %p106 = por %p104, %p105
      %p107 = scmp.ne.s32.totalorder %s98, %s99
      %p108 = scmp.eq.s32.totalorder %s23, 0
      %p109 = por %p107, %p108
      %p110 = scmp.ne.s32.totalorder %s98, %s99
      %p111 = scmp.eq.s32.totalorder %s24, 3
      %p112 = por %p110, %p111
      %p114 = scmp.ne.s32.totalorder %s99, %s113
      %p115 = scmp.eq.s32.totalorder %s24, 0
      %p116 = por %p114, %p115
      %s118 = sadd.s32 %s117, 1
      %p121 = scmp.eq.s32.totalorder %s18, 3
      %p122 = scmp.ne.s32.totalorder %s117, %s119
      %p123 = scmp.eq.s32.totalorder %s18, 0
      %p124 = por %p122, %p123
      %p125 = scmp.ne.s32.totalorder %s117, %s119
      %p126 = scmp.eq.s32.totalorder %s23, 3
      %p127 = por %p125, %p126
      %p128 = scmp.ne.s32.totalorder %s119, %s120
      %p129 = scmp.eq.s32.totalorder %s23, 0
      %p130 = por %p128, %p129
      %p131 = scmp.ne.s32.totalorder %s119, %s120
      %p132 = scmp.eq.s32.totalorder %s24, 3
      %p133 = por %p131, %p132
      %p135 = scmp.ne.s32.totalorder %s120, %s134
      %p136 = scmp.eq.s32.totalorder %s24, 0
      %p137 = por %p135, %p136
      %s139 = sadd.s32 %s138, 1
      %p142 = scmp.eq.s32.totalorder %s18, 3
      %p143 = scmp.ne.s32.totalorder %s138, %s140
      %p144 = scmp.eq.s32.totalorder %s18, 0
      %p145 = por %p143, %p144
      %p146 = scmp.ne.s32.totalorder %s138, %s140
      %p147 = scmp.eq.s32.totalorder %s23, 3
      %p148 = por %p146, %p147
      %p149 = scmp.ne.s32.totalorder %s140, %s141
      %p150 = scmp.eq.s32.totalorder %s23, 0
      %p151 = por %p149, %p150
      %p152 = scmp.ne.s32.totalorder %s140, %s141
      %p153 = scmp.eq.s32.totalorder %s24, 3
      %p154 = por %p152, %p153
      %p156 = scmp.ne.s32.totalorder %s141, %s155
      %p157 = scmp.eq.s32.totalorder %s24, 0
      %p158 = por %p156, %p157
      %s160 = sadd.s32 %s159, 1
      %p163 = scmp.eq.s32.totalorder %s18, 3
      %p164 = scmp.ne.s32.totalorder %s159, %s161
      %p165 = scmp.eq.s32.totalorder %s18, 0
      %p166 = por %p164, %p165
      %p167 = scmp.ne.s32.totalorder %s159, %s161
      %p168 = scmp.eq.s32.totalorder %s23, 3
      %p169 = por %p167, %p168
      %p170 = scmp.ne.s32.totalorder %s161, %s162
      %p171 = scmp.eq.s32.totalorder %s23, 0
      %p172 = por %p170, %p171
      %p173 = scmp.ne.s32.totalorder %s161, %s162
      %p174 = scmp.eq.s32.totalorder %s24, 3
      %p175 = por %p173, %p174
      %p177 = scmp.ne.s32.totalorder %s162, %s176
      %p178 = scmp.eq.s32.totalorder %s24, 0
      %p179 = por %p177, %p178
      %s180 = ssub.s32 %s25, %s37
      %s181 = ssub.s32 %s26, %s33
      %s182 = sor.u32 %s180, %s181
      %p183 = scmp.eq.s32.totalorder %s182, 0
      %s185 = sadd.s32 %s184, 1
      %s186 = scalar_select %p183, %s184, %s185
      %p189 = pneg %p183
      %p190 = scmp.eq.s32.totalorder %s18, 3
      %p191 = por %p189, %p190
      %p192 = scmp.ne.s32.totalorder %s184, %s187
      %p193 = scmp.eq.s32.totalorder %s18, 0
      %p194 = por %p192, %p193
      %p195 = scmp.ne.s32.totalorder %s184, %s187
      %p196 = scmp.eq.s32.totalorder %s23, 3
      %p197 = por %p195, %p196
      %p198 = scmp.ne.s32.totalorder %s187, %s188
      %p199 = scmp.eq.s32.totalorder %s23, 0
      %p200 = por %p198, %p199
      %p201 = scmp.ne.s32.totalorder %s187, %s188
      %p202 = scmp.eq.s32.totalorder %s24, 3
      %p203 = por %p201, %p202
      %p205 = scmp.ne.s32.totalorder %s188, %s204
      %p206 = scmp.eq.s32.totalorder %s24, 0
      %p207 = por %p205, %p206
      %p208 = scmp.le.s32.totalorder 1, %s18
      %p209 = scmp.lt.s32.totalorder %s18, 5
      %p210 = pnand %p208, %p209
      %p211 = pneg %p210
      // Predicated region
      $region9: #{tpu_custom_call.1} parent=5 // pred_check
        _
      $region10: #{tpu_custom_call.1} parent=5 // pred_check_branch
        %213 = sbr.rel (%p210) target = $region12
      $region11: #{tpu_custom_call.1} parent=5 // pred_region
        %s214 = ssub.s32 %s18, 1
        // Predicated region
        $region13: #{tpu_custom_call.1} parent=11 // pred_check
          %p215 = pneg %p109
        $region14: #{tpu_custom_call.1} parent=11 // pred_check_branch
          %217 = sbr.rel (%p215) target = $region16
        $region15: #{tpu_custom_call.1} parent=11 // pred_region
          _
        $region16: #{tpu_custom_call.1} parent=11 // pred_fallthru
          _
        // Predicated region
        $region17: #{tpu_custom_call.1} parent=11 // pred_check
          %p218 = pneg %p130
        $region18: #{tpu_custom_call.1} parent=11 // pred_check_branch
          %220 = sbr.rel (%p218) target = $region20
        $region19: #{tpu_custom_call.1} parent=11 // pred_region
          _
        $region20: #{tpu_custom_call.1} parent=11 // pred_fallthru
          _
        // Predicated region
        $region21: #{tpu_custom_call.1} parent=11 // pred_check
          %p221 = pneg %p151
        $region22: #{tpu_custom_call.1} parent=11 // pred_check_branch
          %223 = sbr.rel (%p221) target = $region24
        $region23: #{tpu_custom_call.1} parent=11 // pred_region
          _
        $region24: #{tpu_custom_call.1} parent=11 // pred_fallthru
          _
        // Predicated region
        $region25: #{tpu_custom_call.1} parent=11 // pred_check
          %p224 = pneg %p172
        $region26: #{tpu_custom_call.1} parent=11 // pred_check_branch
          %226 = sbr.rel (%p224) target = $region28
        $region27: #{tpu_custom_call.1} parent=11 // pred_region
          _
        $region28: #{tpu_custom_call.1} parent=11 // pred_fallthru
          _
      $region12: #{tpu_custom_call.1} parent=5 // pred_fallthru
        _
      %p227 = scmp.lt.s32.totalorder %s18, 4
      // Predicated region
      $region29: #{tpu_custom_call.1} parent=5 // pred_check
        %p228 = pneg %p227
      $region30: #{tpu_custom_call.1} parent=5 // pred_check_branch
        %230 = sbr.rel (%p228) target = $region32
      $region31: #{tpu_custom_call.1} parent=5 // pred_region
        // Predicated region
        $region33: #{tpu_custom_call.1} parent=31 // pred_check
          %p231 = pneg %p52
        $region34: #{tpu_custom_call.1} parent=31 // pred_check_branch
          %233 = sbr.rel (%p231) target = $region36
        $region35: #{tpu_custom_call.1} parent=31 // pred_region
          %s234 = sand.u32 %s42, 1
          %s235 = scalar_lea.sflag [#allocation3], %s234
          %s236 = sand.u32 %s42, 1
          %s237 = smul.addr %s236, 128
          %s238 = scalar_lea.vmem [#allocation2], %s237
          %s239 = smul.u32 16, %s26
          %s241 = ssub.s32 2048, 2048
          %242 = vsyncadd %s235, %s241
          %s243 = smul.addr %s25, 32
          %s244 = sadd.s32 %s239, %s243
          %s245 = smul.addr %s244, 128
          %s246 = scalar_lea.hbm %s0, %s245
          %s247 = sshll.u32 %s238, 4
          %s248 = int_to_ptr.vmem [resolvable:$true] %s247
          %253 = dma.hbm_to_vmem [thread:$0]  %s246, 2048, %s248, %s235, 128, 128, 8
        $region36: #{tpu_custom_call.1} parent=31 // pred_fallthru
          _
        // Predicated region
        $region37: #{tpu_custom_call.1} parent=31 // pred_check
          %p254 = pneg %p82
        $region38: #{tpu_custom_call.1} parent=31 // pred_check_branch
          %256 = sbr.rel (%p254) target = $region40
        $region39: #{tpu_custom_call.1} parent=31 // pred_region
          %s257 = sand.u32 %s72, 1
          %s258 = sand.u32 %s72, 1
          %s259 = smul.addr %s258, 128
          %s260 = scalar_lea.vmem [#allocation5], %s259
          %s261 = smul.u32 16, %s26
          %s262 = smul.addr %s261, 2
          %s263 = sadd.s32 %s26, %s262
          %s264 = smul.addr %s25, 64
          %s265 = sadd.s32 %s263, %s264
          %s266 = smul.addr %s265, 8
          %s267 = scalar_lea.vmem %s1, %s266
          // Predicated region
          $region41: #{tpu_custom_call.1} parent=39 // pred_check
            _
          $region42: #{tpu_custom_call.1} parent=39 // pred_check_branch
            %269 = sbr.rel (0) target = $region44
          $region43: #{tpu_custom_call.1} parent=39 // pred_region
            // Predicated region
            $region45: #{tpu_custom_call.1} parent=43 // pred_check
              _
            $region46: #{tpu_custom_call.1} parent=43 // pred_check_branch
              %271 = sbr.rel (0) target = $region48
            $region47: #{tpu_custom_call.1} parent=43 // pred_region
              // Predicated region
              $region60: #{tpu_custom_call.1} parent=47 // pred_check
                _
              $region61: #{tpu_custom_call.1} parent=47 // pred_check_branch
                %317 = sbr.rel (0) target = $region63
              $region62: #{tpu_custom_call.1} parent=47 // pred_region
                loop: start=0, step=1, limit=1
                $region64: #{tpu_custom_call.1} parent=62 // loop_pre_header
                  _
                $region65: #{tpu_custom_call.1} parent=62 // loop_header
                  %s319 = sphi 0, %s323
                  %p320 = scmp.ge.s32.totalorder %s319, 1
                  %s324 = sphi %s267, %s267
                  %s325 = sphi %s260, %s260
                $region66: #{tpu_custom_call.1} parent=62 // loop_header_branch
                  %322 = sbr.rel (%p320) target = $region70
                $region67: #{tpu_custom_call.1} parent=62 // loop_body
                  %v326 = vld [vmem:[%s324] sm:$0xff]
                  %327 = vst [vmem:[%s325] sm:$0xff] %v326
                  %v328 = vld [vmem:[%s324 + $0x10] sm:$0xff]
                  %329 = vst [vmem:[%s325 + $0x8] sm:$0xff] %v328
                  %v330 = vld [vmem:[%s324 + $0x20] sm:$0xff]
                  %331 = vst [vmem:[%s325 + $0x10] sm:$0xff] %v330
                  %v332 = vld [vmem:[%s324 + $0x30] sm:$0xff]
                  %333 = vst [vmem:[%s325 + $0x18] sm:$0xff] %v332
                  %v334 = vld [vmem:[%s324 + $0x40] sm:$0xff]
                  %335 = vst [vmem:[%s325 + $0x20] sm:$0xff] %v334
                  %v336 = vld [vmem:[%s324 + $0x50] sm:$0xff]
                  %337 = vst [vmem:[%s325 + $0x28] sm:$0xff] %v336
                  %v338 = vld [vmem:[%s324 + $0x60] sm:$0xff]
                  %339 = vst [vmem:[%s325 + $0x30] sm:$0xff] %v338
                  %v340 = vld [vmem:[%s324 + $0x70] sm:$0xff]
                  %341 = vst [vmem:[%s325 + $0x38] sm:$0xff] %v340
                  %v342 = vld [vmem:[%s324 + $0x80] sm:$0xff]
                  %343 = vst [vmem:[%s325 + $0x40] sm:$0xff] %v342
                  %v344 = vld [vmem:[%s324 + $0x90] sm:$0xff]
                  %345 = vst [vmem:[%s325 + $0x48] sm:$0xff] %v344
                  %v346 = vld [vmem:[%s324 + $0xa0] sm:$0xff]
                  %347 = vst [vmem:[%s325 + $0x50] sm:$0xff] %v346
                  %v348 = vld [vmem:[%s324 + $0xb0] sm:$0xff]
                  %349 = vst [vmem:[%s325 + $0x58] sm:$0xff] %v348
                  %v350 = vld [vmem:[%s324 + $0xc0] sm:$0xff]
                  %351 = vst [vmem:[%s325 + $0x60] sm:$0xff] %v350
                  %v352 = vld [vmem:[%s324 + $0xd0] sm:$0xff]
                  %353 = vst [vmem:[%s325 + $0x68] sm:$0xff] %v352
                  %v354 = vld [vmem:[%s324 + $0xe0] sm:$0xff]
                  %355 = vst [vmem:[%s325 + $0x70] sm:$0xff] %v354
                  %v356 = vld [vmem:[%s324 + $0xf0] sm:$0xff]
                  %357 = vst [vmem:[%s325 + $0x78] sm:$0xff] %v356
                $region68: #{tpu_custom_call.1} parent=62 // loop_footer
                  %s323 = sadd.s32 1, %s319
                $region69: #{tpu_custom_call.1} parent=62 // loop_footer_branch
                  %318 = sbr.rel target = $region65
                $region70: #{tpu_custom_call.1} parent=62 // loop_exit
                  _
              $region63: #{tpu_custom_call.1} parent=47 // pred_fallthru
                _
              // Predicated region
              $region71: #{tpu_custom_call.1} parent=47 // pred_check
                _
              $region72: #{tpu_custom_call.1} parent=47 // pred_check_branch
                %359 = sbr.rel target = $region74
              $region73: #{tpu_custom_call.1} parent=47 // pred_region
                _
              $region74: #{tpu_custom_call.1} parent=47 // pred_fallthru
                _
            $region48: #{tpu_custom_call.1} parent=43 // pred_fallthru
              _
            // Predicated region
            $region49: #{tpu_custom_call.1} parent=43 // pred_check
              _
            $region50: #{tpu_custom_call.1} parent=43 // pred_check_branch
              %273 = sbr.rel target = $region52
            $region51: #{tpu_custom_call.1} parent=43 // pred_region
              %s275 = ssub.s32 256, 1
              loop: start=0, step=1, limit=1
              $region53: #{tpu_custom_call.1} parent=51 // loop_pre_header
                _
              $region54: #{tpu_custom_call.1} parent=51 // loop_header
                %s277 = sphi 0, %s281
                %p278 = scmp.ge.s32.totalorder %s277, 1
                %s282 = sphi %s267, %s267
                %s283 = sphi %s260, %s260
              $region55: #{tpu_custom_call.1} parent=51 // loop_header_branch
                %280 = sbr.rel (%p278) target = $region59
              $region56: #{tpu_custom_call.1} parent=51 // loop_body
                %v284 = vld [vmem:[%s282] sm:%s275]
                %285 = vst [vmem:[%s283] sm:%s275] %v284
                %v286 = vld [vmem:[%s282 + $0x10] sm:%s275]
                %287 = vst [vmem:[%s283 + $0x8] sm:%s275] %v286
                %v288 = vld [vmem:[%s282 + $0x20] sm:%s275]
                %289 = vst [vmem:[%s283 + $0x10] sm:%s275] %v288
                %v290 = vld [vmem:[%s282 + $0x30] sm:%s275]
                %291 = vst [vmem:[%s283 + $0x18] sm:%s275] %v290
                %v292 = vld [vmem:[%s282 + $0x40] sm:%s275]
                %293 = vst [vmem:[%s283 + $0x20] sm:%s275] %v292
                %v294 = vld [vmem:[%s282 + $0x50] sm:%s275]
                %295 = vst [vmem:[%s283 + $0x28] sm:%s275] %v294
                %v296 = vld [vmem:[%s282 + $0x60] sm:%s275]
                %297 = vst [vmem:[%s283 + $0x30] sm:%s275] %v296
                %v298 = vld [vmem:[%s282 + $0x70] sm:%s275]
                %299 = vst [vmem:[%s283 + $0x38] sm:%s275] %v298
                %v300 = vld [vmem:[%s282 + $0x80] sm:%s275]
                %301 = vst [vmem:[%s283 + $0x40] sm:%s275] %v300
                %v302 = vld [vmem:[%s282 + $0x90] sm:%s275]
                %303 = vst [vmem:[%s283 + $0x48] sm:%s275] %v302
                %v304 = vld [vmem:[%s282 + $0xa0] sm:%s275]
                %305 = vst [vmem:[%s283 + $0x50] sm:%s275] %v304
                %v306 = vld [vmem:[%s282 + $0xb0] sm:%s275]
                %307 = vst [vmem:[%s283 + $0x58] sm:%s275] %v306
                %v308 = vld [vmem:[%s282 + $0xc0] sm:%s275]
                %309 = vst [vmem:[%s283 + $0x60] sm:%s275] %v308
                %v310 = vld [vmem:[%s282 + $0xd0] sm:%s275]
                %311 = vst [vmem:[%s283 + $0x68] sm:%s275] %v310
                %v312 = vld [vmem:[%s282 + $0xe0] sm:%s275]
                %313 = vst [vmem:[%s283 + $0x70] sm:%s275] %v312
                %v314 = vld [vmem:[%s282 + $0xf0] sm:%s275]
                %315 = vst [vmem:[%s283 + $0x78] sm:%s275] %v314
              $region57: #{tpu_custom_call.1} parent=51 // loop_footer
                %s281 = sadd.s32 1, %s277
              $region58: #{tpu_custom_call.1} parent=51 // loop_footer_branch
                %276 = sbr.rel target = $region54
              $region59: #{tpu_custom_call.1} parent=51 // loop_exit
                _
            $region52: #{tpu_custom_call.1} parent=43 // pred_fallthru
              _
          $region44: #{tpu_custom_call.1} parent=39 // pred_fallthru
            _
          %360 = vnop
        $region40: #{tpu_custom_call.1} parent=31 // pred_fallthru
          _
      $region32: #{tpu_custom_call.1} parent=5 // pred_fallthru
        _
      %p361 = scmp.le.s32.totalorder 1, %s18
      %p362 = scmp.lt.s32.totalorder %s18, 5
      %p363 = pnand %p361, %p362
      %p364 = pneg %p363
      // Predicated region
      $region75: #{tpu_custom_call.1} parent=5 // pred_check
        _
      $region76: #{tpu_custom_call.1} parent=5 // pred_check_branch
        %366 = sbr.rel (%p363) target = $region78
      $region77: #{tpu_custom_call.1} parent=5 // pred_region
        %s367 = ssub.s32 %s18, 1
        %s368 = sand.u32 %s45, 1
        %s369 = scalar_lea.sflag [#allocation3], %s368
        %s370 = sand.u32 %s45, 1
        %s371 = smul.addr %s370, 128
        %s372 = scalar_lea.vmem [#allocation2], %s371
        // Predicated region
        $region79: #{tpu_custom_call.1} parent=77 // pred_check
          %p373 = pneg %p58
        $region80: #{tpu_custom_call.1} parent=77 // pred_check_branch
          %375 = sbr.rel (%p373) target = $region82
        $region81: #{tpu_custom_call.1} parent=77 // pred_region
          %376 = dma.done %s369, 2048
        $region82: #{tpu_custom_call.1} parent=77 // pred_fallthru
          _
        %s377 = sand.u32 %s75, 1
        %s378 = sand.u32 %s75, 1
        %s379 = smul.addr %s378, 128
        %s380 = scalar_lea.vmem [#allocation5], %s379
        // Predicated region
        $region83: #{tpu_custom_call.1} parent=77 // pred_check
          %p381 = pneg %p88
        $region84: #{tpu_custom_call.1} parent=77 // pred_check_branch
          %383 = sbr.rel (%p381) target = $region86
        $region85: #{tpu_custom_call.1} parent=77 // pred_region
          _
        $region86: #{tpu_custom_call.1} parent=77 // pred_fallthru
          _
        %s384 = sand.u32 %s45, 1
        %s385 = scalar_lea.sflag [#allocation3], %s384
        %s386 = sand.u32 %s45, 1
        %s387 = smul.addr %s386, 128
        %s388 = scalar_lea.vmem [#allocation2], %s387
        %p389 = pneg %p58
        %p390 = pneg %p55
        %s391 = sand.u32 %s75, 1
        %s392 = sand.u32 %s75, 1
        %s393 = smul.addr %s392, 128
        %s394 = scalar_lea.vmem [#allocation5], %s393
        %p395 = pneg %p88
        %p396 = pneg %p85
        %p397 = pneg %p109
        %p398 = pneg %p106
        %p399 = pneg %p130
        %p400 = pneg %p127
        %p401 = pneg %p151
        %p402 = pneg %p148
        %p403 = pneg %p172
        %p404 = pneg %p169
        %p405 = pneg %p200
        %p406 = pneg %p197
        %s407 = sand.u32 %s187, 1
        %s408 = scalar_lea.sflag [#allocation4], %s407
        %s409 = sand.u32 %s187, 1
        %s410 = smul.addr %s409, 128
        %s411 = scalar_lea.vmem [#allocation6], %s410
        %s412 = smul.u32 16, %s28
        %s413 = smul.u32 16, %s28
        %s414 = smul.u32 16, %s28
        %v415 = vld [vmem:[%s372] sm:$0xff]
        %v416 = vld [vmem:[%s372 + $0x8] sm:$0xff]
        %v417 = vld [vmem:[%s372 + $0x10] sm:$0xff]
        %v418 = vld [vmem:[%s372 + $0x18] sm:$0xff]
        %v419 = vld [vmem:[%s372 + $0x20] sm:$0xff]
        %v420 = vld [vmem:[%s372 + $0x28] sm:$0xff]
        %v421 = vld [vmem:[%s372 + $0x30] sm:$0xff]
        %v422 = vld [vmem:[%s372 + $0x38] sm:$0xff]
        %v423 = vld [vmem:[%s372 + $0x40] sm:$0xff]
        %v424 = vld [vmem:[%s372 + $0x48] sm:$0xff]
        %v425 = vld [vmem:[%s372 + $0x50] sm:$0xff]
        %v426 = vld [vmem:[%s372 + $0x58] sm:$0xff]
        %v427 = vld [vmem:[%s372 + $0x60] sm:$0xff]
        %v428 = vld [vmem:[%s372 + $0x68] sm:$0xff]
        %v429 = vld [vmem:[%s372 + $0x70] sm:$0xff]
        %v430 = vld [vmem:[%s372 + $0x78] sm:$0xff]
        %v431 = vld [vmem:[%s4] sm:$0xff]
        %v432 = vld [vmem:[%s4 + $0x8] sm:$0xff]
        %v433 = vld [vmem:[%s4 + $0x10] sm:$0xff]
        %v434 = vld [vmem:[%s4 + $0x18] sm:$0xff]
        %v435 = vld [vmem:[%s4 + $0x20] sm:$0xff]
        %v436 = vld [vmem:[%s4 + $0x28] sm:$0xff]
        %v437 = vld [vmem:[%s4 + $0x30] sm:$0xff]
        %v438 = vld [vmem:[%s4 + $0x38] sm:$0xff]
        %v439 = vld [vmem:[%s4 + $0x40] sm:$0xff]
        %v440 = vld [vmem:[%s4 + $0x48] sm:$0xff]
        %v441 = vld [vmem:[%s4 + $0x50] sm:$0xff]
        %v442 = vld [vmem:[%s4 + $0x58] sm:$0xff]
        %v443 = vld [vmem:[%s4 + $0x60] sm:$0xff]
        %v444 = vld [vmem:[%s4 + $0x68] sm:$0xff]
        %v445 = vld [vmem:[%s4 + $0x70] sm:$0xff]
        %v446 = vld [vmem:[%s4 + $0x78] sm:$0xff]
        %v447 = vld [vmem:[%s4 + $0x80] sm:$0xff]
        %v448 = vld [vmem:[%s4 + $0x88] sm:$0xff]
        %v449 = vld [vmem:[%s4 + $0x90] sm:$0xff]
        %v450 = vld [vmem:[%s4 + $0x98] sm:$0xff]
        %v451 = vld [vmem:[%s4 + $0xa0] sm:$0xff]
        %v452 = vld [vmem:[%s4 + $0xa8] sm:$0xff]
        %v453 = vld [vmem:[%s4 + $0xb0] sm:$0xff]
        %v454 = vld [vmem:[%s4 + $0xb8] sm:$0xff]
        %v455 = vld [vmem:[%s4 + $0xc0] sm:$0xff]
        %v456 = vld [vmem:[%s4 + $0xc8] sm:$0xff]
        %v457 = vld [vmem:[%s4 + $0xd0] sm:$0xff]
        %v458 = vld [vmem:[%s4 + $0xd8] sm:$0xff]
        %v459 = vld [vmem:[%s4 + $0xe0] sm:$0xff]
        %v460 = vld [vmem:[%s4 + $0xe8] sm:$0xff]
        %v461 = vld [vmem:[%s4 + $0xf0] sm:$0xff]
        %v462 = vld [vmem:[%s4 + $0xf8] sm:$0xff]
        %v463 = vld [vmem:[%s4 + $0x100] sm:$0xff]
        %v464 = vld [vmem:[%s4 + $0x108] sm:$0xff]
        %v465 = vld [vmem:[%s4 + $0x110] sm:$0xff]
        %v466 = vld [vmem:[%s4 + $0x118] sm:$0xff]
        %v467 = vld [vmem:[%s4 + $0x120] sm:$0xff]
        %v468 = vld [vmem:[%s4 + $0x128] sm:$0xff]
        %v469 = vld [vmem:[%s4 + $0x130] sm:$0xff]
        %v470 = vld [vmem:[%s4 + $0x138] sm:$0xff]
        %v471 = vld [vmem:[%s4 + $0x140] sm:$0xff]
        %v472 = vld [vmem:[%s4 + $0x148] sm:$0xff]
        %v473 = vld [vmem:[%s4 + $0x150] sm:$0xff]
        %v474 = vld [vmem:[%s4 + $0x158] sm:$0xff]
        %v475 = vld [vmem:[%s4 + $0x160] sm:$0xff]
        %v476 = vld [vmem:[%s4 + $0x168] sm:$0xff]
        %v477 = vld [vmem:[%s4 + $0x170] sm:$0xff]
        %v478 = vld [vmem:[%s4 + $0x178] sm:$0xff]
        %v479 = vld [vmem:[%s4 + $0x180] sm:$0xff]
        %v480 = vld [vmem:[%s4 + $0x188] sm:$0xff]
        %v481 = vld [vmem:[%s4 + $0x190] sm:$0xff]
        %v482 = vld [vmem:[%s4 + $0x198] sm:$0xff]
        %v483 = vld [vmem:[%s4 + $0x1a0] sm:$0xff]
        %v484 = vld [vmem:[%s4 + $0x1a8] sm:$0xff]
        %v485 = vld [vmem:[%s4 + $0x1b0] sm:$0xff]
        %v486 = vld [vmem:[%s4 + $0x1b8] sm:$0xff]
        %v487 = vld [vmem:[%s4 + $0x1c0] sm:$0xff]
        %v488 = vld [vmem:[%s4 + $0x1c8] sm:$0xff]
        %v489 = vld [vmem:[%s4 + $0x1d0] sm:$0xff]
        %v490 = vld [vmem:[%s4 + $0x1d8] sm:$0xff]
        %v491 = vld [vmem:[%s4 + $0x1e0] sm:$0xff]
        %v492 = vld [vmem:[%s4 + $0x1e8] sm:$0xff]
        %v493 = vld [vmem:[%s4 + $0x1f0] sm:$0xff]
        %v494 = vld [vmem:[%s4 + $0x1f8] sm:$0xff]
        %495 = vmatprep.subr.mxu0 0.0
        %496 = vmatpush1.msra.mxu0 %v446
        %497 = vmatprep.subr.mxu0 0.0
        %498 = vmatpush1.msra.mxu0 %v445
        %499 = vmatprep.subr.mxu0 0.0
        %500 = vmatpush1.msra.mxu0 %v444
        %501 = vmatprep.subr.mxu0 0.0
        %502 = vmatpush1.msra.mxu0 %v443
        %503 = vmatprep.subr.mxu0 0.0
        %504 = vmatpush1.msra.mxu0 %v442
        %505 = vmatprep.subr.mxu0 0.0
        %506 = vmatpush1.msra.mxu0 %v441
        %507 = vmatprep.subr.mxu0 0.0
        %508 = vmatpush1.msra.mxu0 %v440
        %509 = vmatprep.subr.mxu0 0.0
        %510 = vmatpush1.msra.mxu0 %v439
        %511 = vmatprep.subr.mxu0 0.0
        %512 = vmatpush1.msra.mxu0 %v438
        %513 = vmatprep.subr.mxu0 0.0
        %514 = vmatpush1.msra.mxu0 %v437
        %515 = vmatprep.subr.mxu0 0.0
        %516 = vmatpush1.msra.mxu0 %v436
        %517 = vmatprep.subr.mxu0 0.0
        %518 = vmatpush1.msra.mxu0 %v435
        %519 = vmatprep.subr.mxu0 0.0
        %520 = vmatpush1.msra.mxu0 %v434
        %521 = vmatprep.subr.mxu0 0.0
        %522 = vmatpush1.msra.mxu0 %v433
        %523 = vmatprep.subr.mxu0 0.0
        %524 = vmatpush1.msra.mxu0 %v432
        %525 = vmatprep.subr.mxu0 0.0
        %526 = vmatpush1.msra.mxu0 %v431
        %527 = vmatprep.subr.mxu0 0.0
        %528 = vmatpush2.msra.mxu0 0.0
        %529 = vmatprep.subr.mxu0 0.0
        %530 = vmatpush2.msra.mxu0 0.0
        %531 = vmatprep.subr.mxu0 0.0
        %532 = vmatpush2.msra.mxu0 0.0
        %533 = vmatprep.subr.mxu0 0.0
        %534 = vmatpush2.msra.mxu0 0.0
        %535 = vmatprep.subr.mxu0 0.0
        %536 = vmatpush2.msra.mxu0 0.0
        %537 = vmatprep.subr.mxu0 0.0
        %538 = vmatpush2.msra.mxu0 0.0
        %539 = vmatprep.subr.mxu0 0.0
        %540 = vmatpush2.msra.mxu0 0.0
        %541 = vmatprep.subr.mxu0 0.0
        %542 = vmatpush2.msra.mxu0 0.0
        %543 = vmatprep.subr.mxu0 0.0
        %544 = vmatpush2.msra.mxu0 0.0
        %545 = vmatprep.subr.mxu0 0.0
        %546 = vmatpush2.msra.mxu0 0.0
        %547 = vmatprep.subr.mxu0 0.0
        %548 = vmatpush2.msra.mxu0 0.0
        %549 = vmatprep.subr.mxu0 0.0
        %550 = vmatpush2.msra.mxu0 0.0
        %551 = vmatprep.subr.mxu0 0.0
        %552 = vmatpush2.msra.mxu0 0.0
        %553 = vmatprep.subr.mxu0 0.0
        %554 = vmatpush2.msra.mxu0 0.0
        %555 = vmatprep.subr.mxu0 0.0
        %556 = vmatpush2.msra.mxu0 0.0
        %557 = vmatprep.subr.mxu0 0.0
        %558 = vmatpush2.msra.mxu0 0.0
        %559 = vmatprep.mubr.f32.mxu0 0.0
        %560 = vmatmul.mubr.f32.gmra.mxu0 %v415
        %v561 = vpop.f32.mrf.mxu0
        %v562 = vadd.f32 0.0, %v561
        %v563 = vpop.f32.mrf.mxu0
        %564 = vmatprep.mubr.f32.mxu0 0.0
        %565 = vmatmul.mubr.f32.gmra.mxu0 %v416
        %v566 = vpop.f32.mrf.mxu0
        %v567 = vadd.f32 0.0, %v566
        %v568 = vpop.f32.mrf.mxu0
        %569 = vmatprep.mubr.f32.mxu0 0.0
        %570 = vmatmul.mubr.f32.gmra.mxu0 %v417
        %v571 = vpop.f32.mrf.mxu0
        %v572 = vadd.f32 0.0, %v571
        %v573 = vpop.f32.mrf.mxu0
        %574 = vmatprep.mubr.f32.mxu0 0.0
        %575 = vmatmul.mubr.f32.gmra.mxu0 %v418
        %v576 = vpop.f32.mrf.mxu0
        %v577 = vadd.f32 0.0, %v576
        %v578 = vpop.f32.mrf.mxu0
        %579 = vmatprep.mubr.f32.mxu0 0.0
        %580 = vmatmul.mubr.f32.gmra.mxu0 %v419
        %v581 = vpop.f32.mrf.mxu0
        %v582 = vadd.f32 0.0, %v581
        %v583 = vpop.f32.mrf.mxu0
        %584 = vmatprep.mubr.f32.mxu0 0.0
        %585 = vmatmul.mubr.f32.gmra.mxu0 %v420
        %v586 = vpop.f32.mrf.mxu0
        %v587 = vadd.f32 0.0, %v586
        %v588 = vpop.f32.mrf.mxu0
        %589 = vmatprep.mubr.f32.mxu0 0.0
        %590 = vmatmul.mubr.f32.gmra.mxu0 %v421
        %v591 = vpop.f32.mrf.mxu0
        %v592 = vadd.f32 0.0, %v591
        %v593 = vpop.f32.mrf.mxu0
        %594 = vmatprep.mubr.f32.mxu0 0.0
        %595 = vmatmul.mubr.f32.gmra.mxu0 %v422
        %v596 = vpop.f32.mrf.mxu0
        %v597 = vadd.f32 0.0, %v596
        %v598 = vpop.f32.mrf.mxu0
        %599 = vmatprep.mubr.f32.mxu0 0.0
        %600 = vmatmul.mubr.f32.gmra.mxu0 %v423
        %v601 = vpop.f32.mrf.mxu0
        %v602 = vadd.f32 0.0, %v601
        %v603 = vpop.f32.mrf.mxu0
        %604 = vmatprep.mubr.f32.mxu0 0.0
        %605 = vmatmul.mubr.f32.gmra.mxu0 %v424
        %v606 = vpop.f32.mrf.mxu0
        %v607 = vadd.f32 0.0, %v606
        %v608 = vpop.f32.mrf.mxu0
        %609 = vmatprep.mubr.f32.mxu0 0.0
        %610 = vmatmul.mubr.f32.gmra.mxu0 %v425
        %v611 = vpop.f32.mrf.mxu0
        %v612 = vadd.f32 0.0, %v611
        %v613 = vpop.f32.mrf.mxu0
        %614 = vmatprep.mubr.f32.mxu0 0.0
        %615 = vmatmul.mubr.f32.gmra.mxu0 %v426
        %v616 = vpop.f32.mrf.mxu0
        %v617 = vadd.f32 0.0, %v616
        %v618 = vpop.f32.mrf.mxu0
        %619 = vmatprep.mubr.f32.mxu0 0.0
        %620 = vmatmul.mubr.f32.gmra.mxu0 %v427
        %v621 = vpop.f32.mrf.mxu0
        %v622 = vadd.f32 0.0, %v621
        %v623 = vpop.f32.mrf.mxu0
        %624 = vmatprep.mubr.f32.mxu0 0.0
        %625 = vmatmul.mubr.f32.gmra.mxu0 %v428
        %v626 = vpop.f32.mrf.mxu0
        %v627 = vadd.f32 0.0, %v626
        %v628 = vpop.f32.mrf.mxu0
        %629 = vmatprep.mubr.f32.mxu0 0.0
        %630 = vmatmul.mubr.f32.gmra.mxu0 %v429
        %v631 = vpop.f32.mrf.mxu0
        %v632 = vadd.f32 0.0, %v631
        %v633 = vpop.f32.mrf.mxu0
        %634 = vmatprep.mubr.f32.mxu0 0.0
        %635 = vmatmul.mubr.f32.gmra.mxu0 %v430
        %v636 = vpop.f32.mrf.mxu0
        %v637 = vadd.f32 0.0, %v636
        %v638 = vpop.f32.mrf.mxu0
        %639 = vdwg.mxu0
        %640 = vmatprep.subr.mxu0 0.0
        %641 = vmatpush1.msra.mxu0 %v462
        %642 = vmatprep.subr.mxu0 0.0
        %643 = vmatpush1.msra.mxu0 %v461
        %644 = vmatprep.subr.mxu0 0.0
        %645 = vmatpush1.msra.mxu0 %v460
        %646 = vmatprep.subr.mxu0 0.0
        %647 = vmatpush1.msra.mxu0 %v459
        %648 = vmatprep.subr.mxu0 0.0
        %649 = vmatpush1.msra.mxu0 %v458
        %650 = vmatprep.subr.mxu0 0.0
        %651 = vmatpush1.msra.mxu0 %v457
        %652 = vmatprep.subr.mxu0 0.0
        %653 = vmatpush1.msra.mxu0 %v456
        %654 = vmatprep.subr.mxu0 0.0
        %655 = vmatpush1.msra.mxu0 %v455
        %656 = vmatprep.subr.mxu0 0.0
        %657 = vmatpush1.msra.mxu0 %v454
        %658 = vmatprep.subr.mxu0 0.0
        %659 = vmatpush1.msra.mxu0 %v453
        %660 = vmatprep.subr.mxu0 0.0
        %661 = vmatpush1.msra.mxu0 %v452
        %662 = vmatprep.subr.mxu0 0.0
        %663 = vmatpush1.msra.mxu0 %v451
        %664 = vmatprep.subr.mxu0 0.0
        %665 = vmatpush1.msra.mxu0 %v450
        %666 = vmatprep.subr.mxu0 0.0
        %667 = vmatpush1.msra.mxu0 %v449
        %668 = vmatprep.subr.mxu0 0.0
        %669 = vmatpush1.msra.mxu0 %v448
        %670 = vmatprep.subr.mxu0 0.0
        %671 = vmatpush1.msra.mxu0 %v447
        %672 = vmatprep.subr.mxu0 0.0
        %673 = vmatpush2.msra.mxu0 0.0
        %674 = vmatprep.subr.mxu0 0.0
        %675 = vmatpush2.msra.mxu0 0.0
        %676 = vmatprep.subr.mxu0 0.0
        %677 = vmatpush2.msra.mxu0 0.0
        %678 = vmatprep.subr.mxu0 0.0
        %679 = vmatpush2.msra.mxu0 0.0
        %680 = vmatprep.subr.mxu0 0.0
        %681 = vmatpush2.msra.mxu0 0.0
        %682 = vmatprep.subr.mxu0 0.0
        %683 = vmatpush2.msra.mxu0 0.0
        %684 = vmatprep.subr.mxu0 0.0
        %685 = vmatpush2.msra.mxu0 0.0
        %686 = vmatprep.subr.mxu0 0.0
        %687 = vmatpush2.msra.mxu0 0.0
        %688 = vmatprep.subr.mxu0 0.0
        %689 = vmatpush2.msra.mxu0 0.0
        %690 = vmatprep.subr.mxu0 0.0
        %691 = vmatpush2.msra.mxu0 0.0
        %692 = vmatprep.subr.mxu0 0.0
        %693 = vmatpush2.msra.mxu0 0.0
        %694 = vmatprep.subr.mxu0 0.0
        %695 = vmatpush2.msra.mxu0 0.0
        %696 = vmatprep.subr.mxu0 0.0
        %697 = vmatpush2.msra.mxu0 0.0
        %698 = vmatprep.subr.mxu0 0.0
        %699 = vmatpush2.msra.mxu0 0.0
        %700 = vmatprep.subr.mxu0 0.0
        %701 = vmatpush2.msra.mxu0 0.0
        %702 = vmatprep.subr.mxu0 0.0
        %703 = vmatpush2.msra.mxu0 0.0
        %704 = vmatprep.mubr.f32.mxu0 0.0
        %705 = vmatmul.mubr.f32.gmra.mxu0 %v415
        %v706 = vpop.f32.mrf.mxu0
        %v707 = vadd.f32 0.0, %v706
        %v708 = vpop.f32.mrf.mxu0
        %709 = vmatprep.mubr.f32.mxu0 0.0
        %710 = vmatmul.mubr.f32.gmra.mxu0 %v416
        %v711 = vpop.f32.mrf.mxu0
        %v712 = vadd.f32 0.0, %v711
        %v713 = vpop.f32.mrf.mxu0
        %714 = vmatprep.mubr.f32.mxu0 0.0
        %715 = vmatmul.mubr.f32.gmra.mxu0 %v417
        %v716 = vpop.f32.mrf.mxu0
        %v717 = vadd.f32 0.0, %v716
        %v718 = vpop.f32.mrf.mxu0
        %719 = vmatprep.mubr.f32.mxu0 0.0
        %720 = vmatmul.mubr.f32.gmra.mxu0 %v418
        %v721 = vpop.f32.mrf.mxu0
        %v722 = vadd.f32 0.0, %v721
        %v723 = vpop.f32.mrf.mxu0
        %724 = vmatprep.mubr.f32.mxu0 0.0
        %725 = vmatmul.mubr.f32.gmra.mxu0 %v419
        %v726 = vpop.f32.mrf.mxu0
        %v727 = vadd.f32 0.0, %v726
        %v728 = vpop.f32.mrf.mxu0
        %729 = vmatprep.mubr.f32.mxu0 0.0
        %730 = vmatmul.mubr.f32.gmra.mxu0 %v420
        %v731 = vpop.f32.mrf.mxu0
        %v732 = vadd.f32 0.0, %v731
        %v733 = vpop.f32.mrf.mxu0
        %734 = vmatprep.mubr.f32.mxu0 0.0
        %735 = vmatmul.mubr.f32.gmra.mxu0 %v421
        %v736 = vpop.f32.mrf.mxu0
        %v737 = vadd.f32 0.0, %v736
        %v738 = vpop.f32.mrf.mxu0
        %739 = vmatprep.mubr.f32.mxu0 0.0
        %740 = vmatmul.mubr.f32.gmra.mxu0 %v422
        %v741 = vpop.f32.mrf.mxu0
        %v742 = vadd.f32 0.0, %v741
        %v743 = vpop.f32.mrf.mxu0
        %744 = vmatprep.mubr.f32.mxu0 0.0
        %745 = vmatmul.mubr.f32.gmra.mxu0 %v423
        %v746 = vpop.f32.mrf.mxu0
        %v747 = vadd.f32 0.0, %v746
        %v748 = vpop.f32.mrf.mxu0
        %749 = vmatprep.mubr.f32.mxu0 0.0
        %750 = vmatmul.mubr.f32.gmra.mxu0 %v424
        %v751 = vpop.f32.mrf.mxu0
        %v752 = vadd.f32 0.0, %v751
        %v753 = vpop.f32.mrf.mxu0
        %754 = vmatprep.mubr.f32.mxu0 0.0
        %755 = vmatmul.mubr.f32.gmra.mxu0 %v425
        %v756 = vpop.f32.mrf.mxu0
        %v757 = vadd.f32 0.0, %v756
        %v758 = vpop.f32.mrf.mxu0
        %759 = vmatprep.mubr.f32.mxu0 0.0
        %760 = vmatmul.mubr.f32.gmra.mxu0 %v426
        %v761 = vpop.f32.mrf.mxu0
        %v762 = vadd.f32 0.0, %v761
        %v763 = vpop.f32.mrf.mxu0
        %764 = vmatprep.mubr.f32.mxu0 0.0
        %765 = vmatmul.mubr.f32.gmra.mxu0 %v427
        %v766 = vpop.f32.mrf.mxu0
        %v767 = vadd.f32 0.0, %v766
        %v768 = vpop.f32.mrf.mxu0
        %769 = vmatprep.mubr.f32.mxu0 0.0
        %770 = vmatmul.mubr.f32.gmra.mxu0 %v428
        %v771 = vpop.f32.mrf.mxu0
        %v772 = vadd.f32 0.0, %v771
        %v773 = vpop.f32.mrf.mxu0
        %774 = vmatprep.mubr.f32.mxu0 0.0
        %775 = vmatmul.mubr.f32.gmra.mxu0 %v429
        %v776 = vpop.f32.mrf.mxu0
        %v777 = vadd.f32 0.0, %v776
        %v778 = vpop.f32.mrf.mxu0
        %779 = vmatprep.mubr.f32.mxu0 0.0
        %780 = vmatmul.mubr.f32.gmra.mxu0 %v430
        %v781 = vpop.f32.mrf.mxu0
        %v782 = vadd.f32 0.0, %v781
        %v783 = vpop.f32.mrf.mxu0
        %784 = vdwg.mxu0
        %785 = vmatprep.subr.mxu0 0.0
        %786 = vmatpush1.msra.mxu0 %v478
        %787 = vmatprep.subr.mxu0 0.0
        %788 = vmatpush1.msra.mxu0 %v477
        %789 = vmatprep.subr.mxu0 0.0
        %790 = vmatpush1.msra.mxu0 %v476
        %791 = vmatprep.subr.mxu0 0.0
        %792 = vmatpush1.msra.mxu0 %v475
        %793 = vmatprep.subr.mxu0 0.0
        %794 = vmatpush1.msra.mxu0 %v474
        %795 = vmatprep.subr.mxu0 0.0
        %796 = vmatpush1.msra.mxu0 %v473
        %797 = vmatprep.subr.mxu0 0.0
        %798 = vmatpush1.msra.mxu0 %v472
        %799 = vmatprep.subr.mxu0 0.0
        %800 = vmatpush1.msra.mxu0 %v471
        %801 = vmatprep.subr.mxu0 0.0
        %802 = vmatpush1.msra.mxu0 %v470
        %803 = vmatprep.subr.mxu0 0.0
        %804 = vmatpush1.msra.mxu0 %v469
        %805 = vmatprep.subr.mxu0 0.0
        %806 = vmatpush1.msra.mxu0 %v468
        %807 = vmatprep.subr.mxu0 0.0
        %808 = vmatpush1.msra.mxu0 %v467
        %809 = vmatprep.subr.mxu0 0.0
        %810 = vmatpush1.msra.mxu0 %v466
        %811 = vmatprep.subr.mxu0 0.0
        %812 = vmatpush1.msra.mxu0 %v465
        %813 = vmatprep.subr.mxu0 0.0
        %814 = vmatpush1.msra.mxu0 %v464
        %815 = vmatprep.subr.mxu0 0.0
        %816 = vmatpush1.msra.mxu0 %v463
        %817 = vmatprep.subr.mxu0 0.0
        %818 = vmatpush2.msra.mxu0 0.0
        %819 = vmatprep.subr.mxu0 0.0
        %820 = vmatpush2.msra.mxu0 0.0
        %821 = vmatprep.subr.mxu0 0.0
        %822 = vmatpush2.msra.mxu0 0.0
        %823 = vmatprep.subr.mxu0 0.0
        %824 = vmatpush2.msra.mxu0 0.0
        %825 = vmatprep.subr.mxu0 0.0
        %826 = vmatpush2.msra.mxu0 0.0
        %827 = vmatprep.subr.mxu0 0.0
        %828 = vmatpush2.msra.mxu0 0.0
        %829 = vmatprep.subr.mxu0 0.0
        %830 = vmatpush2.msra.mxu0 0.0
        %831 = vmatprep.subr.mxu0 0.0
        %832 = vmatpush2.msra.mxu0 0.0
        %833 = vmatprep.subr.mxu0 0.0
        %834 = vmatpush2.msra.mxu0 0.0
        %835 = vmatprep.subr.mxu0 0.0
        %836 = vmatpush2.msra.mxu0 0.0
        %837 = vmatprep.subr.mxu0 0.0
        %838 = vmatpush2.msra.mxu0 0.0
        %839 = vmatprep.subr.mxu0 0.0
        %840 = vmatpush2.msra.mxu0 0.0
        %841 = vmatprep.subr.mxu0 0.0
        %842 = vmatpush2.msra.mxu0 0.0
        %843 = vmatprep.subr.mxu0 0.0
        %844 = vmatpush2.msra.mxu0 0.0
        %845 = vmatprep.subr.mxu0 0.0
        %846 = vmatpush2.msra.mxu0 0.0
        %847 = vmatprep.subr.mxu0 0.0
        %848 = vmatpush2.msra.mxu0 0.0
        %849 = vmatprep.mubr.f32.mxu0 0.0
        %850 = vmatmul.mubr.f32.gmra.mxu0 %v415
        %v851 = vpop.f32.mrf.mxu0
        %v852 = vadd.f32 0.0, %v851
        %v853 = vpop.f32.mrf.mxu0
        %854 = vmatprep.mubr.f32.mxu0 0.0
        %855 = vmatmul.mubr.f32.gmra.mxu0 %v416
        %v856 = vpop.f32.mrf.mxu0
        %v857 = vadd.f32 0.0, %v856
        %v858 = vpop.f32.mrf.mxu0
        %859 = vmatprep.mubr.f32.mxu0 0.0
        %860 = vmatmul.mubr.f32.gmra.mxu0 %v417
        %v861 = vpop.f32.mrf.mxu0
        %v862 = vadd.f32 0.0, %v861
        %v863 = vpop.f32.mrf.mxu0
        %864 = vmatprep.mubr.f32.mxu0 0.0
        %865 = vmatmul.mubr.f32.gmra.mxu0 %v418
        %v866 = vpop.f32.mrf.mxu0
        %v867 = vadd.f32 0.0, %v866
        %v868 = vpop.f32.mrf.mxu0
        %869 = vmatprep.mubr.f32.mxu0 0.0
        %870 = vmatmul.mubr.f32.gmra.mxu0 %v419
        %v871 = vpop.f32.mrf.mxu0
        %v872 = vadd.f32 0.0, %v871
        %v873 = vpop.f32.mrf.mxu0
        %874 = vmatprep.mubr.f32.mxu0 0.0
        %875 = vmatmul.mubr.f32.gmra.mxu0 %v420
        %v876 = vpop.f32.mrf.mxu0
        %v877 = vadd.f32 0.0, %v876
        %v878 = vpop.f32.mrf.mxu0
        %879 = vmatprep.mubr.f32.mxu0 0.0
        %880 = vmatmul.mubr.f32.gmra.mxu0 %v421
        %v881 = vpop.f32.mrf.mxu0
        %v882 = vadd.f32 0.0, %v881
        %v883 = vpop.f32.mrf.mxu0
        %884 = vmatprep.mubr.f32.mxu0 0.0
        %885 = vmatmul.mubr.f32.gmra.mxu0 %v422
        %v886 = vpop.f32.mrf.mxu0
        %v887 = vadd.f32 0.0, %v886
        %v888 = vpop.f32.mrf.mxu0
        %889 = vmatprep.mubr.f32.mxu0 0.0
        %890 = vmatmul.mubr.f32.gmra.mxu0 %v423
        %v891 = vpop.f32.mrf.mxu0
        %v892 = vadd.f32 0.0, %v891
        %v893 = vpop.f32.mrf.mxu0
        %894 = vmatprep.mubr.f32.mxu0 0.0
        %895 = vmatmul.mubr.f32.gmra.mxu0 %v424
        %v896 = vpop.f32.mrf.mxu0
        %v897 = vadd.f32 0.0, %v896
        %v898 = vpop.f32.mrf.mxu0
        %899 = vmatprep.mubr.f32.mxu0 0.0
        %900 = vmatmul.mubr.f32.gmra.mxu0 %v425
        %v901 = vpop.f32.mrf.mxu0
        %v902 = vadd.f32 0.0, %v901
        %v903 = vpop.f32.mrf.mxu0
        %904 = vmatprep.mubr.f32.mxu0 0.0
        %905 = vmatmul.mubr.f32.gmra.mxu0 %v426
        %v906 = vpop.f32.mrf.mxu0
        %v907 = vadd.f32 0.0, %v906
        %v908 = vpop.f32.mrf.mxu0
        %909 = vmatprep.mubr.f32.mxu0 0.0
        %910 = vmatmul.mubr.f32.gmra.mxu0 %v427
        %v911 = vpop.f32.mrf.mxu0
        %v912 = vadd.f32 0.0, %v911
        %v913 = vpop.f32.mrf.mxu0
        %914 = vmatprep.mubr.f32.mxu0 0.0
        %915 = vmatmul.mubr.f32.gmra.mxu0 %v428
        %v916 = vpop.f32.mrf.mxu0
        %v917 = vadd.f32 0.0, %v916
        %v918 = vpop.f32.mrf.mxu0
        %919 = vmatprep.mubr.f32.mxu0 0.0
        %920 = vmatmul.mubr.f32.gmra.mxu0 %v429
        %v921 = vpop.f32.mrf.mxu0
        %v922 = vadd.f32 0.0, %v921
        %v923 = vpop.f32.mrf.mxu0
        %924 = vmatprep.mubr.f32.mxu0 0.0
        %925 = vmatmul.mubr.f32.gmra.mxu0 %v430
        %v926 = vpop.f32.mrf.mxu0
        %v927 = vadd.f32 0.0, %v926
        %v928 = vpop.f32.mrf.mxu0
        %929 = vdwg.mxu0
        %930 = vmatprep.subr.mxu0 0.0
        %931 = vmatpush1.msra.mxu0 %v494
        %932 = vmatprep.subr.mxu0 0.0
        %933 = vmatpush1.msra.mxu0 %v493
        %934 = vmatprep.subr.mxu0 0.0
        %935 = vmatpush1.msra.mxu0 %v492
        %936 = vmatprep.subr.mxu0 0.0
        %937 = vmatpush1.msra.mxu0 %v491
        %938 = vmatprep.subr.mxu0 0.0
        %939 = vmatpush1.msra.mxu0 %v490
        %940 = vmatprep.subr.mxu0 0.0
        %941 = vmatpush1.msra.mxu0 %v489
        %942 = vmatprep.subr.mxu0 0.0
        %943 = vmatpush1.msra.mxu0 %v488
        %944 = vmatprep.subr.mxu0 0.0
        %945 = vmatpush1.msra.mxu0 %v487
        %946 = vmatprep.subr.mxu0 0.0
        %947 = vmatpush1.msra.mxu0 %v486
        %948 = vmatprep.subr.mxu0 0.0
        %949 = vmatpush1.msra.mxu0 %v485
        %950 = vmatprep.subr.mxu0 0.0
        %951 = vmatpush1.msra.mxu0 %v484
        %952 = vmatprep.subr.mxu0 0.0
        %953 = vmatpush1.msra.mxu0 %v483
        %954 = vmatprep.subr.mxu0 0.0
        %955 = vmatpush1.msra.mxu0 %v482
        %956 = vmatprep.subr.mxu0 0.0
        %957 = vmatpush1.msra.mxu0 %v481
        %958 = vmatprep.subr.mxu0 0.0
        %959 = vmatpush1.msra.mxu0 %v480
        %960 = vmatprep.subr.mxu0 0.0
        %961 = vmatpush1.msra.mxu0 %v479
        %962 = vmatprep.subr.mxu0 0.0
        %963 = vmatpush2.msra.mxu0 0.0
        %964 = vmatprep.subr.mxu0 0.0
        %965 = vmatpush2.msra.mxu0 0.0
        %966 = vmatprep.subr.mxu0 0.0
        %967 = vmatpush2.msra.mxu0 0.0
        %968 = vmatprep.subr.mxu0 0.0
        %969 = vmatpush2.msra.mxu0 0.0
        %970 = vmatprep.subr.mxu0 0.0
        %971 = vmatpush2.msra.mxu0 0.0
        %972 = vmatprep.subr.mxu0 0.0
        %973 = vmatpush2.msra.mxu0 0.0
        %974 = vmatprep.subr.mxu0 0.0
        %975 = vmatpush2.msra.mxu0 0.0
        %976 = vmatprep.subr.mxu0 0.0
        %977 = vmatpush2.msra.mxu0 0.0
        %978 = vmatprep.subr.mxu0 0.0
        %979 = vmatpush2.msra.mxu0 0.0
        %980 = vmatprep.subr.mxu0 0.0
        %981 = vmatpush2.msra.mxu0 0.0
        %982 = vmatprep.subr.mxu0 0.0
        %983 = vmatpush2.msra.mxu0 0.0
        %984 = vmatprep.subr.mxu0 0.0
        %985 = vmatpush2.msra.mxu0 0.0
        %986 = vmatprep.subr.mxu0 0.0
        %987 = vmatpush2.msra.mxu0 0.0
        %988 = vmatprep.subr.mxu0 0.0
        %989 = vmatpush2.msra.mxu0 0.0
        %990 = vmatprep.subr.mxu0 0.0
        %991 = vmatpush2.msra.mxu0 0.0
        %992 = vmatprep.subr.mxu0 0.0
        %993 = vmatpush2.msra.mxu0 0.0
        %994 = vmatprep.mubr.f32.mxu0 0.0
        %995 = vmatmul.mubr.f32.gmra.mxu0 %v415
        %v996 = vpop.f32.mrf.mxu0
        %v997 = vadd.f32 0.0, %v996
        %v998 = vpop.f32.mrf.mxu0
        %999 = vmatprep.mubr.f32.mxu0 0.0
        %1000 = vmatmul.mubr.f32.gmra.mxu0 %v416
        %v1001 = vpop.f32.mrf.mxu0
        %v1002 = vadd.f32 0.0, %v1001
        %v1003 = vpop.f32.mrf.mxu0
        %1004 = vmatprep.mubr.f32.mxu0 0.0
        %1005 = vmatmul.mubr.f32.gmra.mxu0 %v417
        %v1006 = vpop.f32.mrf.mxu0
        %v1007 = vadd.f32 0.0, %v1006
        %v1008 = vpop.f32.mrf.mxu0
        %1009 = vmatprep.mubr.f32.mxu0 0.0
        %1010 = vmatmul.mubr.f32.gmra.mxu0 %v418
        %v1011 = vpop.f32.mrf.mxu0
        %v1012 = vadd.f32 0.0, %v1011
        %v1013 = vpop.f32.mrf.mxu0
        %1014 = vmatprep.mubr.f32.mxu0 0.0
        %1015 = vmatmul.mubr.f32.gmra.mxu0 %v419
        %v1016 = vpop.f32.mrf.mxu0
        %v1017 = vadd.f32 0.0, %v1016
        %v1018 = vpop.f32.mrf.mxu0
        %1019 = vmatprep.mubr.f32.mxu0 0.0
        %1020 = vmatmul.mubr.f32.gmra.mxu0 %v420
        %v1021 = vpop.f32.mrf.mxu0
        %v1022 = vadd.f32 0.0, %v1021
        %v1023 = vpop.f32.mrf.mxu0
        %1024 = vmatprep.mubr.f32.mxu0 0.0
        %1025 = vmatmul.mubr.f32.gmra.mxu0 %v421
        %v1026 = vpop.f32.mrf.mxu0
        %v1027 = vadd.f32 0.0, %v1026
        %v1028 = vpop.f32.mrf.mxu0
        %1029 = vmatprep.mubr.f32.mxu0 0.0
        %1030 = vmatmul.mubr.f32.gmra.mxu0 %v422
        %v1031 = vpop.f32.mrf.mxu0
        %v1032 = vadd.f32 0.0, %v1031
        %v1033 = vpop.f32.mrf.mxu0
        %1034 = vmatprep.mubr.f32.mxu0 0.0
        %1035 = vmatmul.mubr.f32.gmra.mxu0 %v423
        %v1036 = vpop.f32.mrf.mxu0
        %v1037 = vadd.f32 0.0, %v1036
        %v1038 = vpop.f32.mrf.mxu0
        %1039 = vmatprep.mubr.f32.mxu0 0.0
        %1040 = vmatmul.mubr.f32.gmra.mxu0 %v424
        %v1041 = vpop.f32.mrf.mxu0
        %v1042 = vadd.f32 0.0, %v1041
        %v1043 = vpop.f32.mrf.mxu0
        %1044 = vmatprep.mubr.f32.mxu0 0.0
        %1045 = vmatmul.mubr.f32.gmra.mxu0 %v425
        %v1046 = vpop.f32.mrf.mxu0
        %v1047 = vadd.f32 0.0, %v1046
        %v1048 = vpop.f32.mrf.mxu0
        %1049 = vmatprep.mubr.f32.mxu0 0.0
        %1050 = vmatmul.mubr.f32.gmra.mxu0 %v426
        %v1051 = vpop.f32.mrf.mxu0
        %v1052 = vadd.f32 0.0, %v1051
        %v1053 = vpop.f32.mrf.mxu0
        %1054 = vmatprep.mubr.f32.mxu0 0.0
        %1055 = vmatmul.mubr.f32.gmra.mxu0 %v427
        %v1056 = vpop.f32.mrf.mxu0
        %v1057 = vadd.f32 0.0, %v1056
        %v1058 = vpop.f32.mrf.mxu0
        %1059 = vmatprep.mubr.f32.mxu0 0.0
        %1060 = vmatmul.mubr.f32.gmra.mxu0 %v428
        %v1061 = vpop.f32.mrf.mxu0
        %v1062 = vadd.f32 0.0, %v1061
        %v1063 = vpop.f32.mrf.mxu0
        %1064 = vmatprep.mubr.f32.mxu0 0.0
        %1065 = vmatmul.mubr.f32.gmra.mxu0 %v429
        %v1066 = vpop.f32.mrf.mxu0
        %v1067 = vadd.f32 0.0, %v1066
        %v1068 = vpop.f32.mrf.mxu0
        %1069 = vmatprep.mubr.f32.mxu0 0.0
        %1070 = vmatmul.mubr.f32.gmra.mxu0 %v430
        %v1071 = vpop.f32.mrf.mxu0
        %v1072 = vadd.f32 0.0, %v1071
        %v1073 = vpop.f32.mrf.mxu0
        %1074 = vdwg.mxu0
        %v1075 = vld [vmem:[%s2] sm:$0xff]
        %v1076 = vld [vmem:[%s2 + $0x8] sm:$0xff]
        %v1077 = vld [vmem:[%s2 + $0x10] sm:$0xff]
        %v1078 = vld [vmem:[%s2 + $0x18] sm:$0xff]
        %v1079 = vld [vmem:[%s2 + $0x20] sm:$0xff]
        %v1080 = vld [vmem:[%s2 + $0x28] sm:$0xff]
        %v1081 = vld [vmem:[%s2 + $0x30] sm:$0xff]
        %v1082 = vld [vmem:[%s2 + $0x38] sm:$0xff]
        %v1083 = vld [vmem:[%s2 + $0x40] sm:$0xff]
        %v1084 = vld [vmem:[%s2 + $0x48] sm:$0xff]
        %v1085 = vld [vmem:[%s2 + $0x50] sm:$0xff]
        %v1086 = vld [vmem:[%s2 + $0x58] sm:$0xff]
        %v1087 = vld [vmem:[%s2 + $0x60] sm:$0xff]
        %v1088 = vld [vmem:[%s2 + $0x68] sm:$0xff]
        %v1089 = vld [vmem:[%s2 + $0x70] sm:$0xff]
        %v1090 = vld [vmem:[%s2 + $0x78] sm:$0xff]
        %v1091 = vld [vmem:[%s3] sm:$0xff]
        %v1092 = vld [vmem:[%s3 + $0x8] sm:$0xff]
        %v1093 = vld [vmem:[%s3 + $0x10] sm:$0xff]
        %v1094 = vld [vmem:[%s3 + $0x18] sm:$0xff]
        %v1095 = vld [vmem:[%s3 + $0x20] sm:$0xff]
        %v1096 = vld [vmem:[%s3 + $0x28] sm:$0xff]
        %v1097 = vld [vmem:[%s3 + $0x30] sm:$0xff]
        %v1098 = vld [vmem:[%s3 + $0x38] sm:$0xff]
        %v1099 = vld [vmem:[%s3 + $0x40] sm:$0xff]
        %v1100 = vld [vmem:[%s3 + $0x48] sm:$0xff]
        %v1101 = vld [vmem:[%s3 + $0x50] sm:$0xff]
        %v1102 = vld [vmem:[%s3 + $0x58] sm:$0xff]
        %v1103 = vld [vmem:[%s3 + $0x60] sm:$0xff]
        %v1104 = vld [vmem:[%s3 + $0x68] sm:$0xff]
        %v1105 = vld [vmem:[%s3 + $0x70] sm:$0xff]
        %v1106 = vld [vmem:[%s3 + $0x78] sm:$0xff]
        %v1107 = vmul.f32 %v562, %v1075
        %v1108 = vmul.f32 %v567, %v1076
        %v1109 = vmul.f32 %v572, %v1077
        %v1110 = vmul.f32 %v577, %v1078
        %v1111 = vmul.f32 %v582, %v1079
        %v1112 = vmul.f32 %v587, %v1080
        %v1113 = vmul.f32 %v592, %v1081
        %v1114 = vmul.f32 %v597, %v1082
        %v1115 = vmul.f32 %v602, %v1083
        %v1116 = vmul.f32 %v607, %v1084
        %v1117 = vmul.f32 %v612, %v1085
        %v1118 = vmul.f32 %v617, %v1086
        %v1119 = vmul.f32 %v622, %v1087
        %v1120 = vmul.f32 %v627, %v1088
        %v1121 = vmul.f32 %v632, %v1089
        %v1122 = vmul.f32 %v637, %v1090
        %v1123 = vmul.f32 %v707, %v1075
        %v1124 = vmul.f32 %v712, %v1076
        %v1125 = vmul.f32 %v717, %v1077
        %v1126 = vmul.f32 %v722, %v1078
        %v1127 = vmul.f32 %v727, %v1079
        %v1128 = vmul.f32 %v732, %v1080
        %v1129 = vmul.f32 %v737, %v1081
        %v1130 = vmul.f32 %v742, %v1082
        %v1131 = vmul.f32 %v747, %v1083
        %v1132 = vmul.f32 %v752, %v1084
        %v1133 = vmul.f32 %v757, %v1085
        %v1134 = vmul.f32 %v762, %v1086
        %v1135 = vmul.f32 %v767, %v1087
        %v1136 = vmul.f32 %v772, %v1088
        %v1137 = vmul.f32 %v777, %v1089
        %v1138 = vmul.f32 %v782, %v1090
        %v1139 = vmul.f32 %v852, %v1075
        %v1140 = vmul.f32 %v857, %v1076
        %v1141 = vmul.f32 %v862, %v1077
        %v1142 = vmul.f32 %v867, %v1078
        %v1143 = vmul.f32 %v872, %v1079
        %v1144 = vmul.f32 %v877, %v1080
        %v1145 = vmul.f32 %v882, %v1081
        %v1146 = vmul.f32 %v887, %v1082
        %v1147 = vmul.f32 %v892, %v1083
        %v1148 = vmul.f32 %v897, %v1084
        %v1149 = vmul.f32 %v902, %v1085
        %v1150 = vmul.f32 %v907, %v1086
        %v1151 = vmul.f32 %v912, %v1087
        %v1152 = vmul.f32 %v917, %v1088
        %v1153 = vmul.f32 %v922, %v1089
        %v1154 = vmul.f32 %v927, %v1090
        %v1155 = vmul.f32 %v997, %v1075
        %v1156 = vmul.f32 %v1002, %v1076
        %v1157 = vmul.f32 %v1007, %v1077
        %v1158 = vmul.f32 %v1012, %v1078
        %v1159 = vmul.f32 %v1017, %v1079
        %v1160 = vmul.f32 %v1022, %v1080
        %v1161 = vmul.f32 %v1027, %v1081
        %v1162 = vmul.f32 %v1032, %v1082
        %v1163 = vmul.f32 %v1037, %v1083
        %v1164 = vmul.f32 %v1042, %v1084
        %v1165 = vmul.f32 %v1047, %v1085
        %v1166 = vmul.f32 %v1052, %v1086
        %v1167 = vmul.f32 %v1057, %v1087
        %v1168 = vmul.f32 %v1062, %v1088
        %v1169 = vmul.f32 %v1067, %v1089
        %v1170 = vmul.f32 %v1072, %v1090
        %v1171 = vsub.f32 0.0, %v562
        %v1172 = vsub.f32 0.0, %v567
        %v1173 = vsub.f32 0.0, %v572
        %v1174 = vsub.f32 0.0, %v577
        %v1175 = vsub.f32 0.0, %v582
        %v1176 = vsub.f32 0.0, %v587
        %v1177 = vsub.f32 0.0, %v592
        %v1178 = vsub.f32 0.0, %v597
        %v1179 = vsub.f32 0.0, %v602
        %v1180 = vsub.f32 0.0, %v607
        %v1181 = vsub.f32 0.0, %v612
        %v1182 = vsub.f32 0.0, %v617
        %v1183 = vsub.f32 0.0, %v622
        %v1184 = vsub.f32 0.0, %v627
        %v1185 = vsub.f32 0.0, %v632
        %v1186 = vsub.f32 0.0, %v637
        %v1187 = vsub.f32 0.0, %v707
        %v1188 = vsub.f32 0.0, %v712
        %v1189 = vsub.f32 0.0, %v717
        %v1190 = vsub.f32 0.0, %v722
        %v1191 = vsub.f32 0.0, %v727
        %v1192 = vsub.f32 0.0, %v732
        %v1193 = vsub.f32 0.0, %v737
        %v1194 = vsub.f32 0.0, %v742
        %v1195 = vsub.f32 0.0, %v747
        %v1196 = vsub.f32 0.0, %v752
        %v1197 = vsub.f32 0.0, %v757
        %v1198 = vsub.f32 0.0, %v762
        %v1199 = vsub.f32 0.0, %v767
        %v1200 = vsub.f32 0.0, %v772
        %v1201 = vsub.f32 0.0, %v777
        %v1202 = vsub.f32 0.0, %v782
        %v1203 = vsub.f32 0.0, %v852
        %v1204 = vsub.f32 0.0, %v857
        %v1205 = vsub.f32 0.0, %v862
        %v1206 = vsub.f32 0.0, %v867
        %v1207 = vsub.f32 0.0, %v872
        %v1208 = vsub.f32 0.0, %v877
        %v1209 = vsub.f32 0.0, %v882
        %v1210 = vsub.f32 0.0, %v887
        %v1211 = vsub.f32 0.0, %v892
        %v1212 = vsub.f32 0.0, %v897
        %v1213 = vsub.f32 0.0, %v902
        %v1214 = vsub.f32 0.0, %v907
        %v1215 = vsub.f32 0.0, %v912
        %v1216 = vsub.f32 0.0, %v917
        %v1217 = vsub.f32 0.0, %v922
        %v1218 = vsub.f32 0.0, %v927
        %v1219 = vsub.f32 0.0, %v997
        %v1220 = vsub.f32 0.0, %v1002
        %v1221 = vsub.f32 0.0, %v1007
        %v1222 = vsub.f32 0.0, %v1012
        %v1223 = vsub.f32 0.0, %v1017
        %v1224 = vsub.f32 0.0, %v1022
        %v1225 = vsub.f32 0.0, %v1027
        %v1226 = vsub.f32 0.0, %v1032
        %v1227 = vsub.f32 0.0, %v1037
        %v1228 = vsub.f32 0.0, %v1042
        %v1229 = vsub.f32 0.0, %v1047
        %v1230 = vsub.f32 0.0, %v1052
        %v1231 = vsub.f32 0.0, %v1057
        %v1232 = vsub.f32 0.0, %v1062
        %v1233 = vsub.f32 0.0, %v1067
        %v1234 = vsub.f32 0.0, %v1072
        %1299 = vrot.lane.b32.xlu0 %v1171, 112
        %v1300 = vpop.permute.xlu0 %1299
        %1301 = vrot.lane.b32.xlu0 %v1172, 112
        %v1302 = vpop.permute.xlu0 %1301
        %1303 = vrot.lane.b32.xlu0 %v1173, 112
        %v1304 = vpop.permute.xlu0 %1303
        %1305 = vrot.lane.b32.xlu0 %v1174, 112
        %v1306 = vpop.permute.xlu0 %1305
        %1307 = vrot.lane.b32.xlu0 %v1175, 112
        %v1308 = vpop.permute.xlu0 %1307
        %1309 = vrot.lane.b32.xlu0 %v1176, 112
        %v1310 = vpop.permute.xlu0 %1309
        %1311 = vrot.lane.b32.xlu0 %v1177, 112
        %v1312 = vpop.permute.xlu0 %1311
        %1313 = vrot.lane.b32.xlu0 %v1178, 112
        %v1314 = vpop.permute.xlu0 %1313
        %1315 = vrot.lane.b32.xlu0 %v1179, 112
        %v1316 = vpop.permute.xlu0 %1315
        %1317 = vrot.lane.b32.xlu0 %v1180, 112
        %v1318 = vpop.permute.xlu0 %1317
        %1319 = vrot.lane.b32.xlu0 %v1181, 112
        %v1320 = vpop.permute.xlu0 %1319
        %1321 = vrot.lane.b32.xlu0 %v1182, 112
        %v1322 = vpop.permute.xlu0 %1321
        %1323 = vrot.lane.b32.xlu0 %v1183, 112
        %v1324 = vpop.permute.xlu0 %1323
        %1325 = vrot.lane.b32.xlu0 %v1184, 112
        %v1326 = vpop.permute.xlu0 %1325
        %1327 = vrot.lane.b32.xlu0 %v1185, 112
        %v1328 = vpop.permute.xlu0 %1327
        %1329 = vrot.lane.b32.xlu0 %v1186, 112
        %v1330 = vpop.permute.xlu0 %1329
        %1331 = vrot.lane.b32.xlu0 %v1187, 112
        %v1332 = vpop.permute.xlu0 %1331
        %1333 = vrot.lane.b32.xlu0 %v1188, 112
        %v1334 = vpop.permute.xlu0 %1333
        %1335 = vrot.lane.b32.xlu0 %v1189, 112
        %v1336 = vpop.permute.xlu0 %1335
        %1337 = vrot.lane.b32.xlu0 %v1190, 112
        %v1338 = vpop.permute.xlu0 %1337
        %1339 = vrot.lane.b32.xlu0 %v1191, 112
        %v1340 = vpop.permute.xlu0 %1339
        %1341 = vrot.lane.b32.xlu0 %v1192, 112
        %v1342 = vpop.permute.xlu0 %1341
        %1343 = vrot.lane.b32.xlu0 %v1193, 112
        %v1344 = vpop.permute.xlu0 %1343
        %1345 = vrot.lane.b32.xlu0 %v1194, 112
        %v1346 = vpop.permute.xlu0 %1345
        %1347 = vrot.lane.b32.xlu0 %v1195, 112
        %v1348 = vpop.permute.xlu0 %1347
        %1349 = vrot.lane.b32.xlu0 %v1196, 112
        %v1350 = vpop.permute.xlu0 %1349
        %1351 = vrot.lane.b32.xlu0 %v1197, 112
        %v1352 = vpop.permute.xlu0 %1351
        %1353 = vrot.lane.b32.xlu0 %v1198, 112
        %v1354 = vpop.permute.xlu0 %1353
        %1355 = vrot.lane.b32.xlu0 %v1199, 112
        %v1356 = vpop.permute.xlu0 %1355
        %1357 = vrot.lane.b32.xlu0 %v1200, 112
        %v1358 = vpop.permute.xlu0 %1357
        %1359 = vrot.lane.b32.xlu0 %v1201, 112
        %v1360 = vpop.permute.xlu0 %1359
        %1361 = vrot.lane.b32.xlu0 %v1202, 112
        %v1362 = vpop.permute.xlu0 %1361
        %1363 = vrot.lane.b32.xlu0 %v1203, 112
        %v1364 = vpop.permute.xlu0 %1363
        %1365 = vrot.lane.b32.xlu0 %v1204, 112
        %v1366 = vpop.permute.xlu0 %1365
        %1367 = vrot.lane.b32.xlu0 %v1205, 112
        %v1368 = vpop.permute.xlu0 %1367
        %1369 = vrot.lane.b32.xlu0 %v1206, 112
        %v1370 = vpop.permute.xlu0 %1369
        %1371 = vrot.lane.b32.xlu0 %v1207, 112
        %v1372 = vpop.permute.xlu0 %1371
        %1373 = vrot.lane.b32.xlu0 %v1208, 112
        %v1374 = vpop.permute.xlu0 %1373
        %1375 = vrot.lane.b32.xlu0 %v1209, 112
        %v1376 = vpop.permute.xlu0 %1375
        %1377 = vrot.lane.b32.xlu0 %v1210, 112
        %v1378 = vpop.permute.xlu0 %1377
        %1379 = vrot.lane.b32.xlu0 %v1211, 112
        %v1380 = vpop.permute.xlu0 %1379
        %1381 = vrot.lane.b32.xlu0 %v1212, 112
        %v1382 = vpop.permute.xlu0 %1381
        %1383 = vrot.lane.b32.xlu0 %v1213, 112
        %v1384 = vpop.permute.xlu0 %1383
        %1385 = vrot.lane.b32.xlu0 %v1214, 112
        %v1386 = vpop.permute.xlu0 %1385
        %1387 = vrot.lane.b32.xlu0 %v1215, 112
        %v1388 = vpop.permute.xlu0 %1387
        %1389 = vrot.lane.b32.xlu0 %v1216, 112
        %v1390 = vpop.permute.xlu0 %1389
        %1391 = vrot.lane.b32.xlu0 %v1217, 112
        %v1392 = vpop.permute.xlu0 %1391
        %1393 = vrot.lane.b32.xlu0 %v1218, 112
        %v1394 = vpop.permute.xlu0 %1393
        %1395 = vrot.lane.b32.xlu0 %v1219, 112
        %v1396 = vpop.permute.xlu0 %1395
        %1397 = vrot.lane.b32.xlu0 %v1220, 112
        %v1398 = vpop.permute.xlu0 %1397
        %1399 = vrot.lane.b32.xlu0 %v1221, 112
        %v1400 = vpop.permute.xlu0 %1399
        %1401 = vrot.lane.b32.xlu0 %v1222, 112
        %v1402 = vpop.permute.xlu0 %1401
        %1403 = vrot.lane.b32.xlu0 %v1223, 112
        %v1404 = vpop.permute.xlu0 %1403
        %1405 = vrot.lane.b32.xlu0 %v1224, 112
        %v1406 = vpop.permute.xlu0 %1405
        %1407 = vrot.lane.b32.xlu0 %v1225, 112
        %v1408 = vpop.permute.xlu0 %1407
        %1409 = vrot.lane.b32.xlu0 %v1226, 112
        %v1410 = vpop.permute.xlu0 %1409
        %1411 = vrot.lane.b32.xlu0 %v1227, 112
        %v1412 = vpop.permute.xlu0 %1411
        %1413 = vrot.lane.b32.xlu0 %v1228, 112
        %v1414 = vpop.permute.xlu0 %1413
        %1415 = vrot.lane.b32.xlu0 %v1229, 112
        %v1416 = vpop.permute.xlu0 %1415
        %1417 = vrot.lane.b32.xlu0 %v1230, 112
        %v1418 = vpop.permute.xlu0 %1417
        %1419 = vrot.lane.b32.xlu0 %v1231, 112
        %v1420 = vpop.permute.xlu0 %1419
        %1421 = vrot.lane.b32.xlu0 %v1232, 112
        %v1422 = vpop.permute.xlu0 %1421
        %1423 = vrot.lane.b32.xlu0 %v1233, 112
        %v1424 = vpop.permute.xlu0 %1423
        %1425 = vrot.lane.b32.xlu0 %v1234, 112
        %v1426 = vpop.permute.xlu0 %1425
        %1555 = vrot.lane.b32.xlu0 %v562, 16
        %v1556 = vpop.permute.xlu0 %1555
        %1557 = vrot.lane.b32.xlu0 %v567, 16
        %v1558 = vpop.permute.xlu0 %1557
        %1559 = vrot.lane.b32.xlu0 %v572, 16
        %v1560 = vpop.permute.xlu0 %1559
        %1561 = vrot.lane.b32.xlu0 %v577, 16
        %v1562 = vpop.permute.xlu0 %1561
        %1563 = vrot.lane.b32.xlu0 %v582, 16
        %v1564 = vpop.permute.xlu0 %1563
        %1565 = vrot.lane.b32.xlu0 %v587, 16
        %v1566 = vpop.permute.xlu0 %1565
        %1567 = vrot.lane.b32.xlu0 %v592, 16
        %v1568 = vpop.permute.xlu0 %1567
        %1569 = vrot.lane.b32.xlu0 %v597, 16
        %v1570 = vpop.permute.xlu0 %1569
        %1571 = vrot.lane.b32.xlu0 %v602, 16
        %v1572 = vpop.permute.xlu0 %1571
        %1573 = vrot.lane.b32.xlu0 %v607, 16
        %v1574 = vpop.permute.xlu0 %1573
        %1575 = vrot.lane.b32.xlu0 %v612, 16
        %v1576 = vpop.permute.xlu0 %1575
        %1577 = vrot.lane.b32.xlu0 %v617, 16
        %v1578 = vpop.permute.xlu0 %1577
        %1579 = vrot.lane.b32.xlu0 %v622, 16
        %v1580 = vpop.permute.xlu0 %1579
        %1581 = vrot.lane.b32.xlu0 %v627, 16
        %v1582 = vpop.permute.xlu0 %1581
        %1583 = vrot.lane.b32.xlu0 %v632, 16
        %v1584 = vpop.permute.xlu0 %1583
        %1585 = vrot.lane.b32.xlu0 %v637, 16
        %v1586 = vpop.permute.xlu0 %1585
        %1587 = vrot.lane.b32.xlu0 %v707, 16
        %v1588 = vpop.permute.xlu0 %1587
        %1589 = vrot.lane.b32.xlu0 %v712, 16
        %v1590 = vpop.permute.xlu0 %1589
        %1591 = vrot.lane.b32.xlu0 %v717, 16
        %v1592 = vpop.permute.xlu0 %1591
        %1593 = vrot.lane.b32.xlu0 %v722, 16
        %v1594 = vpop.permute.xlu0 %1593
        %1595 = vrot.lane.b32.xlu0 %v727, 16
        %v1596 = vpop.permute.xlu0 %1595
        %1597 = vrot.lane.b32.xlu0 %v732, 16
        %v1598 = vpop.permute.xlu0 %1597
        %1599 = vrot.lane.b32.xlu0 %v737, 16
        %v1600 = vpop.permute.xlu0 %1599
        %1601 = vrot.lane.b32.xlu0 %v742, 16
        %v1602 = vpop.permute.xlu0 %1601
        %1603 = vrot.lane.b32.xlu0 %v747, 16
        %v1604 = vpop.permute.xlu0 %1603
        %1605 = vrot.lane.b32.xlu0 %v752, 16
        %v1606 = vpop.permute.xlu0 %1605
        %1607 = vrot.lane.b32.xlu0 %v757, 16
        %v1608 = vpop.permute.xlu0 %1607
        %1609 = vrot.lane.b32.xlu0 %v762, 16
        %v1610 = vpop.permute.xlu0 %1609
        %1611 = vrot.lane.b32.xlu0 %v767, 16
        %v1612 = vpop.permute.xlu0 %1611
        %1613 = vrot.lane.b32.xlu0 %v772, 16
        %v1614 = vpop.permute.xlu0 %1613
        %1615 = vrot.lane.b32.xlu0 %v777, 16
        %v1616 = vpop.permute.xlu0 %1615
        %1617 = vrot.lane.b32.xlu0 %v782, 16
        %v1618 = vpop.permute.xlu0 %1617
        %1619 = vrot.lane.b32.xlu0 %v852, 16
        %v1620 = vpop.permute.xlu0 %1619
        %1621 = vrot.lane.b32.xlu0 %v857, 16
        %v1622 = vpop.permute.xlu0 %1621
        %1623 = vrot.lane.b32.xlu0 %v862, 16
        %v1624 = vpop.permute.xlu0 %1623
        %1625 = vrot.lane.b32.xlu0 %v867, 16
        %v1626 = vpop.permute.xlu0 %1625
        %1627 = vrot.lane.b32.xlu0 %v872, 16
        %v1628 = vpop.permute.xlu0 %1627
        %1629 = vrot.lane.b32.xlu0 %v877, 16
        %v1630 = vpop.permute.xlu0 %1629
        %1631 = vrot.lane.b32.xlu0 %v882, 16
        %v1632 = vpop.permute.xlu0 %1631
        %1633 = vrot.lane.b32.xlu0 %v887, 16
        %v1634 = vpop.permute.xlu0 %1633
        %1635 = vrot.lane.b32.xlu0 %v892, 16
        %v1636 = vpop.permute.xlu0 %1635
        %1637 = vrot.lane.b32.xlu0 %v897, 16
        %v1638 = vpop.permute.xlu0 %1637
        %1639 = vrot.lane.b32.xlu0 %v902, 16
        %v1640 = vpop.permute.xlu0 %1639
        %1641 = vrot.lane.b32.xlu0 %v907, 16
        %v1642 = vpop.permute.xlu0 %1641
        %1643 = vrot.lane.b32.xlu0 %v912, 16
        %v1644 = vpop.permute.xlu0 %1643
        %1645 = vrot.lane.b32.xlu0 %v917, 16
        %v1646 = vpop.permute.xlu0 %1645
        %1647 = vrot.lane.b32.xlu0 %v922, 16
        %v1648 = vpop.permute.xlu0 %1647
        %1649 = vrot.lane.b32.xlu0 %v927, 16
        %v1650 = vpop.permute.xlu0 %1649
        %1651 = vrot.lane.b32.xlu0 %v997, 16
        %v1652 = vpop.permute.xlu0 %1651
        %1653 = vrot.lane.b32.xlu0 %v1002, 16
        %v1654 = vpop.permute.xlu0 %1653
        %1655 = vrot.lane.b32.xlu0 %v1007, 16
        %v1656 = vpop.permute.xlu0 %1655
        %1657 = vrot.lane.b32.xlu0 %v1012, 16
        %v1658 = vpop.permute.xlu0 %1657
        %1659 = vrot.lane.b32.xlu0 %v1017, 16
        %v1660 = vpop.permute.xlu0 %1659
        %1661 = vrot.lane.b32.xlu0 %v1022, 16
        %v1662 = vpop.permute.xlu0 %1661
        %1663 = vrot.lane.b32.xlu0 %v1027, 16
        %v1664 = vpop.permute.xlu0 %1663
        %1665 = vrot.lane.b32.xlu0 %v1032, 16
        %v1666 = vpop.permute.xlu0 %1665
        %1667 = vrot.lane.b32.xlu0 %v1037, 16
        %v1668 = vpop.permute.xlu0 %1667
        %1669 = vrot.lane.b32.xlu0 %v1042, 16
        %v1670 = vpop.permute.xlu0 %1669
        %1671 = vrot.lane.b32.xlu0 %v1047, 16
        %v1672 = vpop.permute.xlu0 %1671
        %1673 = vrot.lane.b32.xlu0 %v1052, 16
        %v1674 = vpop.permute.xlu0 %1673
        %1675 = vrot.lane.b32.xlu0 %v1057, 16
        %v1676 = vpop.permute.xlu0 %1675
        %1677 = vrot.lane.b32.xlu0 %v1062, 16
        %v1678 = vpop.permute.xlu0 %1677
        %1679 = vrot.lane.b32.xlu0 %v1067, 16
        %v1680 = vpop.permute.xlu0 %1679
        %1681 = vrot.lane.b32.xlu0 %v1072, 16
        %v1682 = vpop.permute.xlu0 %1681
        %vm1747 = vcmask 130048
        %v1748 = vsel %vm1747, %v1300, %v1556
        %v1749 = vsel %vm1747, %v1302, %v1558
        %v1750 = vsel %vm1747, %v1304, %v1560
        %v1751 = vsel %vm1747, %v1306, %v1562
        %v1752 = vsel %vm1747, %v1308, %v1564
        %v1753 = vsel %vm1747, %v1310, %v1566
        %v1754 = vsel %vm1747, %v1312, %v1568
        %v1755 = vsel %vm1747, %v1314, %v1570
        %v1756 = vsel %vm1747, %v1316, %v1572
        %v1757 = vsel %vm1747, %v1318, %v1574
        %v1758 = vsel %vm1747, %v1320, %v1576
        %v1759 = vsel %vm1747, %v1322, %v1578
        %v1760 = vsel %vm1747, %v1324, %v1580
        %v1761 = vsel %vm1747, %v1326, %v1582
        %v1762 = vsel %vm1747, %v1328, %v1584
        %v1763 = vsel %vm1747, %v1330, %v1586
        %v1764 = vsel %vm1747, %v1332, %v1588
        %v1765 = vsel %vm1747, %v1334, %v1590
        %v1766 = vsel %vm1747, %v1336, %v1592
        %v1767 = vsel %vm1747, %v1338, %v1594
        %v1768 = vsel %vm1747, %v1340, %v1596
        %v1769 = vsel %vm1747, %v1342, %v1598
        %v1770 = vsel %vm1747, %v1344, %v1600
        %v1771 = vsel %vm1747, %v1346, %v1602
        %v1772 = vsel %vm1747, %v1348, %v1604
        %v1773 = vsel %vm1747, %v1350, %v1606
        %v1774 = vsel %vm1747, %v1352, %v1608
        %v1775 = vsel %vm1747, %v1354, %v1610
        %v1776 = vsel %vm1747, %v1356, %v1612
        %v1777 = vsel %vm1747, %v1358, %v1614
        %v1778 = vsel %vm1747, %v1360, %v1616
        %v1779 = vsel %vm1747, %v1362, %v1618
        %v1780 = vsel %vm1747, %v1364, %v1620
        %v1781 = vsel %vm1747, %v1366, %v1622
        %v1782 = vsel %vm1747, %v1368, %v1624
        %v1783 = vsel %vm1747, %v1370, %v1626
        %v1784 = vsel %vm1747, %v1372, %v1628
        %v1785 = vsel %vm1747, %v1374, %v1630
        %v1786 = vsel %vm1747, %v1376, %v1632
        %v1787 = vsel %vm1747, %v1378, %v1634
        %v1788 = vsel %vm1747, %v1380, %v1636
        %v1789 = vsel %vm1747, %v1382, %v1638
        %v1790 = vsel %vm1747, %v1384, %v1640
        %v1791 = vsel %vm1747, %v1386, %v1642
        %v1792 = vsel %vm1747, %v1388, %v1644
        %v1793 = vsel %vm1747, %v1390, %v1646
        %v1794 = vsel %vm1747, %v1392, %v1648
        %v1795 = vsel %vm1747, %v1394, %v1650
        %v1796 = vsel %vm1747, %v1396, %v1652
        %v1797 = vsel %vm1747, %v1398, %v1654
        %v1798 = vsel %vm1747, %v1400, %v1656
        %v1799 = vsel %vm1747, %v1402, %v1658
        %v1800 = vsel %vm1747, %v1404, %v1660
        %v1801 = vsel %vm1747, %v1406, %v1662
        %v1802 = vsel %vm1747, %v1408, %v1664
        %v1803 = vsel %vm1747, %v1410, %v1666
        %v1804 = vsel %vm1747, %v1412, %v1668
        %v1805 = vsel %vm1747, %v1414, %v1670
        %v1806 = vsel %vm1747, %v1416, %v1672
        %v1807 = vsel %vm1747, %v1418, %v1674
        %v1808 = vsel %vm1747, %v1420, %v1676
        %v1809 = vsel %vm1747, %v1422, %v1678
        %v1810 = vsel %vm1747, %v1424, %v1680
        %v1811 = vsel %vm1747, %v1426, %v1682
        %v1812 = vmul.f32 %v1748, %v1091
        %v1813 = vmul.f32 %v1749, %v1092
        %v1814 = vmul.f32 %v1750, %v1093
        %v1815 = vmul.f32 %v1751, %v1094
        %v1816 = vmul.f32 %v1752, %v1095
        %v1817 = vmul.f32 %v1753, %v1096
        %v1818 = vmul.f32 %v1754, %v1097
        %v1819 = vmul.f32 %v1755, %v1098
        %v1820 = vmul.f32 %v1756, %v1099
        %v1821 = vmul.f32 %v1757, %v1100
        %v1822 = vmul.f32 %v1758, %v1101
        %v1823 = vmul.f32 %v1759, %v1102
        %v1824 = vmul.f32 %v1760, %v1103
        %v1825 = vmul.f32 %v1761, %v1104
        %v1826 = vmul.f32 %v1762, %v1105
        %v1827 = vmul.f32 %v1763, %v1106
        %v1828 = vmul.f32 %v1764, %v1091
        %v1829 = vmul.f32 %v1765, %v1092
        %v1830 = vmul.f32 %v1766, %v1093
        %v1831 = vmul.f32 %v1767, %v1094
        %v1832 = vmul.f32 %v1768, %v1095
        %v1833 = vmul.f32 %v1769, %v1096
        %v1834 = vmul.f32 %v1770, %v1097
        %v1835 = vmul.f32 %v1771, %v1098
        %v1836 = vmul.f32 %v1772, %v1099
        %v1837 = vmul.f32 %v1773, %v1100
        %v1838 = vmul.f32 %v1774, %v1101
        %v1839 = vmul.f32 %v1775, %v1102
        %v1840 = vmul.f32 %v1776, %v1103
        %v1841 = vmul.f32 %v1777, %v1104
        %v1842 = vmul.f32 %v1778, %v1105
        %v1843 = vmul.f32 %v1779, %v1106
        %v1844 = vmul.f32 %v1780, %v1091
        %v1845 = vmul.f32 %v1781, %v1092
        %v1846 = vmul.f32 %v1782, %v1093
        %v1847 = vmul.f32 %v1783, %v1094
        %v1848 = vmul.f32 %v1784, %v1095
        %v1849 = vmul.f32 %v1785, %v1096
        %v1850 = vmul.f32 %v1786, %v1097
        %v1851 = vmul.f32 %v1787, %v1098
        %v1852 = vmul.f32 %v1788, %v1099
        %v1853 = vmul.f32 %v1789, %v1100
        %v1854 = vmul.f32 %v1790, %v1101
        %v1855 = vmul.f32 %v1791, %v1102
        %v1856 = vmul.f32 %v1792, %v1103
        %v1857 = vmul.f32 %v1793, %v1104
        %v1858 = vmul.f32 %v1794, %v1105
        %v1859 = vmul.f32 %v1795, %v1106
        %v1860 = vmul.f32 %v1796, %v1091
        %v1861 = vmul.f32 %v1797, %v1092
        %v1862 = vmul.f32 %v1798, %v1093
        %v1863 = vmul.f32 %v1799, %v1094
        %v1864 = vmul.f32 %v1800, %v1095
        %v1865 = vmul.f32 %v1801, %v1096
        %v1866 = vmul.f32 %v1802, %v1097
        %v1867 = vmul.f32 %v1803, %v1098
        %v1868 = vmul.f32 %v1804, %v1099
        %v1869 = vmul.f32 %v1805, %v1100
        %v1870 = vmul.f32 %v1806, %v1101
        %v1871 = vmul.f32 %v1807, %v1102
        %v1872 = vmul.f32 %v1808, %v1103
        %v1873 = vmul.f32 %v1809, %v1104
        %v1874 = vmul.f32 %v1810, %v1105
        %v1875 = vmul.f32 %v1811, %v1106
        %v1876 = vadd.f32 %v1107, %v1812
        %v1877 = vadd.f32 %v1108, %v1813
        %v1878 = vadd.f32 %v1109, %v1814
        %v1879 = vadd.f32 %v1110, %v1815
        %v1880 = vadd.f32 %v1111, %v1816
        %v1881 = vadd.f32 %v1112, %v1817
        %v1882 = vadd.f32 %v1113, %v1818
        %v1883 = vadd.f32 %v1114, %v1819
        %v1884 = vadd.f32 %v1115, %v1820
        %v1885 = vadd.f32 %v1116, %v1821
        %v1886 = vadd.f32 %v1117, %v1822
        %v1887 = vadd.f32 %v1118, %v1823
        %v1888 = vadd.f32 %v1119, %v1824
        %v1889 = vadd.f32 %v1120, %v1825
        %v1890 = vadd.f32 %v1121, %v1826
        %v1891 = vadd.f32 %v1122, %v1827
        %v1892 = vadd.f32 %v1123, %v1828
        %v1893 = vadd.f32 %v1124, %v1829
        %v1894 = vadd.f32 %v1125, %v1830
        %v1895 = vadd.f32 %v1126, %v1831
        %v1896 = vadd.f32 %v1127, %v1832
        %v1897 = vadd.f32 %v1128, %v1833
        %v1898 = vadd.f32 %v1129, %v1834
        %v1899 = vadd.f32 %v1130, %v1835
        %v1900 = vadd.f32 %v1131, %v1836
        %v1901 = vadd.f32 %v1132, %v1837
        %v1902 = vadd.f32 %v1133, %v1838
        %v1903 = vadd.f32 %v1134, %v1839
        %v1904 = vadd.f32 %v1135, %v1840
        %v1905 = vadd.f32 %v1136, %v1841
        %v1906 = vadd.f32 %v1137, %v1842
        %v1907 = vadd.f32 %v1138, %v1843
        %v1908 = vadd.f32 %v1139, %v1844
        %v1909 = vadd.f32 %v1140, %v1845
        %v1910 = vadd.f32 %v1141, %v1846
        %v1911 = vadd.f32 %v1142, %v1847
        %v1912 = vadd.f32 %v1143, %v1848
        %v1913 = vadd.f32 %v1144, %v1849
        %v1914 = vadd.f32 %v1145, %v1850
        %v1915 = vadd.f32 %v1146, %v1851
        %v1916 = vadd.f32 %v1147, %v1852
        %v1917 = vadd.f32 %v1148, %v1853
        %v1918 = vadd.f32 %v1149, %v1854
        %v1919 = vadd.f32 %v1150, %v1855
        %v1920 = vadd.f32 %v1151, %v1856
        %v1921 = vadd.f32 %v1152, %v1857
        %v1922 = vadd.f32 %v1153, %v1858
        %v1923 = vadd.f32 %v1154, %v1859
        %v1924 = vadd.f32 %v1155, %v1860
        %v1925 = vadd.f32 %v1156, %v1861
        %v1926 = vadd.f32 %v1157, %v1862
        %v1927 = vadd.f32 %v1158, %v1863
        %v1928 = vadd.f32 %v1159, %v1864
        %v1929 = vadd.f32 %v1160, %v1865
        %v1930 = vadd.f32 %v1161, %v1866
        %v1931 = vadd.f32 %v1162, %v1867
        %v1932 = vadd.f32 %v1163, %v1868
        %v1933 = vadd.f32 %v1164, %v1869
        %v1934 = vadd.f32 %v1165, %v1870
        %v1935 = vadd.f32 %v1166, %v1871
        %v1936 = vadd.f32 %v1167, %v1872
        %v1937 = vadd.f32 %v1168, %v1873
        %v1938 = vadd.f32 %v1169, %v1874
        %v1939 = vadd.f32 %v1170, %v1875
        %1956 = vrot.lane.b32.xlu0 %v1075, 32
        %v1957 = vpop.permute.xlu0 %1956
        %1958 = vrot.lane.b32.xlu0 %v1076, 32
        %v1959 = vpop.permute.xlu0 %1958
        %1960 = vrot.lane.b32.xlu0 %v1077, 32
        %v1961 = vpop.permute.xlu0 %1960
        %1962 = vrot.lane.b32.xlu0 %v1078, 32
        %v1963 = vpop.permute.xlu0 %1962
        %1964 = vrot.lane.b32.xlu0 %v1079, 32
        %v1965 = vpop.permute.xlu0 %1964
        %1966 = vrot.lane.b32.xlu0 %v1080, 32
        %v1967 = vpop.permute.xlu0 %1966
        %1968 = vrot.lane.b32.xlu0 %v1081, 32
        %v1969 = vpop.permute.xlu0 %1968
        %1970 = vrot.lane.b32.xlu0 %v1082, 32
        %v1971 = vpop.permute.xlu0 %1970
        %1972 = vrot.lane.b32.xlu0 %v1083, 32
        %v1973 = vpop.permute.xlu0 %1972
        %1974 = vrot.lane.b32.xlu0 %v1084, 32
        %v1975 = vpop.permute.xlu0 %1974
        %1976 = vrot.lane.b32.xlu0 %v1085, 32
        %v1977 = vpop.permute.xlu0 %1976
        %1978 = vrot.lane.b32.xlu0 %v1086, 32
        %v1979 = vpop.permute.xlu0 %1978
        %1980 = vrot.lane.b32.xlu0 %v1087, 32
        %v1981 = vpop.permute.xlu0 %1980
        %1982 = vrot.lane.b32.xlu0 %v1088, 32
        %v1983 = vpop.permute.xlu0 %1982
        %1984 = vrot.lane.b32.xlu0 %v1089, 32
        %v1985 = vpop.permute.xlu0 %1984
        %1986 = vrot.lane.b32.xlu0 %v1090, 32
        %v1987 = vpop.permute.xlu0 %1986
        %v2004 = vmul.f32 %v562, %v1957
        %v2005 = vmul.f32 %v567, %v1959
        %v2006 = vmul.f32 %v572, %v1961
        %v2007 = vmul.f32 %v577, %v1963
        %v2008 = vmul.f32 %v582, %v1965
        %v2009 = vmul.f32 %v587, %v1967
        %v2010 = vmul.f32 %v592, %v1969
        %v2011 = vmul.f32 %v597, %v1971
        %v2012 = vmul.f32 %v602, %v1973
        %v2013 = vmul.f32 %v607, %v1975
        %v2014 = vmul.f32 %v612, %v1977
        %v2015 = vmul.f32 %v617, %v1979
        %v2016 = vmul.f32 %v622, %v1981
        %v2017 = vmul.f32 %v627, %v1983
        %v2018 = vmul.f32 %v632, %v1985
        %v2019 = vmul.f32 %v637, %v1987
        %v2020 = vmul.f32 %v707, %v1957
        %v2021 = vmul.f32 %v712, %v1959
        %v2022 = vmul.f32 %v717, %v1961
        %v2023 = vmul.f32 %v722, %v1963
        %v2024 = vmul.f32 %v727, %v1965
        %v2025 = vmul.f32 %v732, %v1967
        %v2026 = vmul.f32 %v737, %v1969
        %v2027 = vmul.f32 %v742, %v1971
        %v2028 = vmul.f32 %v747, %v1973
        %v2029 = vmul.f32 %v752, %v1975
        %v2030 = vmul.f32 %v757, %v1977
        %v2031 = vmul.f32 %v762, %v1979
        %v2032 = vmul.f32 %v767, %v1981
        %v2033 = vmul.f32 %v772, %v1983
        %v2034 = vmul.f32 %v777, %v1985
        %v2035 = vmul.f32 %v782, %v1987
        %v2036 = vmul.f32 %v852, %v1957
        %v2037 = vmul.f32 %v857, %v1959
        %v2038 = vmul.f32 %v862, %v1961
        %v2039 = vmul.f32 %v867, %v1963
        %v2040 = vmul.f32 %v872, %v1965
        %v2041 = vmul.f32 %v877, %v1967
        %v2042 = vmul.f32 %v882, %v1969
        %v2043 = vmul.f32 %v887, %v1971
        %v2044 = vmul.f32 %v892, %v1973
        %v2045 = vmul.f32 %v897, %v1975
        %v2046 = vmul.f32 %v902, %v1977
        %v2047 = vmul.f32 %v907, %v1979
        %v2048 = vmul.f32 %v912, %v1981
        %v2049 = vmul.f32 %v917, %v1983
        %v2050 = vmul.f32 %v922, %v1985
        %v2051 = vmul.f32 %v927, %v1987
        %v2052 = vmul.f32 %v997, %v1957
        %v2053 = vmul.f32 %v1002, %v1959
        %v2054 = vmul.f32 %v1007, %v1961
        %v2055 = vmul.f32 %v1012, %v1963
        %v2056 = vmul.f32 %v1017, %v1965
        %v2057 = vmul.f32 %v1022, %v1967
        %v2058 = vmul.f32 %v1027, %v1969
        %v2059 = vmul.f32 %v1032, %v1971
        %v2060 = vmul.f32 %v1037, %v1973
        %v2061 = vmul.f32 %v1042, %v1975
        %v2062 = vmul.f32 %v1047, %v1977
        %v2063 = vmul.f32 %v1052, %v1979
        %v2064 = vmul.f32 %v1057, %v1981
        %v2065 = vmul.f32 %v1062, %v1983
        %v2066 = vmul.f32 %v1067, %v1985
        %v2067 = vmul.f32 %v1072, %v1987
        %2068 = vrot.lane.b32.xlu0 %v1171, 80
        %v2069 = vpop.permute.xlu0 %2068
        %2070 = vrot.lane.b32.xlu0 %v1172, 80
        %v2071 = vpop.permute.xlu0 %2070
        %2072 = vrot.lane.b32.xlu0 %v1173, 80
        %v2073 = vpop.permute.xlu0 %2072
        %2074 = vrot.lane.b32.xlu0 %v1174, 80
        %v2075 = vpop.permute.xlu0 %2074
        %2076 = vrot.lane.b32.xlu0 %v1175, 80
        %v2077 = vpop.permute.xlu0 %2076
        %2078 = vrot.lane.b32.xlu0 %v1176, 80
        %v2079 = vpop.permute.xlu0 %2078
        %2080 = vrot.lane.b32.xlu0 %v1177, 80
        %v2081 = vpop.permute.xlu0 %2080
        %2082 = vrot.lane.b32.xlu0 %v1178, 80
        %v2083 = vpop.permute.xlu0 %2082
        %2084 = vrot.lane.b32.xlu0 %v1179, 80
        %v2085 = vpop.permute.xlu0 %2084
        %2086 = vrot.lane.b32.xlu0 %v1180, 80
        %v2087 = vpop.permute.xlu0 %2086
        %2088 = vrot.lane.b32.xlu0 %v1181, 80
        %v2089 = vpop.permute.xlu0 %2088
        %2090 = vrot.lane.b32.xlu0 %v1182, 80
        %v2091 = vpop.permute.xlu0 %2090
        %2092 = vrot.lane.b32.xlu0 %v1183, 80
        %v2093 = vpop.permute.xlu0 %2092
        %2094 = vrot.lane.b32.xlu0 %v1184, 80
        %v2095 = vpop.permute.xlu0 %2094
        %2096 = vrot.lane.b32.xlu0 %v1185, 80
        %v2097 = vpop.permute.xlu0 %2096
        %2098 = vrot.lane.b32.xlu0 %v1186, 80
        %v2099 = vpop.permute.xlu0 %2098
        %2100 = vrot.lane.b32.xlu0 %v1187, 80
        %v2101 = vpop.permute.xlu0 %2100
        %2102 = vrot.lane.b32.xlu0 %v1188, 80
        %v2103 = vpop.permute.xlu0 %2102
        %2104 = vrot.lane.b32.xlu0 %v1189, 80
        %v2105 = vpop.permute.xlu0 %2104
        %2106 = vrot.lane.b32.xlu0 %v1190, 80
        %v2107 = vpop.permute.xlu0 %2106
        %2108 = vrot.lane.b32.xlu0 %v1191, 80
        %v2109 = vpop.permute.xlu0 %2108
        %2110 = vrot.lane.b32.xlu0 %v1192, 80
        %v2111 = vpop.permute.xlu0 %2110
        %2112 = vrot.lane.b32.xlu0 %v1193, 80
        %v2113 = vpop.permute.xlu0 %2112
        %2114 = vrot.lane.b32.xlu0 %v1194, 80
        %v2115 = vpop.permute.xlu0 %2114
        %2116 = vrot.lane.b32.xlu0 %v1195, 80
        %v2117 = vpop.permute.xlu0 %2116
        %2118 = vrot.lane.b32.xlu0 %v1196, 80
        %v2119 = vpop.permute.xlu0 %2118
        %2120 = vrot.lane.b32.xlu0 %v1197, 80
        %v2121 = vpop.permute.xlu0 %2120
        %2122 = vrot.lane.b32.xlu0 %v1198, 80
        %v2123 = vpop.permute.xlu0 %2122
        %2124 = vrot.lane.b32.xlu0 %v1199, 80
        %v2125 = vpop.permute.xlu0 %2124
        %2126 = vrot.lane.b32.xlu0 %v1200, 80
        %v2127 = vpop.permute.xlu0 %2126
        %2128 = vrot.lane.b32.xlu0 %v1201, 80
        %v2129 = vpop.permute.xlu0 %2128
        %2130 = vrot.lane.b32.xlu0 %v1202, 80
        %v2131 = vpop.permute.xlu0 %2130
        %2132 = vrot.lane.b32.xlu0 %v1203, 80
        %v2133 = vpop.permute.xlu0 %2132
        %2134 = vrot.lane.b32.xlu0 %v1204, 80
        %v2135 = vpop.permute.xlu0 %2134
        %2136 = vrot.lane.b32.xlu0 %v1205, 80
        %v2137 = vpop.permute.xlu0 %2136
        %2138 = vrot.lane.b32.xlu0 %v1206, 80
        %v2139 = vpop.permute.xlu0 %2138
        %2140 = vrot.lane.b32.xlu0 %v1207, 80
        %v2141 = vpop.permute.xlu0 %2140
        %2142 = vrot.lane.b32.xlu0 %v1208, 80
        %v2143 = vpop.permute.xlu0 %2142
        %2144 = vrot.lane.b32.xlu0 %v1209, 80
        %v2145 = vpop.permute.xlu0 %2144
        %2146 = vrot.lane.b32.xlu0 %v1210, 80
        %v2147 = vpop.permute.xlu0 %2146
        %2148 = vrot.lane.b32.xlu0 %v1211, 80
        %v2149 = vpop.permute.xlu0 %2148
        %2150 = vrot.lane.b32.xlu0 %v1212, 80
        %v2151 = vpop.permute.xlu0 %2150
        %2152 = vrot.lane.b32.xlu0 %v1213, 80
        %v2153 = vpop.permute.xlu0 %2152
        %2154 = vrot.lane.b32.xlu0 %v1214, 80
        %v2155 = vpop.permute.xlu0 %2154
        %2156 = vrot.lane.b32.xlu0 %v1215, 80
        %v2157 = vpop.permute.xlu0 %2156
        %2158 = vrot.lane.b32.xlu0 %v1216, 80
        %v2159 = vpop.permute.xlu0 %2158
        %2160 = vrot.lane.b32.xlu0 %v1217, 80
        %v2161 = vpop.permute.xlu0 %2160
        %2162 = vrot.lane.b32.xlu0 %v1218, 80
        %v2163 = vpop.permute.xlu0 %2162
        %2164 = vrot.lane.b32.xlu0 %v1219, 80
        %v2165 = vpop.permute.xlu0 %2164
        %2166 = vrot.lane.b32.xlu0 %v1220, 80
        %v2167 = vpop.permute.xlu0 %2166
        %2168 = vrot.lane.b32.xlu0 %v1221, 80
        %v2169 = vpop.permute.xlu0 %2168
        %2170 = vrot.lane.b32.xlu0 %v1222, 80
        %v2171 = vpop.permute.xlu0 %2170
        %2172 = vrot.lane.b32.xlu0 %v1223, 80
        %v2173 = vpop.permute.xlu0 %2172
        %2174 = vrot.lane.b32.xlu0 %v1224, 80
        %v2175 = vpop.permute.xlu0 %2174
        %2176 = vrot.lane.b32.xlu0 %v1225, 80
        %v2177 = vpop.permute.xlu0 %2176
        %2178 = vrot.lane.b32.xlu0 %v1226, 80
        %v2179 = vpop.permute.xlu0 %2178
        %2180 = vrot.lane.b32.xlu0 %v1227, 80
        %v2181 = vpop.permute.xlu0 %2180
        %2182 = vrot.lane.b32.xlu0 %v1228, 80
        %v2183 = vpop.permute.xlu0 %2182
        %2184 = vrot.lane.b32.xlu0 %v1229, 80
        %v2185 = vpop.permute.xlu0 %2184
        %2186 = vrot.lane.b32.xlu0 %v1230, 80
        %v2187 = vpop.permute.xlu0 %2186
        %2188 = vrot.lane.b32.xlu0 %v1231, 80
        %v2189 = vpop.permute.xlu0 %2188
        %2190 = vrot.lane.b32.xlu0 %v1232, 80
        %v2191 = vpop.permute.xlu0 %2190
        %2192 = vrot.lane.b32.xlu0 %v1233, 80
        %v2193 = vpop.permute.xlu0 %2192
        %2194 = vrot.lane.b32.xlu0 %v1234, 80
        %v2195 = vpop.permute.xlu0 %2194
        %2260 = vrot.lane.b32.xlu0 %v562, 112
        %v2261 = vpop.permute.xlu0 %2260
        %2262 = vrot.lane.b32.xlu0 %v567, 112
        %v2263 = vpop.permute.xlu0 %2262
        %2264 = vrot.lane.b32.xlu0 %v572, 112
        %v2265 = vpop.permute.xlu0 %2264
        %2266 = vrot.lane.b32.xlu0 %v577, 112
        %v2267 = vpop.permute.xlu0 %2266
        %2268 = vrot.lane.b32.xlu0 %v582, 112
        %v2269 = vpop.permute.xlu0 %2268
        %2270 = vrot.lane.b32.xlu0 %v587, 112
        %v2271 = vpop.permute.xlu0 %2270
        %2272 = vrot.lane.b32.xlu0 %v592, 112
        %v2273 = vpop.permute.xlu0 %2272
        %2274 = vrot.lane.b32.xlu0 %v597, 112
        %v2275 = vpop.permute.xlu0 %2274
        %2276 = vrot.lane.b32.xlu0 %v602, 112
        %v2277 = vpop.permute.xlu0 %2276
        %2278 = vrot.lane.b32.xlu0 %v607, 112
        %v2279 = vpop.permute.xlu0 %2278
        %2280 = vrot.lane.b32.xlu0 %v612, 112
        %v2281 = vpop.permute.xlu0 %2280
        %2282 = vrot.lane.b32.xlu0 %v617, 112
        %v2283 = vpop.permute.xlu0 %2282
        %2284 = vrot.lane.b32.xlu0 %v622, 112
        %v2285 = vpop.permute.xlu0 %2284
        %2286 = vrot.lane.b32.xlu0 %v627, 112
        %v2287 = vpop.permute.xlu0 %2286
        %2288 = vrot.lane.b32.xlu0 %v632, 112
        %v2289 = vpop.permute.xlu0 %2288
        %2290 = vrot.lane.b32.xlu0 %v637, 112
        %v2291 = vpop.permute.xlu0 %2290
        %2292 = vrot.lane.b32.xlu0 %v707, 112
        %v2293 = vpop.permute.xlu0 %2292
        %2294 = vrot.lane.b32.xlu0 %v712, 112
        %v2295 = vpop.permute.xlu0 %2294
        %2296 = vrot.lane.b32.xlu0 %v717, 112
        %v2297 = vpop.permute.xlu0 %2296
        %2298 = vrot.lane.b32.xlu0 %v722, 112
        %v2299 = vpop.permute.xlu0 %2298
        %2300 = vrot.lane.b32.xlu0 %v727, 112
        %v2301 = vpop.permute.xlu0 %2300
        %2302 = vrot.lane.b32.xlu0 %v732, 112
        %v2303 = vpop.permute.xlu0 %2302
        %2304 = vrot.lane.b32.xlu0 %v737, 112
        %v2305 = vpop.permute.xlu0 %2304
        %2306 = vrot.lane.b32.xlu0 %v742, 112
        %v2307 = vpop.permute.xlu0 %2306
        %2308 = vrot.lane.b32.xlu0 %v747, 112
        %v2309 = vpop.permute.xlu0 %2308
        %2310 = vrot.lane.b32.xlu0 %v752, 112
        %v2311 = vpop.permute.xlu0 %2310
        %2312 = vrot.lane.b32.xlu0 %v757, 112
        %v2313 = vpop.permute.xlu0 %2312
        %2314 = vrot.lane.b32.xlu0 %v762, 112
        %v2315 = vpop.permute.xlu0 %2314
        %2316 = vrot.lane.b32.xlu0 %v767, 112
        %v2317 = vpop.permute.xlu0 %2316
        %2318 = vrot.lane.b32.xlu0 %v772, 112
        %v2319 = vpop.permute.xlu0 %2318
        %2320 = vrot.lane.b32.xlu0 %v777, 112
        %v2321 = vpop.permute.xlu0 %2320
        %2322 = vrot.lane.b32.xlu0 %v782, 112
        %v2323 = vpop.permute.xlu0 %2322
        %2324 = vrot.lane.b32.xlu0 %v852, 112
        %v2325 = vpop.permute.xlu0 %2324
        %2326 = vrot.lane.b32.xlu0 %v857, 112
        %v2327 = vpop.permute.xlu0 %2326
        %2328 = vrot.lane.b32.xlu0 %v862, 112
        %v2329 = vpop.permute.xlu0 %2328
        %2330 = vrot.lane.b32.xlu0 %v867, 112
        %v2331 = vpop.permute.xlu0 %2330
        %2332 = vrot.lane.b32.xlu0 %v872, 112
        %v2333 = vpop.permute.xlu0 %2332
        %2334 = vrot.lane.b32.xlu0 %v877, 112
        %v2335 = vpop.permute.xlu0 %2334
        %2336 = vrot.lane.b32.xlu0 %v882, 112
        %v2337 = vpop.permute.xlu0 %2336
        %2338 = vrot.lane.b32.xlu0 %v887, 112
        %v2339 = vpop.permute.xlu0 %2338
        %2340 = vrot.lane.b32.xlu0 %v892, 112
        %v2341 = vpop.permute.xlu0 %2340
        %2342 = vrot.lane.b32.xlu0 %v897, 112
        %v2343 = vpop.permute.xlu0 %2342
        %2344 = vrot.lane.b32.xlu0 %v902, 112
        %v2345 = vpop.permute.xlu0 %2344
        %2346 = vrot.lane.b32.xlu0 %v907, 112
        %v2347 = vpop.permute.xlu0 %2346
        %2348 = vrot.lane.b32.xlu0 %v912, 112
        %v2349 = vpop.permute.xlu0 %2348
        %2350 = vrot.lane.b32.xlu0 %v917, 112
        %v2351 = vpop.permute.xlu0 %2350
        %2352 = vrot.lane.b32.xlu0 %v922, 112
        %v2353 = vpop.permute.xlu0 %2352
        %2354 = vrot.lane.b32.xlu0 %v927, 112
        %v2355 = vpop.permute.xlu0 %2354
        %2356 = vrot.lane.b32.xlu0 %v997, 112
        %v2357 = vpop.permute.xlu0 %2356
        %2358 = vrot.lane.b32.xlu0 %v1002, 112
        %v2359 = vpop.permute.xlu0 %2358
        %2360 = vrot.lane.b32.xlu0 %v1007, 112
        %v2361 = vpop.permute.xlu0 %2360
        %2362 = vrot.lane.b32.xlu0 %v1012, 112
        %v2363 = vpop.permute.xlu0 %2362
        %2364 = vrot.lane.b32.xlu0 %v1017, 112
        %v2365 = vpop.permute.xlu0 %2364
        %2366 = vrot.lane.b32.xlu0 %v1022, 112
        %v2367 = vpop.permute.xlu0 %2366
        %2368 = vrot.lane.b32.xlu0 %v1027, 112
        %v2369 = vpop.permute.xlu0 %2368
        %2370 = vrot.lane.b32.xlu0 %v1032, 112
        %v2371 = vpop.permute.xlu0 %2370
        %2372 = vrot.lane.b32.xlu0 %v1037, 112
        %v2373 = vpop.permute.xlu0 %2372
        %2374 = vrot.lane.b32.xlu0 %v1042, 112
        %v2375 = vpop.permute.xlu0 %2374
        %2376 = vrot.lane.b32.xlu0 %v1047, 112
        %v2377 = vpop.permute.xlu0 %2376
        %2378 = vrot.lane.b32.xlu0 %v1052, 112
        %v2379 = vpop.permute.xlu0 %2378
        %2380 = vrot.lane.b32.xlu0 %v1057, 112
        %v2381 = vpop.permute.xlu0 %2380
        %2382 = vrot.lane.b32.xlu0 %v1062, 112
        %v2383 = vpop.permute.xlu0 %2382
        %2384 = vrot.lane.b32.xlu0 %v1067, 112
        %v2385 = vpop.permute.xlu0 %2384
        %2386 = vrot.lane.b32.xlu0 %v1072, 112
        %v2387 = vpop.permute.xlu0 %2386
        %v2452 = vsel %vm1747, %v2069, %v2261
        %v2453 = vsel %vm1747, %v2071, %v2263
        %v2454 = vsel %vm1747, %v2073, %v2265
        %v2455 = vsel %vm1747, %v2075, %v2267
        %v2456 = vsel %vm1747, %v2077, %v2269
        %v2457 = vsel %vm1747, %v2079, %v2271
        %v2458 = vsel %vm1747, %v2081, %v2273
        %v2459 = vsel %vm1747, %v2083, %v2275
        %v2460 = vsel %vm1747, %v2085, %v2277
        %v2461 = vsel %vm1747, %v2087, %v2279
        %v2462 = vsel %vm1747, %v2089, %v2281
        %v2463 = vsel %vm1747, %v2091, %v2283
        %v2464 = vsel %vm1747, %v2093, %v2285
        %v2465 = vsel %vm1747, %v2095, %v2287
        %v2466 = vsel %vm1747, %v2097, %v2289
        %v2467 = vsel %vm1747, %v2099, %v2291
        %v2468 = vsel %vm1747, %v2101, %v2293
        %v2469 = vsel %vm1747, %v2103, %v2295
        %v2470 = vsel %vm1747, %v2105, %v2297
        %v2471 = vsel %vm1747, %v2107, %v2299
        %v2472 = vsel %vm1747, %v2109, %v2301
        %v2473 = vsel %vm1747, %v2111, %v2303
        %v2474 = vsel %vm1747, %v2113, %v2305
        %v2475 = vsel %vm1747, %v2115, %v2307
        %v2476 = vsel %vm1747, %v2117, %v2309
        %v2477 = vsel %vm1747, %v2119, %v2311
        %v2478 = vsel %vm1747, %v2121, %v2313
        %v2479 = vsel %vm1747, %v2123, %v2315
        %v2480 = vsel %vm1747, %v2125, %v2317
        %v2481 = vsel %vm1747, %v2127, %v2319
        %v2482 = vsel %vm1747, %v2129, %v2321
        %v2483 = vsel %vm1747, %v2131, %v2323
        %v2484 = vsel %vm1747, %v2133, %v2325
        %v2485 = vsel %vm1747, %v2135, %v2327
        %v2486 = vsel %vm1747, %v2137, %v2329
        %v2487 = vsel %vm1747, %v2139, %v2331
        %v2488 = vsel %vm1747, %v2141, %v2333
        %v2489 = vsel %vm1747, %v2143, %v2335
        %v2490 = vsel %vm1747, %v2145, %v2337
        %v2491 = vsel %vm1747, %v2147, %v2339
        %v2492 = vsel %vm1747, %v2149, %v2341
        %v2493 = vsel %vm1747, %v2151, %v2343
        %v2494 = vsel %vm1747, %v2153, %v2345
        %v2495 = vsel %vm1747, %v2155, %v2347
        %v2496 = vsel %vm1747, %v2157, %v2349
        %v2497 = vsel %vm1747, %v2159, %v2351
        %v2498 = vsel %vm1747, %v2161, %v2353
        %v2499 = vsel %vm1747, %v2163, %v2355
        %v2500 = vsel %vm1747, %v2165, %v2357
        %v2501 = vsel %vm1747, %v2167, %v2359
        %v2502 = vsel %vm1747, %v2169, %v2361
        %v2503 = vsel %vm1747, %v2171, %v2363
        %v2504 = vsel %vm1747, %v2173, %v2365
        %v2505 = vsel %vm1747, %v2175, %v2367
        %v2506 = vsel %vm1747, %v2177, %v2369
        %v2507 = vsel %vm1747, %v2179, %v2371
        %v2508 = vsel %vm1747, %v2181, %v2373
        %v2509 = vsel %vm1747, %v2183, %v2375
        %v2510 = vsel %vm1747, %v2185, %v2377
        %v2511 = vsel %vm1747, %v2187, %v2379
        %v2512 = vsel %vm1747, %v2189, %v2381
        %v2513 = vsel %vm1747, %v2191, %v2383
        %v2514 = vsel %vm1747, %v2193, %v2385
        %v2515 = vsel %vm1747, %v2195, %v2387
        %v2516 = vmul.f32 %v2452, %v1091
        %v2517 = vmul.f32 %v2453, %v1092
        %v2518 = vmul.f32 %v2454, %v1093
        %v2519 = vmul.f32 %v2455, %v1094
        %v2520 = vmul.f32 %v2456, %v1095
        %v2521 = vmul.f32 %v2457, %v1096
        %v2522 = vmul.f32 %v2458, %v1097
        %v2523 = vmul.f32 %v2459, %v1098
        %v2524 = vmul.f32 %v2460, %v1099
        %v2525 = vmul.f32 %v2461, %v1100
        %v2526 = vmul.f32 %v2462, %v1101
        %v2527 = vmul.f32 %v2463, %v1102
        %v2528 = vmul.f32 %v2464, %v1103
        %v2529 = vmul.f32 %v2465, %v1104
        %v2530 = vmul.f32 %v2466, %v1105
        %v2531 = vmul.f32 %v2467, %v1106
        %v2532 = vmul.f32 %v2468, %v1091
        %v2533 = vmul.f32 %v2469, %v1092
        %v2534 = vmul.f32 %v2470, %v1093
        %v2535 = vmul.f32 %v2471, %v1094
        %v2536 = vmul.f32 %v2472, %v1095
        %v2537 = vmul.f32 %v2473, %v1096
        %v2538 = vmul.f32 %v2474, %v1097
        %v2539 = vmul.f32 %v2475, %v1098
        %v2540 = vmul.f32 %v2476, %v1099
        %v2541 = vmul.f32 %v2477, %v1100
        %v2542 = vmul.f32 %v2478, %v1101
        %v2543 = vmul.f32 %v2479, %v1102
        %v2544 = vmul.f32 %v2480, %v1103
        %v2545 = vmul.f32 %v2481, %v1104
        %v2546 = vmul.f32 %v2482, %v1105
        %v2547 = vmul.f32 %v2483, %v1106
        %v2548 = vmul.f32 %v2484, %v1091
        %v2549 = vmul.f32 %v2485, %v1092
        %v2550 = vmul.f32 %v2486, %v1093
        %v2551 = vmul.f32 %v2487, %v1094
        %v2552 = vmul.f32 %v2488, %v1095
        %v2553 = vmul.f32 %v2489, %v1096
        %v2554 = vmul.f32 %v2490, %v1097
        %v2555 = vmul.f32 %v2491, %v1098
        %v2556 = vmul.f32 %v2492, %v1099
        %v2557 = vmul.f32 %v2493, %v1100
        %v2558 = vmul.f32 %v2494, %v1101
        %v2559 = vmul.f32 %v2495, %v1102
        %v2560 = vmul.f32 %v2496, %v1103
        %v2561 = vmul.f32 %v2497, %v1104
        %v2562 = vmul.f32 %v2498, %v1105
        %v2563 = vmul.f32 %v2499, %v1106
        %v2564 = vmul.f32 %v2500, %v1091
        %v2565 = vmul.f32 %v2501, %v1092
        %v2566 = vmul.f32 %v2502, %v1093
        %v2567 = vmul.f32 %v2503, %v1094
        %v2568 = vmul.f32 %v2504, %v1095
        %v2569 = vmul.f32 %v2505, %v1096
        %v2570 = vmul.f32 %v2506, %v1097
        %v2571 = vmul.f32 %v2507, %v1098
        %v2572 = vmul.f32 %v2508, %v1099
        %v2573 = vmul.f32 %v2509, %v1100
        %v2574 = vmul.f32 %v2510, %v1101
        %v2575 = vmul.f32 %v2511, %v1102
        %v2576 = vmul.f32 %v2512, %v1103
        %v2577 = vmul.f32 %v2513, %v1104
        %v2578 = vmul.f32 %v2514, %v1105
        %v2579 = vmul.f32 %v2515, %v1106
        %2644 = vrot.lane.b32.xlu0 %v2516, 32
        %v2645 = vpop.permute.xlu0 %2644
        %2646 = vrot.lane.b32.xlu0 %v2517, 32
        %v2647 = vpop.permute.xlu0 %2646
        %2648 = vrot.lane.b32.xlu0 %v2518, 32
        %v2649 = vpop.permute.xlu0 %2648
        %2650 = vrot.lane.b32.xlu0 %v2519, 32
        %v2651 = vpop.permute.xlu0 %2650
        %2652 = vrot.lane.b32.xlu0 %v2520, 32
        %v2653 = vpop.permute.xlu0 %2652
        %2654 = vrot.lane.b32.xlu0 %v2521, 32
        %v2655 = vpop.permute.xlu0 %2654
        %2656 = vrot.lane.b32.xlu0 %v2522, 32
        %v2657 = vpop.permute.xlu0 %2656
        %2658 = vrot.lane.b32.xlu0 %v2523, 32
        %v2659 = vpop.permute.xlu0 %2658
        %2660 = vrot.lane.b32.xlu0 %v2524, 32
        %v2661 = vpop.permute.xlu0 %2660
        %2662 = vrot.lane.b32.xlu0 %v2525, 32
        %v2663 = vpop.permute.xlu0 %2662
        %2664 = vrot.lane.b32.xlu0 %v2526, 32
        %v2665 = vpop.permute.xlu0 %2664
        %2666 = vrot.lane.b32.xlu0 %v2527, 32
        %v2667 = vpop.permute.xlu0 %2666
        %2668 = vrot.lane.b32.xlu0 %v2528, 32
        %v2669 = vpop.permute.xlu0 %2668
        %2670 = vrot.lane.b32.xlu0 %v2529, 32
        %v2671 = vpop.permute.xlu0 %2670
        %2672 = vrot.lane.b32.xlu0 %v2530, 32
        %v2673 = vpop.permute.xlu0 %2672
        %2674 = vrot.lane.b32.xlu0 %v2531, 32
        %v2675 = vpop.permute.xlu0 %2674
        %2676 = vrot.lane.b32.xlu0 %v2532, 32
        %v2677 = vpop.permute.xlu0 %2676
        %2678 = vrot.lane.b32.xlu0 %v2533, 32
        %v2679 = vpop.permute.xlu0 %2678
        %2680 = vrot.lane.b32.xlu0 %v2534, 32
        %v2681 = vpop.permute.xlu0 %2680
        %2682 = vrot.lane.b32.xlu0 %v2535, 32
        %v2683 = vpop.permute.xlu0 %2682
        %2684 = vrot.lane.b32.xlu0 %v2536, 32
        %v2685 = vpop.permute.xlu0 %2684
        %2686 = vrot.lane.b32.xlu0 %v2537, 32
        %v2687 = vpop.permute.xlu0 %2686
        %2688 = vrot.lane.b32.xlu0 %v2538, 32
        %v2689 = vpop.permute.xlu0 %2688
        %2690 = vrot.lane.b32.xlu0 %v2539, 32
        %v2691 = vpop.permute.xlu0 %2690
        %2692 = vrot.lane.b32.xlu0 %v2540, 32
        %v2693 = vpop.permute.xlu0 %2692
        %2694 = vrot.lane.b32.xlu0 %v2541, 32
        %v2695 = vpop.permute.xlu0 %2694
        %2696 = vrot.lane.b32.xlu0 %v2542, 32
        %v2697 = vpop.permute.xlu0 %2696
        %2698 = vrot.lane.b32.xlu0 %v2543, 32
        %v2699 = vpop.permute.xlu0 %2698
        %2700 = vrot.lane.b32.xlu0 %v2544, 32
        %v2701 = vpop.permute.xlu0 %2700
        %2702 = vrot.lane.b32.xlu0 %v2545, 32
        %v2703 = vpop.permute.xlu0 %2702
        %2704 = vrot.lane.b32.xlu0 %v2546, 32
        %v2705 = vpop.permute.xlu0 %2704
        %2706 = vrot.lane.b32.xlu0 %v2547, 32
        %v2707 = vpop.permute.xlu0 %2706
        %2708 = vrot.lane.b32.xlu0 %v2548, 32
        %v2709 = vpop.permute.xlu0 %2708
        %2710 = vrot.lane.b32.xlu0 %v2549, 32
        %v2711 = vpop.permute.xlu0 %2710
        %2712 = vrot.lane.b32.xlu0 %v2550, 32
        %v2713 = vpop.permute.xlu0 %2712
        %2714 = vrot.lane.b32.xlu0 %v2551, 32
        %v2715 = vpop.permute.xlu0 %2714
        %2716 = vrot.lane.b32.xlu0 %v2552, 32
        %v2717 = vpop.permute.xlu0 %2716
        %2718 = vrot.lane.b32.xlu0 %v2553, 32
        %v2719 = vpop.permute.xlu0 %2718
        %2720 = vrot.lane.b32.xlu0 %v2554, 32
        %v2721 = vpop.permute.xlu0 %2720
        %2722 = vrot.lane.b32.xlu0 %v2555, 32
        %v2723 = vpop.permute.xlu0 %2722
        %2724 = vrot.lane.b32.xlu0 %v2556, 32
        %v2725 = vpop.permute.xlu0 %2724
        %2726 = vrot.lane.b32.xlu0 %v2557, 32
        %v2727 = vpop.permute.xlu0 %2726
        %2728 = vrot.lane.b32.xlu0 %v2558, 32
        %v2729 = vpop.permute.xlu0 %2728
        %2730 = vrot.lane.b32.xlu0 %v2559, 32
        %v2731 = vpop.permute.xlu0 %2730
        %2732 = vrot.lane.b32.xlu0 %v2560, 32
        %v2733 = vpop.permute.xlu0 %2732
        %2734 = vrot.lane.b32.xlu0 %v2561, 32
        %v2735 = vpop.permute.xlu0 %2734
        %2736 = vrot.lane.b32.xlu0 %v2562, 32
        %v2737 = vpop.permute.xlu0 %2736
        %2738 = vrot.lane.b32.xlu0 %v2563, 32
        %v2739 = vpop.permute.xlu0 %2738
        %2740 = vrot.lane.b32.xlu0 %v2564, 32
        %v2741 = vpop.permute.xlu0 %2740
        %2742 = vrot.lane.b32.xlu0 %v2565, 32
        %v2743 = vpop.permute.xlu0 %2742
        %2744 = vrot.lane.b32.xlu0 %v2566, 32
        %v2745 = vpop.permute.xlu0 %2744
        %2746 = vrot.lane.b32.xlu0 %v2567, 32
        %v2747 = vpop.permute.xlu0 %2746
        %2748 = vrot.lane.b32.xlu0 %v2568, 32
        %v2749 = vpop.permute.xlu0 %2748
        %2750 = vrot.lane.b32.xlu0 %v2569, 32
        %v2751 = vpop.permute.xlu0 %2750
        %2752 = vrot.lane.b32.xlu0 %v2570, 32
        %v2753 = vpop.permute.xlu0 %2752
        %2754 = vrot.lane.b32.xlu0 %v2571, 32
        %v2755 = vpop.permute.xlu0 %2754
        %2756 = vrot.lane.b32.xlu0 %v2572, 32
        %v2757 = vpop.permute.xlu0 %2756
        %2758 = vrot.lane.b32.xlu0 %v2573, 32
        %v2759 = vpop.permute.xlu0 %2758
        %2760 = vrot.lane.b32.xlu0 %v2574, 32
        %v2761 = vpop.permute.xlu0 %2760
        %2762 = vrot.lane.b32.xlu0 %v2575, 32
        %v2763 = vpop.permute.xlu0 %2762
        %2764 = vrot.lane.b32.xlu0 %v2576, 32
        %v2765 = vpop.permute.xlu0 %2764
        %2766 = vrot.lane.b32.xlu0 %v2577, 32
        %v2767 = vpop.permute.xlu0 %2766
        %2768 = vrot.lane.b32.xlu0 %v2578, 32
        %v2769 = vpop.permute.xlu0 %2768
        %2770 = vrot.lane.b32.xlu0 %v2579, 32
        %v2771 = vpop.permute.xlu0 %2770
        %v2836 = vadd.f32 %v2004, %v2645
        %v2837 = vadd.f32 %v2005, %v2647
        %v2838 = vadd.f32 %v2006, %v2649
        %v2839 = vadd.f32 %v2007, %v2651
        %v2840 = vadd.f32 %v2008, %v2653
        %v2841 = vadd.f32 %v2009, %v2655
        %v2842 = vadd.f32 %v2010, %v2657
        %v2843 = vadd.f32 %v2011, %v2659
        %v2844 = vadd.f32 %v2012, %v2661
        %v2845 = vadd.f32 %v2013, %v2663
        %v2846 = vadd.f32 %v2014, %v2665
        %v2847 = vadd.f32 %v2015, %v2667
        %v2848 = vadd.f32 %v2016, %v2669
        %v2849 = vadd.f32 %v2017, %v2671
        %v2850 = vadd.f32 %v2018, %v2673
        %v2851 = vadd.f32 %v2019, %v2675
        %v2852 = vadd.f32 %v2020, %v2677
        %v2853 = vadd.f32 %v2021, %v2679
        %v2854 = vadd.f32 %v2022, %v2681
        %v2855 = vadd.f32 %v2023, %v2683
        %v2856 = vadd.f32 %v2024, %v2685
        %v2857 = vadd.f32 %v2025, %v2687
        %v2858 = vadd.f32 %v2026, %v2689
        %v2859 = vadd.f32 %v2027, %v2691
        %v2860 = vadd.f32 %v2028, %v2693
        %v2861 = vadd.f32 %v2029, %v2695
        %v2862 = vadd.f32 %v2030, %v2697
        %v2863 = vadd.f32 %v2031, %v2699
        %v2864 = vadd.f32 %v2032, %v2701
        %v2865 = vadd.f32 %v2033, %v2703
        %v2866 = vadd.f32 %v2034, %v2705
        %v2867 = vadd.f32 %v2035, %v2707
        %v2868 = vadd.f32 %v2036, %v2709
        %v2869 = vadd.f32 %v2037, %v2711
        %v2870 = vadd.f32 %v2038, %v2713
        %v2871 = vadd.f32 %v2039, %v2715
        %v2872 = vadd.f32 %v2040, %v2717
        %v2873 = vadd.f32 %v2041, %v2719
        %v2874 = vadd.f32 %v2042, %v2721
        %v2875 = vadd.f32 %v2043, %v2723
        %v2876 = vadd.f32 %v2044, %v2725
        %v2877 = vadd.f32 %v2045, %v2727
        %v2878 = vadd.f32 %v2046, %v2729
        %v2879 = vadd.f32 %v2047, %v2731
        %v2880 = vadd.f32 %v2048, %v2733
        %v2881 = vadd.f32 %v2049, %v2735
        %v2882 = vadd.f32 %v2050, %v2737
        %v2883 = vadd.f32 %v2051, %v2739
        %v2884 = vadd.f32 %v2052, %v2741
        %v2885 = vadd.f32 %v2053, %v2743
        %v2886 = vadd.f32 %v2054, %v2745
        %v2887 = vadd.f32 %v2055, %v2747
        %v2888 = vadd.f32 %v2056, %v2749
        %v2889 = vadd.f32 %v2057, %v2751
        %v2890 = vadd.f32 %v2058, %v2753
        %v2891 = vadd.f32 %v2059, %v2755
        %v2892 = vadd.f32 %v2060, %v2757
        %v2893 = vadd.f32 %v2061, %v2759
        %v2894 = vadd.f32 %v2062, %v2761
        %v2895 = vadd.f32 %v2063, %v2763
        %v2896 = vadd.f32 %v2064, %v2765
        %v2897 = vadd.f32 %v2065, %v2767
        %v2898 = vadd.f32 %v2066, %v2769
        %v2899 = vadd.f32 %v2067, %v2771
        %v2900 = vld [vmem:[%s380] sm:$0xff]
        %v2901 = vld [vmem:[%s380 + $0x8] sm:$0xff]
        %v2902 = vld [vmem:[%s380 + $0x10] sm:$0xff]
        %v2903 = vld [vmem:[%s380 + $0x18] sm:$0xff]
        %v2904 = vld [vmem:[%s380 + $0x20] sm:$0xff]
        %v2905 = vld [vmem:[%s380 + $0x28] sm:$0xff]
        %v2906 = vld [vmem:[%s380 + $0x30] sm:$0xff]
        %v2907 = vld [vmem:[%s380 + $0x38] sm:$0xff]
        %v2908 = vld [vmem:[%s380 + $0x40] sm:$0xff]
        %v2909 = vld [vmem:[%s380 + $0x48] sm:$0xff]
        %v2910 = vld [vmem:[%s380 + $0x50] sm:$0xff]
        %v2911 = vld [vmem:[%s380 + $0x58] sm:$0xff]
        %v2912 = vld [vmem:[%s380 + $0x60] sm:$0xff]
        %v2913 = vld [vmem:[%s380 + $0x68] sm:$0xff]
        %v2914 = vld [vmem:[%s380 + $0x70] sm:$0xff]
        %v2915 = vld [vmem:[%s380 + $0x78] sm:$0xff]
        %2932 = vrot.lane.b32.xlu0 %v2836, 96
        %v2933 = vpop.permute.xlu0 %2932
        %2934 = vrot.lane.b32.xlu0 %v2837, 96
        %v2935 = vpop.permute.xlu0 %2934
        %2936 = vrot.lane.b32.xlu0 %v2838, 96
        %v2937 = vpop.permute.xlu0 %2936
        %2938 = vrot.lane.b32.xlu0 %v2839, 96
        %v2939 = vpop.permute.xlu0 %2938
        %2940 = vrot.lane.b32.xlu0 %v2840, 96
        %v2941 = vpop.permute.xlu0 %2940
        %2942 = vrot.lane.b32.xlu0 %v2841, 96
        %v2943 = vpop.permute.xlu0 %2942
        %2944 = vrot.lane.b32.xlu0 %v2842, 96
        %v2945 = vpop.permute.xlu0 %2944
        %2946 = vrot.lane.b32.xlu0 %v2843, 96
        %v2947 = vpop.permute.xlu0 %2946
        %2948 = vrot.lane.b32.xlu0 %v2844, 96
        %v2949 = vpop.permute.xlu0 %2948
        %2950 = vrot.lane.b32.xlu0 %v2845, 96
        %v2951 = vpop.permute.xlu0 %2950
        %2952 = vrot.lane.b32.xlu0 %v2846, 96
        %v2953 = vpop.permute.xlu0 %2952
        %2954 = vrot.lane.b32.xlu0 %v2847, 96
        %v2955 = vpop.permute.xlu0 %2954
        %2956 = vrot.lane.b32.xlu0 %v2848, 96
        %v2957 = vpop.permute.xlu0 %2956
        %2958 = vrot.lane.b32.xlu0 %v2849, 96
        %v2959 = vpop.permute.xlu0 %2958
        %2960 = vrot.lane.b32.xlu0 %v2850, 96
        %v2961 = vpop.permute.xlu0 %2960
        %2962 = vrot.lane.b32.xlu0 %v2851, 96
        %v2963 = vpop.permute.xlu0 %2962
        %vm2964 = vcmask 261120
        %v2966 = vsel %vm2964, %v1876, 0
        %v2969 = vsel %vm2964, %v1877, 0
        %v2972 = vsel %vm2964, %v1878, 0
        %v2975 = vsel %vm2964, %v1879, 0
        %v2978 = vsel %vm2964, %v1880, 0
        %v2981 = vsel %vm2964, %v1881, 0
        %v2984 = vsel %vm2964, %v1882, 0
        %v2987 = vsel %vm2964, %v1883, 0
        %v2990 = vsel %vm2964, %v1884, 0
        %v2993 = vsel %vm2964, %v1885, 0
        %v2996 = vsel %vm2964, %v1886, 0
        %v2999 = vsel %vm2964, %v1887, 0
        %v3002 = vsel %vm2964, %v1888, 0
        %v3005 = vsel %vm2964, %v1889, 0
        %v3008 = vsel %vm2964, %v1890, 0
        %v3011 = vsel %vm2964, %v1891, 0
        %v3013 = vsel %vm2964, %v2933, 0
        %v3015 = vsel %vm2964, %v2935, 0
        %v3017 = vsel %vm2964, %v2937, 0
        %v3019 = vsel %vm2964, %v2939, 0
        %v3021 = vsel %vm2964, %v2941, 0
        %v3023 = vsel %vm2964, %v2943, 0
        %v3025 = vsel %vm2964, %v2945, 0
        %v3027 = vsel %vm2964, %v2947, 0
        %v3029 = vsel %vm2964, %v2949, 0
        %v3031 = vsel %vm2964, %v2951, 0
        %v3033 = vsel %vm2964, %v2953, 0
        %v3035 = vsel %vm2964, %v2955, 0
        %v3037 = vsel %vm2964, %v2957, 0
        %v3039 = vsel %vm2964, %v2959, 0
        %v3041 = vsel %vm2964, %v2961, 0
        %v3043 = vsel %vm2964, %v2963, 0
        %3045 = vmatprep.subr.mxu0 0.0
        %3046 = vmatpush1.xpose.msra.mxu0 %v3043
        %3047 = vmatprep.subr.mxu0 0.0
        %3048 = vmatpush1.xpose.msra.mxu0 %v3041
        %3049 = vmatprep.subr.mxu0 0.0
        %3050 = vmatpush1.xpose.msra.mxu0 %v3039
        %3051 = vmatprep.subr.mxu0 0.0
        %3052 = vmatpush1.xpose.msra.mxu0 %v3037
        %3053 = vmatprep.subr.mxu0 0.0
        %3054 = vmatpush1.xpose.msra.mxu0 %v3035
        %3055 = vmatprep.subr.mxu0 0.0
        %3056 = vmatpush1.xpose.msra.mxu0 %v3033
        %3057 = vmatprep.subr.mxu0 0.0
        %3058 = vmatpush1.xpose.msra.mxu0 %v3031
        %3059 = vmatprep.subr.mxu0 0.0
        %3060 = vmatpush1.xpose.msra.mxu0 %v3029
        %3061 = vmatprep.subr.mxu0 0.0
        %3062 = vmatpush1.xpose.msra.mxu0 %v3027
        %3063 = vmatprep.subr.mxu0 0.0
        %3064 = vmatpush1.xpose.msra.mxu0 %v3025
        %3065 = vmatprep.subr.mxu0 0.0
        %3066 = vmatpush1.xpose.msra.mxu0 %v3023
        %3067 = vmatprep.subr.mxu0 0.0
        %3068 = vmatpush1.xpose.msra.mxu0 %v3021
        %3069 = vmatprep.subr.mxu0 0.0
        %3070 = vmatpush1.xpose.msra.mxu0 %v3019
        %3071 = vmatprep.subr.mxu0 0.0
        %3072 = vmatpush1.xpose.msra.mxu0 %v3017
        %3073 = vmatprep.subr.mxu0 0.0
        %3074 = vmatpush1.xpose.msra.mxu0 %v3015
        %3075 = vmatprep.subr.mxu0 0.0
        %3076 = vmatpush1.xpose.msra.mxu0 %v3013
        %3077 = vmatprep.subr.mxu0 0.0
        %3078 = vmatpush2.xpose.msra.mxu0 0.0
        %3079 = vmatprep.subr.mxu0 0.0
        %3080 = vmatpush2.xpose.msra.mxu0 0.0
        %3081 = vmatprep.subr.mxu0 0.0
        %3082 = vmatpush2.xpose.msra.mxu0 0.0
        %3083 = vmatprep.subr.mxu0 0.0
        %3084 = vmatpush2.xpose.msra.mxu0 0.0
        %3085 = vmatprep.subr.mxu0 0.0
        %3086 = vmatpush2.xpose.msra.mxu0 0.0
        %3087 = vmatprep.subr.mxu0 0.0
        %3088 = vmatpush2.xpose.msra.mxu0 0.0
        %3089 = vmatprep.subr.mxu0 0.0
        %3090 = vmatpush2.xpose.msra.mxu0 0.0
        %3091 = vmatprep.subr.mxu0 0.0
        %3092 = vmatpush2.xpose.msra.mxu0 0.0
        %3093 = vmatprep.subr.mxu0 0.0
        %3094 = vmatpush2.xpose.msra.mxu0 0.0
        %3095 = vmatprep.subr.mxu0 0.0
        %3096 = vmatpush2.xpose.msra.mxu0 0.0
        %3097 = vmatprep.subr.mxu0 0.0
        %3098 = vmatpush2.xpose.msra.mxu0 0.0
        %3099 = vmatprep.subr.mxu0 0.0
        %3100 = vmatpush2.xpose.msra.mxu0 0.0
        %3101 = vmatprep.subr.mxu0 0.0
        %3102 = vmatpush2.xpose.msra.mxu0 0.0
        %3103 = vmatprep.subr.mxu0 0.0
        %3104 = vmatpush2.xpose.msra.mxu0 0.0
        %3105 = vmatprep.subr.mxu0 0.0
        %3106 = vmatpush2.xpose.msra.mxu0 0.0
        %3107 = vmatprep.subr.mxu0 0.0
        %3108 = vmatpush2.xpose.msra.mxu0 0.0
        %3109 = vmatprep.mubr.f32.mxu0 0.0
        %3110 = vmatmul.mubr.f32.gmra.mxu0 %v2966
        %v3111 = vpop.f32.mrf.mxu0
        %v3112 = vadd.f32 %v2900, %v3111
        %v3113 = vpop.f32.mrf.mxu0
        %3114 = vmatprep.mubr.f32.mxu0 0.0
        %3115 = vmatmul.mubr.f32.gmra.mxu0 %v2969
        %v3116 = vpop.f32.mrf.mxu0
        %v3117 = vadd.f32 %v2901, %v3116
        %v3118 = vpop.f32.mrf.mxu0
        %3119 = vmatprep.mubr.f32.mxu0 0.0
        %3120 = vmatmul.mubr.f32.gmra.mxu0 %v2972
        %v3121 = vpop.f32.mrf.mxu0
        %v3122 = vadd.f32 %v2902, %v3121
        %v3123 = vpop.f32.mrf.mxu0
        %3124 = vmatprep.mubr.f32.mxu0 0.0
        %3125 = vmatmul.mubr.f32.gmra.mxu0 %v2975
        %v3126 = vpop.f32.mrf.mxu0
        %v3127 = vadd.f32 %v2903, %v3126
        %v3128 = vpop.f32.mrf.mxu0
        %3129 = vmatprep.mubr.f32.mxu0 0.0
        %3130 = vmatmul.mubr.f32.gmra.mxu0 %v2978
        %v3131 = vpop.f32.mrf.mxu0
        %v3132 = vadd.f32 %v2904, %v3131
        %v3133 = vpop.f32.mrf.mxu0
        %3134 = vmatprep.mubr.f32.mxu0 0.0
        %3135 = vmatmul.mubr.f32.gmra.mxu0 %v2981
        %v3136 = vpop.f32.mrf.mxu0
        %v3137 = vadd.f32 %v2905, %v3136
        %v3138 = vpop.f32.mrf.mxu0
        %3139 = vmatprep.mubr.f32.mxu0 0.0
        %3140 = vmatmul.mubr.f32.gmra.mxu0 %v2984
        %v3141 = vpop.f32.mrf.mxu0
        %v3142 = vadd.f32 %v2906, %v3141
        %v3143 = vpop.f32.mrf.mxu0
        %3144 = vmatprep.mubr.f32.mxu0 0.0
        %3145 = vmatmul.mubr.f32.gmra.mxu0 %v2987
        %v3146 = vpop.f32.mrf.mxu0
        %v3147 = vadd.f32 %v2907, %v3146
        %v3148 = vpop.f32.mrf.mxu0
        %3149 = vmatprep.mubr.f32.mxu0 0.0
        %3150 = vmatmul.mubr.f32.gmra.mxu0 %v2990
        %v3151 = vpop.f32.mrf.mxu0
        %v3152 = vadd.f32 %v2908, %v3151
        %v3153 = vpop.f32.mrf.mxu0
        %3154 = vmatprep.mubr.f32.mxu0 0.0
        %3155 = vmatmul.mubr.f32.gmra.mxu0 %v2993
        %v3156 = vpop.f32.mrf.mxu0
        %v3157 = vadd.f32 %v2909, %v3156
        %v3158 = vpop.f32.mrf.mxu0
        %3159 = vmatprep.mubr.f32.mxu0 0.0
        %3160 = vmatmul.mubr.f32.gmra.mxu0 %v2996
        %v3161 = vpop.f32.mrf.mxu0
        %v3162 = vadd.f32 %v2910, %v3161
        %v3163 = vpop.f32.mrf.mxu0
        %3164 = vmatprep.mubr.f32.mxu0 0.0
        %3165 = vmatmul.mubr.f32.gmra.mxu0 %v2999
        %v3166 = vpop.f32.mrf.mxu0
        %v3167 = vadd.f32 %v2911, %v3166
        %v3168 = vpop.f32.mrf.mxu0
        %3169 = vmatprep.mubr.f32.mxu0 0.0
        %3170 = vmatmul.mubr.f32.gmra.mxu0 %v3002
        %v3171 = vpop.f32.mrf.mxu0
        %v3172 = vadd.f32 %v2912, %v3171
        %v3173 = vpop.f32.mrf.mxu0
        %3174 = vmatprep.mubr.f32.mxu0 0.0
        %3175 = vmatmul.mubr.f32.gmra.mxu0 %v3005
        %v3176 = vpop.f32.mrf.mxu0
        %v3177 = vadd.f32 %v2913, %v3176
        %v3178 = vpop.f32.mrf.mxu0
        %3179 = vmatprep.mubr.f32.mxu0 0.0
        %3180 = vmatmul.mubr.f32.gmra.mxu0 %v3008
        %v3181 = vpop.f32.mrf.mxu0
        %v3182 = vadd.f32 %v2914, %v3181
        %v3183 = vpop.f32.mrf.mxu0
        %3184 = vmatprep.mubr.f32.mxu0 0.0
        %3185 = vmatmul.mubr.f32.gmra.mxu0 %v3011
        %v3186 = vpop.f32.mrf.mxu0
        %v3187 = vadd.f32 %v2915, %v3186
        %v3188 = vpop.f32.mrf.mxu0
        %3189 = vdwg.mxu0
        %3206 = vrot.lane.b32.xlu0 %v2852, 96
        %v3207 = vpop.permute.xlu0 %3206
        %3208 = vrot.lane.b32.xlu0 %v2853, 96
        %v3209 = vpop.permute.xlu0 %3208
        %3210 = vrot.lane.b32.xlu0 %v2854, 96
        %v3211 = vpop.permute.xlu0 %3210
        %3212 = vrot.lane.b32.xlu0 %v2855, 96
        %v3213 = vpop.permute.xlu0 %3212
        %3214 = vrot.lane.b32.xlu0 %v2856, 96
        %v3215 = vpop.permute.xlu0 %3214
        %3216 = vrot.lane.b32.xlu0 %v2857, 96
        %v3217 = vpop.permute.xlu0 %3216
        %3218 = vrot.lane.b32.xlu0 %v2858, 96
        %v3219 = vpop.permute.xlu0 %3218
        %3220 = vrot.lane.b32.xlu0 %v2859, 96
        %v3221 = vpop.permute.xlu0 %3220
        %3222 = vrot.lane.b32.xlu0 %v2860, 96
        %v3223 = vpop.permute.xlu0 %3222
        %3224 = vrot.lane.b32.xlu0 %v2861, 96
        %v3225 = vpop.permute.xlu0 %3224
        %3226 = vrot.lane.b32.xlu0 %v2862, 96
        %v3227 = vpop.permute.xlu0 %3226
        %3228 = vrot.lane.b32.xlu0 %v2863, 96
        %v3229 = vpop.permute.xlu0 %3228
        %3230 = vrot.lane.b32.xlu0 %v2864, 96
        %v3231 = vpop.permute.xlu0 %3230
        %3232 = vrot.lane.b32.xlu0 %v2865, 96
        %v3233 = vpop.permute.xlu0 %3232
        %3234 = vrot.lane.b32.xlu0 %v2866, 96
        %v3235 = vpop.permute.xlu0 %3234
        %3236 = vrot.lane.b32.xlu0 %v2867, 96
        %v3237 = vpop.permute.xlu0 %3236
        %v3239 = vsel %vm2964, %v1892, 0
        %v3242 = vsel %vm2964, %v1893, 0
        %v3245 = vsel %vm2964, %v1894, 0
        %v3248 = vsel %vm2964, %v1895, 0
        %v3251 = vsel %vm2964, %v1896, 0
        %v3254 = vsel %vm2964, %v1897, 0
        %v3257 = vsel %vm2964, %v1898, 0
        %v3260 = vsel %vm2964, %v1899, 0
        %v3263 = vsel %vm2964, %v1900, 0
        %v3266 = vsel %vm2964, %v1901, 0
        %v3269 = vsel %vm2964, %v1902, 0
        %v3272 = vsel %vm2964, %v1903, 0
        %v3275 = vsel %vm2964, %v1904, 0
        %v3278 = vsel %vm2964, %v1905, 0
        %v3281 = vsel %vm2964, %v1906, 0
        %v3284 = vsel %vm2964, %v1907, 0
        %v3286 = vsel %vm2964, %v3207, 0
        %v3288 = vsel %vm2964, %v3209, 0
        %v3290 = vsel %vm2964, %v3211, 0
        %v3292 = vsel %vm2964, %v3213, 0
        %v3294 = vsel %vm2964, %v3215, 0
        %v3296 = vsel %vm2964, %v3217, 0
        %v3298 = vsel %vm2964, %v3219, 0
        %v3300 = vsel %vm2964, %v3221, 0
        %v3302 = vsel %vm2964, %v3223, 0
        %v3304 = vsel %vm2964, %v3225, 0
        %v3306 = vsel %vm2964, %v3227, 0
        %v3308 = vsel %vm2964, %v3229, 0
        %v3310 = vsel %vm2964, %v3231, 0
        %v3312 = vsel %vm2964, %v3233, 0
        %v3314 = vsel %vm2964, %v3235, 0
        %v3316 = vsel %vm2964, %v3237, 0
        %3318 = vmatprep.subr.mxu0 0.0
        %3319 = vmatpush1.xpose.msra.mxu0 %v3316
        %3320 = vmatprep.subr.mxu0 0.0
        %3321 = vmatpush1.xpose.msra.mxu0 %v3314
        %3322 = vmatprep.subr.mxu0 0.0
        %3323 = vmatpush1.xpose.msra.mxu0 %v3312
        %3324 = vmatprep.subr.mxu0 0.0
        %3325 = vmatpush1.xpose.msra.mxu0 %v3310
        %3326 = vmatprep.subr.mxu0 0.0
        %3327 = vmatpush1.xpose.msra.mxu0 %v3308
        %3328 = vmatprep.subr.mxu0 0.0
        %3329 = vmatpush1.xpose.msra.mxu0 %v3306
        %3330 = vmatprep.subr.mxu0 0.0
        %3331 = vmatpush1.xpose.msra.mxu0 %v3304
        %3332 = vmatprep.subr.mxu0 0.0
        %3333 = vmatpush1.xpose.msra.mxu0 %v3302
        %3334 = vmatprep.subr.mxu0 0.0
        %3335 = vmatpush1.xpose.msra.mxu0 %v3300
        %3336 = vmatprep.subr.mxu0 0.0
        %3337 = vmatpush1.xpose.msra.mxu0 %v3298
        %3338 = vmatprep.subr.mxu0 0.0
        %3339 = vmatpush1.xpose.msra.mxu0 %v3296
        %3340 = vmatprep.subr.mxu0 0.0
        %3341 = vmatpush1.xpose.msra.mxu0 %v3294
        %3342 = vmatprep.subr.mxu0 0.0
        %3343 = vmatpush1.xpose.msra.mxu0 %v3292
        %3344 = vmatprep.subr.mxu0 0.0
        %3345 = vmatpush1.xpose.msra.mxu0 %v3290
        %3346 = vmatprep.subr.mxu0 0.0
        %3347 = vmatpush1.xpose.msra.mxu0 %v3288
        %3348 = vmatprep.subr.mxu0 0.0
        %3349 = vmatpush1.xpose.msra.mxu0 %v3286
        %3350 = vmatprep.subr.mxu0 0.0
        %3351 = vmatpush2.xpose.msra.mxu0 0.0
        %3352 = vmatprep.subr.mxu0 0.0
        %3353 = vmatpush2.xpose.msra.mxu0 0.0
        %3354 = vmatprep.subr.mxu0 0.0
        %3355 = vmatpush2.xpose.msra.mxu0 0.0
        %3356 = vmatprep.subr.mxu0 0.0
        %3357 = vmatpush2.xpose.msra.mxu0 0.0
        %3358 = vmatprep.subr.mxu0 0.0
        %3359 = vmatpush2.xpose.msra.mxu0 0.0
        %3360 = vmatprep.subr.mxu0 0.0
        %3361 = vmatpush2.xpose.msra.mxu0 0.0
        %3362 = vmatprep.subr.mxu0 0.0
        %3363 = vmatpush2.xpose.msra.mxu0 0.0
        %3364 = vmatprep.subr.mxu0 0.0
        %3365 = vmatpush2.xpose.msra.mxu0 0.0
        %3366 = vmatprep.subr.mxu0 0.0
        %3367 = vmatpush2.xpose.msra.mxu0 0.0
        %3368 = vmatprep.subr.mxu0 0.0
        %3369 = vmatpush2.xpose.msra.mxu0 0.0
        %3370 = vmatprep.subr.mxu0 0.0
        %3371 = vmatpush2.xpose.msra.mxu0 0.0
        %3372 = vmatprep.subr.mxu0 0.0
        %3373 = vmatpush2.xpose.msra.mxu0 0.0
        %3374 = vmatprep.subr.mxu0 0.0
        %3375 = vmatpush2.xpose.msra.mxu0 0.0
        %3376 = vmatprep.subr.mxu0 0.0
        %3377 = vmatpush2.xpose.msra.mxu0 0.0
        %3378 = vmatprep.subr.mxu0 0.0
        %3379 = vmatpush2.xpose.msra.mxu0 0.0
        %3380 = vmatprep.subr.mxu0 0.0
        %3381 = vmatpush2.xpose.msra.mxu0 0.0
        %3382 = vmatprep.mubr.f32.mxu0 0.0
        %3383 = vmatmul.mubr.f32.gmra.mxu0 %v3239
        %v3384 = vpop.f32.mrf.mxu0
        %v3385 = vadd.f32 %v2900, %v3384
        %v3386 = vpop.f32.mrf.mxu0
        %3387 = vmatprep.mubr.f32.mxu0 0.0
        %3388 = vmatmul.mubr.f32.gmra.mxu0 %v3242
        %v3389 = vpop.f32.mrf.mxu0
        %v3390 = vadd.f32 %v2901, %v3389
        %v3391 = vpop.f32.mrf.mxu0
        %3392 = vmatprep.mubr.f32.mxu0 0.0
        %3393 = vmatmul.mubr.f32.gmra.mxu0 %v3245
        %v3394 = vpop.f32.mrf.mxu0
        %v3395 = vadd.f32 %v2902, %v3394
        %v3396 = vpop.f32.mrf.mxu0
        %3397 = vmatprep.mubr.f32.mxu0 0.0
        %3398 = vmatmul.mubr.f32.gmra.mxu0 %v3248
        %v3399 = vpop.f32.mrf.mxu0
        %v3400 = vadd.f32 %v2903, %v3399
        %v3401 = vpop.f32.mrf.mxu0
        %3402 = vmatprep.mubr.f32.mxu0 0.0
        %3403 = vmatmul.mubr.f32.gmra.mxu0 %v3251
        %v3404 = vpop.f32.mrf.mxu0
        %v3405 = vadd.f32 %v2904, %v3404
        %v3406 = vpop.f32.mrf.mxu0
        %3407 = vmatprep.mubr.f32.mxu0 0.0
        %3408 = vmatmul.mubr.f32.gmra.mxu0 %v3254
        %v3409 = vpop.f32.mrf.mxu0
        %v3410 = vadd.f32 %v2905, %v3409
        %v3411 = vpop.f32.mrf.mxu0
        %3412 = vmatprep.mubr.f32.mxu0 0.0
        %3413 = vmatmul.mubr.f32.gmra.mxu0 %v3257
        %v3414 = vpop.f32.mrf.mxu0
        %v3415 = vadd.f32 %v2906, %v3414
        %v3416 = vpop.f32.mrf.mxu0
        %3417 = vmatprep.mubr.f32.mxu0 0.0
        %3418 = vmatmul.mubr.f32.gmra.mxu0 %v3260
        %v3419 = vpop.f32.mrf.mxu0
        %v3420 = vadd.f32 %v2907, %v3419
        %v3421 = vpop.f32.mrf.mxu0
        %3422 = vmatprep.mubr.f32.mxu0 0.0
        %3423 = vmatmul.mubr.f32.gmra.mxu0 %v3263
        %v3424 = vpop.f32.mrf.mxu0
        %v3425 = vadd.f32 %v2908, %v3424
        %v3426 = vpop.f32.mrf.mxu0
        %3427 = vmatprep.mubr.f32.mxu0 0.0
        %3428 = vmatmul.mubr.f32.gmra.mxu0 %v3266
        %v3429 = vpop.f32.mrf.mxu0
        %v3430 = vadd.f32 %v2909, %v3429
        %v3431 = vpop.f32.mrf.mxu0
        %3432 = vmatprep.mubr.f32.mxu0 0.0
        %3433 = vmatmul.mubr.f32.gmra.mxu0 %v3269
        %v3434 = vpop.f32.mrf.mxu0
        %v3435 = vadd.f32 %v2910, %v3434
        %v3436 = vpop.f32.mrf.mxu0
        %3437 = vmatprep.mubr.f32.mxu0 0.0
        %3438 = vmatmul.mubr.f32.gmra.mxu0 %v3272
        %v3439 = vpop.f32.mrf.mxu0
        %v3440 = vadd.f32 %v2911, %v3439
        %v3441 = vpop.f32.mrf.mxu0
        %3442 = vmatprep.mubr.f32.mxu0 0.0
        %3443 = vmatmul.mubr.f32.gmra.mxu0 %v3275
        %v3444 = vpop.f32.mrf.mxu0
        %v3445 = vadd.f32 %v2912, %v3444
        %v3446 = vpop.f32.mrf.mxu0
        %3447 = vmatprep.mubr.f32.mxu0 0.0
        %3448 = vmatmul.mubr.f32.gmra.mxu0 %v3278
        %v3449 = vpop.f32.mrf.mxu0
        %v3450 = vadd.f32 %v2913, %v3449
        %v3451 = vpop.f32.mrf.mxu0
        %3452 = vmatprep.mubr.f32.mxu0 0.0
        %3453 = vmatmul.mubr.f32.gmra.mxu0 %v3281
        %v3454 = vpop.f32.mrf.mxu0
        %v3455 = vadd.f32 %v2914, %v3454
        %v3456 = vpop.f32.mrf.mxu0
        %3457 = vmatprep.mubr.f32.mxu0 0.0
        %3458 = vmatmul.mubr.f32.gmra.mxu0 %v3284
        %v3459 = vpop.f32.mrf.mxu0
        %v3460 = vadd.f32 %v2915, %v3459
        %v3461 = vpop.f32.mrf.mxu0
        %3462 = vdwg.mxu0
        %3479 = vrot.lane.b32.xlu0 %v2868, 96
        %v3480 = vpop.permute.xlu0 %3479
        %3481 = vrot.lane.b32.xlu0 %v2869, 96
        %v3482 = vpop.permute.xlu0 %3481
        %3483 = vrot.lane.b32.xlu0 %v2870, 96
        %v3484 = vpop.permute.xlu0 %3483
        %3485 = vrot.lane.b32.xlu0 %v2871, 96
        %v3486 = vpop.permute.xlu0 %3485
        %3487 = vrot.lane.b32.xlu0 %v2872, 96
        %v3488 = vpop.permute.xlu0 %3487
        %3489 = vrot.lane.b32.xlu0 %v2873, 96
        %v3490 = vpop.permute.xlu0 %3489
        %3491 = vrot.lane.b32.xlu0 %v2874, 96
        %v3492 = vpop.permute.xlu0 %3491
        %3493 = vrot.lane.b32.xlu0 %v2875, 96
        %v3494 = vpop.permute.xlu0 %3493
        %3495 = vrot.lane.b32.xlu0 %v2876, 96
        %v3496 = vpop.permute.xlu0 %3495
        %3497 = vrot.lane.b32.xlu0 %v2877, 96
        %v3498 = vpop.permute.xlu0 %3497
        %3499 = vrot.lane.b32.xlu0 %v2878, 96
        %v3500 = vpop.permute.xlu0 %3499
        %3501 = vrot.lane.b32.xlu0 %v2879, 96
        %v3502 = vpop.permute.xlu0 %3501
        %3503 = vrot.lane.b32.xlu0 %v2880, 96
        %v3504 = vpop.permute.xlu0 %3503
        %3505 = vrot.lane.b32.xlu0 %v2881, 96
        %v3506 = vpop.permute.xlu0 %3505
        %3507 = vrot.lane.b32.xlu0 %v2882, 96
        %v3508 = vpop.permute.xlu0 %3507
        %3509 = vrot.lane.b32.xlu0 %v2883, 96
        %v3510 = vpop.permute.xlu0 %3509
        %v3512 = vsel %vm2964, %v1908, 0
        %v3515 = vsel %vm2964, %v1909, 0
        %v3518 = vsel %vm2964, %v1910, 0
        %v3521 = vsel %vm2964, %v1911, 0
        %v3524 = vsel %vm2964, %v1912, 0
        %v3527 = vsel %vm2964, %v1913, 0
        %v3530 = vsel %vm2964, %v1914, 0
        %v3533 = vsel %vm2964, %v1915, 0
        %v3536 = vsel %vm2964, %v1916, 0
        %v3539 = vsel %vm2964, %v1917, 0
        %v3542 = vsel %vm2964, %v1918, 0
        %v3545 = vsel %vm2964, %v1919, 0
        %v3548 = vsel %vm2964, %v1920, 0
        %v3551 = vsel %vm2964, %v1921, 0
        %v3554 = vsel %vm2964, %v1922, 0
        %v3557 = vsel %vm2964, %v1923, 0
        %v3559 = vsel %vm2964, %v3480, 0
        %v3561 = vsel %vm2964, %v3482, 0
        %v3563 = vsel %vm2964, %v3484, 0
        %v3565 = vsel %vm2964, %v3486, 0
        %v3567 = vsel %vm2964, %v3488, 0
        %v3569 = vsel %vm2964, %v3490, 0
        %v3571 = vsel %vm2964, %v3492, 0
        %v3573 = vsel %vm2964, %v3494, 0
        %v3575 = vsel %vm2964, %v3496, 0
        %v3577 = vsel %vm2964, %v3498, 0
        %v3579 = vsel %vm2964, %v3500, 0
        %v3581 = vsel %vm2964, %v3502, 0
        %v3583 = vsel %vm2964, %v3504, 0
        %v3585 = vsel %vm2964, %v3506, 0
        %v3587 = vsel %vm2964, %v3508, 0
        %v3589 = vsel %vm2964, %v3510, 0
        %3591 = vmatprep.subr.mxu0 0.0
        %3592 = vmatpush1.xpose.msra.mxu0 %v3589
        %3593 = vmatprep.subr.mxu0 0.0
        %3594 = vmatpush1.xpose.msra.mxu0 %v3587
        %3595 = vmatprep.subr.mxu0 0.0
        %3596 = vmatpush1.xpose.msra.mxu0 %v3585
        %3597 = vmatprep.subr.mxu0 0.0
        %3598 = vmatpush1.xpose.msra.mxu0 %v3583
        %3599 = vmatprep.subr.mxu0 0.0
        %3600 = vmatpush1.xpose.msra.mxu0 %v3581
        %3601 = vmatprep.subr.mxu0 0.0
        %3602 = vmatpush1.xpose.msra.mxu0 %v3579
        %3603 = vmatprep.subr.mxu0 0.0
        %3604 = vmatpush1.xpose.msra.mxu0 %v3577
        %3605 = vmatprep.subr.mxu0 0.0
        %3606 = vmatpush1.xpose.msra.mxu0 %v3575
        %3607 = vmatprep.subr.mxu0 0.0
        %3608 = vmatpush1.xpose.msra.mxu0 %v3573
        %3609 = vmatprep.subr.mxu0 0.0
        %3610 = vmatpush1.xpose.msra.mxu0 %v3571
        %3611 = vmatprep.subr.mxu0 0.0
        %3612 = vmatpush1.xpose.msra.mxu0 %v3569
        %3613 = vmatprep.subr.mxu0 0.0
        %3614 = vmatpush1.xpose.msra.mxu0 %v3567
        %3615 = vmatprep.subr.mxu0 0.0
        %3616 = vmatpush1.xpose.msra.mxu0 %v3565
        %3617 = vmatprep.subr.mxu0 0.0
        %3618 = vmatpush1.xpose.msra.mxu0 %v3563
        %3619 = vmatprep.subr.mxu0 0.0
        %3620 = vmatpush1.xpose.msra.mxu0 %v3561
        %3621 = vmatprep.subr.mxu0 0.0
        %3622 = vmatpush1.xpose.msra.mxu0 %v3559
        %3623 = vmatprep.subr.mxu0 0.0
        %3624 = vmatpush2.xpose.msra.mxu0 0.0
        %3625 = vmatprep.subr.mxu0 0.0
        %3626 = vmatpush2.xpose.msra.mxu0 0.0
        %3627 = vmatprep.subr.mxu0 0.0
        %3628 = vmatpush2.xpose.msra.mxu0 0.0
        %3629 = vmatprep.subr.mxu0 0.0
        %3630 = vmatpush2.xpose.msra.mxu0 0.0
        %3631 = vmatprep.subr.mxu0 0.0
        %3632 = vmatpush2.xpose.msra.mxu0 0.0
        %3633 = vmatprep.subr.mxu0 0.0
        %3634 = vmatpush2.xpose.msra.mxu0 0.0
        %3635 = vmatprep.subr.mxu0 0.0
        %3636 = vmatpush2.xpose.msra.mxu0 0.0
        %3637 = vmatprep.subr.mxu0 0.0
        %3638 = vmatpush2.xpose.msra.mxu0 0.0
        %3639 = vmatprep.subr.mxu0 0.0
        %3640 = vmatpush2.xpose.msra.mxu0 0.0
        %3641 = vmatprep.subr.mxu0 0.0
        %3642 = vmatpush2.xpose.msra.mxu0 0.0
        %3643 = vmatprep.subr.mxu0 0.0
        %3644 = vmatpush2.xpose.msra.mxu0 0.0
        %3645 = vmatprep.subr.mxu0 0.0
        %3646 = vmatpush2.xpose.msra.mxu0 0.0
        %3647 = vmatprep.subr.mxu0 0.0
        %3648 = vmatpush2.xpose.msra.mxu0 0.0
        %3649 = vmatprep.subr.mxu0 0.0
        %3650 = vmatpush2.xpose.msra.mxu0 0.0
        %3651 = vmatprep.subr.mxu0 0.0
        %3652 = vmatpush2.xpose.msra.mxu0 0.0
        %3653 = vmatprep.subr.mxu0 0.0
        %3654 = vmatpush2.xpose.msra.mxu0 0.0
        %3655 = vmatprep.mubr.f32.mxu0 0.0
        %3656 = vmatmul.mubr.f32.gmra.mxu0 %v3512
        %v3657 = vpop.f32.mrf.mxu0
        %v3658 = vadd.f32 %v2900, %v3657
        %v3659 = vpop.f32.mrf.mxu0
        %3660 = vmatprep.mubr.f32.mxu0 0.0
        %3661 = vmatmul.mubr.f32.gmra.mxu0 %v3515
        %v3662 = vpop.f32.mrf.mxu0
        %v3663 = vadd.f32 %v2901, %v3662
        %v3664 = vpop.f32.mrf.mxu0
        %3665 = vmatprep.mubr.f32.mxu0 0.0
        %3666 = vmatmul.mubr.f32.gmra.mxu0 %v3518
        %v3667 = vpop.f32.mrf.mxu0
        %v3668 = vadd.f32 %v2902, %v3667
        %v3669 = vpop.f32.mrf.mxu0
        %3670 = vmatprep.mubr.f32.mxu0 0.0
        %3671 = vmatmul.mubr.f32.gmra.mxu0 %v3521
        %v3672 = vpop.f32.mrf.mxu0
        %v3673 = vadd.f32 %v2903, %v3672
        %v3674 = vpop.f32.mrf.mxu0
        %3675 = vmatprep.mubr.f32.mxu0 0.0
        %3676 = vmatmul.mubr.f32.gmra.mxu0 %v3524
        %v3677 = vpop.f32.mrf.mxu0
        %v3678 = vadd.f32 %v2904, %v3677
        %v3679 = vpop.f32.mrf.mxu0
        %3680 = vmatprep.mubr.f32.mxu0 0.0
        %3681 = vmatmul.mubr.f32.gmra.mxu0 %v3527
        %v3682 = vpop.f32.mrf.mxu0
        %v3683 = vadd.f32 %v2905, %v3682
        %v3684 = vpop.f32.mrf.mxu0
        %3685 = vmatprep.mubr.f32.mxu0 0.0
        %3686 = vmatmul.mubr.f32.gmra.mxu0 %v3530
        %v3687 = vpop.f32.mrf.mxu0
        %v3688 = vadd.f32 %v2906, %v3687
        %v3689 = vpop.f32.mrf.mxu0
        %3690 = vmatprep.mubr.f32.mxu0 0.0
        %3691 = vmatmul.mubr.f32.gmra.mxu0 %v3533
        %v3692 = vpop.f32.mrf.mxu0
        %v3693 = vadd.f32 %v2907, %v3692
        %v3694 = vpop.f32.mrf.mxu0
        %3695 = vmatprep.mubr.f32.mxu0 0.0
        %3696 = vmatmul.mubr.f32.gmra.mxu0 %v3536
        %v3697 = vpop.f32.mrf.mxu0
        %v3698 = vadd.f32 %v2908, %v3697
        %v3699 = vpop.f32.mrf.mxu0
        %3700 = vmatprep.mubr.f32.mxu0 0.0
        %3701 = vmatmul.mubr.f32.gmra.mxu0 %v3539
        %v3702 = vpop.f32.mrf.mxu0
        %v3703 = vadd.f32 %v2909, %v3702
        %v3704 = vpop.f32.mrf.mxu0
        %3705 = vmatprep.mubr.f32.mxu0 0.0
        %3706 = vmatmul.mubr.f32.gmra.mxu0 %v3542
        %v3707 = vpop.f32.mrf.mxu0
        %v3708 = vadd.f32 %v2910, %v3707
        %v3709 = vpop.f32.mrf.mxu0
        %3710 = vmatprep.mubr.f32.mxu0 0.0
        %3711 = vmatmul.mubr.f32.gmra.mxu0 %v3545
        %v3712 = vpop.f32.mrf.mxu0
        %v3713 = vadd.f32 %v2911, %v3712
        %v3714 = vpop.f32.mrf.mxu0
        %3715 = vmatprep.mubr.f32.mxu0 0.0
        %3716 = vmatmul.mubr.f32.gmra.mxu0 %v3548
        %v3717 = vpop.f32.mrf.mxu0
        %v3718 = vadd.f32 %v2912, %v3717
        %v3719 = vpop.f32.mrf.mxu0
        %3720 = vmatprep.mubr.f32.mxu0 0.0
        %3721 = vmatmul.mubr.f32.gmra.mxu0 %v3551
        %v3722 = vpop.f32.mrf.mxu0
        %v3723 = vadd.f32 %v2913, %v3722
        %v3724 = vpop.f32.mrf.mxu0
        %3725 = vmatprep.mubr.f32.mxu0 0.0
        %3726 = vmatmul.mubr.f32.gmra.mxu0 %v3554
        %v3727 = vpop.f32.mrf.mxu0
        %v3728 = vadd.f32 %v2914, %v3727
        %v3729 = vpop.f32.mrf.mxu0
        %3730 = vmatprep.mubr.f32.mxu0 0.0
        %3731 = vmatmul.mubr.f32.gmra.mxu0 %v3557
        %v3732 = vpop.f32.mrf.mxu0
        %v3733 = vadd.f32 %v2915, %v3732
        %v3734 = vpop.f32.mrf.mxu0
        %3735 = vdwg.mxu0
        %3752 = vrot.lane.b32.xlu0 %v2884, 96
        %v3753 = vpop.permute.xlu0 %3752
        %3754 = vrot.lane.b32.xlu0 %v2885, 96
        %v3755 = vpop.permute.xlu0 %3754
        %3756 = vrot.lane.b32.xlu0 %v2886, 96
        %v3757 = vpop.permute.xlu0 %3756
        %3758 = vrot.lane.b32.xlu0 %v2887, 96
        %v3759 = vpop.permute.xlu0 %3758
        %3760 = vrot.lane.b32.xlu0 %v2888, 96
        %v3761 = vpop.permute.xlu0 %3760
        %3762 = vrot.lane.b32.xlu0 %v2889, 96
        %v3763 = vpop.permute.xlu0 %3762
        %3764 = vrot.lane.b32.xlu0 %v2890, 96
        %v3765 = vpop.permute.xlu0 %3764
        %3766 = vrot.lane.b32.xlu0 %v2891, 96
        %v3767 = vpop.permute.xlu0 %3766
        %3768 = vrot.lane.b32.xlu0 %v2892, 96
        %v3769 = vpop.permute.xlu0 %3768
        %3770 = vrot.lane.b32.xlu0 %v2893, 96
        %v3771 = vpop.permute.xlu0 %3770
        %3772 = vrot.lane.b32.xlu0 %v2894, 96
        %v3773 = vpop.permute.xlu0 %3772
        %3774 = vrot.lane.b32.xlu0 %v2895, 96
        %v3775 = vpop.permute.xlu0 %3774
        %3776 = vrot.lane.b32.xlu0 %v2896, 96
        %v3777 = vpop.permute.xlu0 %3776
        %3778 = vrot.lane.b32.xlu0 %v2897, 96
        %v3779 = vpop.permute.xlu0 %3778
        %3780 = vrot.lane.b32.xlu0 %v2898, 96
        %v3781 = vpop.permute.xlu0 %3780
        %3782 = vrot.lane.b32.xlu0 %v2899, 96
        %v3783 = vpop.permute.xlu0 %3782
        %v3785 = vsel %vm2964, %v1924, 0
        %v3788 = vsel %vm2964, %v1925, 0
        %v3791 = vsel %vm2964, %v1926, 0
        %v3794 = vsel %vm2964, %v1927, 0
        %v3797 = vsel %vm2964, %v1928, 0
        %v3800 = vsel %vm2964, %v1929, 0
        %v3803 = vsel %vm2964, %v1930, 0
        %v3806 = vsel %vm2964, %v1931, 0
        %v3809 = vsel %vm2964, %v1932, 0
        %v3812 = vsel %vm2964, %v1933, 0
        %v3815 = vsel %vm2964, %v1934, 0
        %v3818 = vsel %vm2964, %v1935, 0
        %v3821 = vsel %vm2964, %v1936, 0
        %v3824 = vsel %vm2964, %v1937, 0
        %v3827 = vsel %vm2964, %v1938, 0
        %v3830 = vsel %vm2964, %v1939, 0
        %v3832 = vsel %vm2964, %v3753, 0
        %v3834 = vsel %vm2964, %v3755, 0
        %v3836 = vsel %vm2964, %v3757, 0
        %v3838 = vsel %vm2964, %v3759, 0
        %v3840 = vsel %vm2964, %v3761, 0
        %v3842 = vsel %vm2964, %v3763, 0
        %v3844 = vsel %vm2964, %v3765, 0
        %v3846 = vsel %vm2964, %v3767, 0
        %v3848 = vsel %vm2964, %v3769, 0
        %v3850 = vsel %vm2964, %v3771, 0
        %v3852 = vsel %vm2964, %v3773, 0
        %v3854 = vsel %vm2964, %v3775, 0
        %v3856 = vsel %vm2964, %v3777, 0
        %v3858 = vsel %vm2964, %v3779, 0
        %v3860 = vsel %vm2964, %v3781, 0
        %v3862 = vsel %vm2964, %v3783, 0
        %3864 = vmatprep.subr.mxu0 0.0
        %3865 = vmatpush1.xpose.msra.mxu0 %v3862
        %3866 = vmatprep.subr.mxu0 0.0
        %3867 = vmatpush1.xpose.msra.mxu0 %v3860
        %3868 = vmatprep.subr.mxu0 0.0
        %3869 = vmatpush1.xpose.msra.mxu0 %v3858
        %3870 = vmatprep.subr.mxu0 0.0
        %3871 = vmatpush1.xpose.msra.mxu0 %v3856
        %3872 = vmatprep.subr.mxu0 0.0
        %3873 = vmatpush1.xpose.msra.mxu0 %v3854
        %3874 = vmatprep.subr.mxu0 0.0
        %3875 = vmatpush1.xpose.msra.mxu0 %v3852
        %3876 = vmatprep.subr.mxu0 0.0
        %3877 = vmatpush1.xpose.msra.mxu0 %v3850
        %3878 = vmatprep.subr.mxu0 0.0
        %3879 = vmatpush1.xpose.msra.mxu0 %v3848
        %3880 = vmatprep.subr.mxu0 0.0
        %3881 = vmatpush1.xpose.msra.mxu0 %v3846
        %3882 = vmatprep.subr.mxu0 0.0
        %3883 = vmatpush1.xpose.msra.mxu0 %v3844
        %3884 = vmatprep.subr.mxu0 0.0
        %3885 = vmatpush1.xpose.msra.mxu0 %v3842
        %3886 = vmatprep.subr.mxu0 0.0
        %3887 = vmatpush1.xpose.msra.mxu0 %v3840
        %3888 = vmatprep.subr.mxu0 0.0
        %3889 = vmatpush1.xpose.msra.mxu0 %v3838
        %3890 = vmatprep.subr.mxu0 0.0
        %3891 = vmatpush1.xpose.msra.mxu0 %v3836
        %3892 = vmatprep.subr.mxu0 0.0
        %3893 = vmatpush1.xpose.msra.mxu0 %v3834
        %3894 = vmatprep.subr.mxu0 0.0
        %3895 = vmatpush1.xpose.msra.mxu0 %v3832
        %3896 = vmatprep.subr.mxu0 0.0
        %3897 = vmatpush2.xpose.msra.mxu0 0.0
        %3898 = vmatprep.subr.mxu0 0.0
        %3899 = vmatpush2.xpose.msra.mxu0 0.0
        %3900 = vmatprep.subr.mxu0 0.0
        %3901 = vmatpush2.xpose.msra.mxu0 0.0
        %3902 = vmatprep.subr.mxu0 0.0
        %3903 = vmatpush2.xpose.msra.mxu0 0.0
        %3904 = vmatprep.subr.mxu0 0.0
        %3905 = vmatpush2.xpose.msra.mxu0 0.0
        %3906 = vmatprep.subr.mxu0 0.0
        %3907 = vmatpush2.xpose.msra.mxu0 0.0
        %3908 = vmatprep.subr.mxu0 0.0
        %3909 = vmatpush2.xpose.msra.mxu0 0.0
        %3910 = vmatprep.subr.mxu0 0.0
        %3911 = vmatpush2.xpose.msra.mxu0 0.0
        %3912 = vmatprep.subr.mxu0 0.0
        %3913 = vmatpush2.xpose.msra.mxu0 0.0
        %3914 = vmatprep.subr.mxu0 0.0
        %3915 = vmatpush2.xpose.msra.mxu0 0.0
        %3916 = vmatprep.subr.mxu0 0.0
        %3917 = vmatpush2.xpose.msra.mxu0 0.0
        %3918 = vmatprep.subr.mxu0 0.0
        %3919 = vmatpush2.xpose.msra.mxu0 0.0
        %3920 = vmatprep.subr.mxu0 0.0
        %3921 = vmatpush2.xpose.msra.mxu0 0.0
        %3922 = vmatprep.subr.mxu0 0.0
        %3923 = vmatpush2.xpose.msra.mxu0 0.0
        %3924 = vmatprep.subr.mxu0 0.0
        %3925 = vmatpush2.xpose.msra.mxu0 0.0
        %3926 = vmatprep.subr.mxu0 0.0
        %3927 = vmatpush2.xpose.msra.mxu0 0.0
        %3928 = vmatprep.mubr.f32.mxu0 0.0
        %3929 = vmatmul.mubr.f32.gmra.mxu0 %v3785
        %v3930 = vpop.f32.mrf.mxu0
        %v3931 = vadd.f32 %v2900, %v3930
        %v3932 = vpop.f32.mrf.mxu0
        %3933 = vmatprep.mubr.f32.mxu0 0.0
        %3934 = vmatmul.mubr.f32.gmra.mxu0 %v3788
        %v3935 = vpop.f32.mrf.mxu0
        %v3936 = vadd.f32 %v2901, %v3935
        %v3937 = vpop.f32.mrf.mxu0
        %3938 = vmatprep.mubr.f32.mxu0 0.0
        %3939 = vmatmul.mubr.f32.gmra.mxu0 %v3791
        %v3940 = vpop.f32.mrf.mxu0
        %v3941 = vadd.f32 %v2902, %v3940
        %v3942 = vpop.f32.mrf.mxu0
        %3943 = vmatprep.mubr.f32.mxu0 0.0
        %3944 = vmatmul.mubr.f32.gmra.mxu0 %v3794
        %v3945 = vpop.f32.mrf.mxu0
        %v3946 = vadd.f32 %v2903, %v3945
        %v3947 = vpop.f32.mrf.mxu0
        %3948 = vmatprep.mubr.f32.mxu0 0.0
        %3949 = vmatmul.mubr.f32.gmra.mxu0 %v3797
        %v3950 = vpop.f32.mrf.mxu0
        %v3951 = vadd.f32 %v2904, %v3950
        %v3952 = vpop.f32.mrf.mxu0
        %3953 = vmatprep.mubr.f32.mxu0 0.0
        %3954 = vmatmul.mubr.f32.gmra.mxu0 %v3800
        %v3955 = vpop.f32.mrf.mxu0
        %v3956 = vadd.f32 %v2905, %v3955
        %v3957 = vpop.f32.mrf.mxu0
        %3958 = vmatprep.mubr.f32.mxu0 0.0
        %3959 = vmatmul.mubr.f32.gmra.mxu0 %v3803
        %v3960 = vpop.f32.mrf.mxu0
        %v3961 = vadd.f32 %v2906, %v3960
        %v3962 = vpop.f32.mrf.mxu0
        %3963 = vmatprep.mubr.f32.mxu0 0.0
        %3964 = vmatmul.mubr.f32.gmra.mxu0 %v3806
        %v3965 = vpop.f32.mrf.mxu0
        %v3966 = vadd.f32 %v2907, %v3965
        %v3967 = vpop.f32.mrf.mxu0
        %3968 = vmatprep.mubr.f32.mxu0 0.0
        %3969 = vmatmul.mubr.f32.gmra.mxu0 %v3809
        %v3970 = vpop.f32.mrf.mxu0
        %v3971 = vadd.f32 %v2908, %v3970
        %v3972 = vpop.f32.mrf.mxu0
        %3973 = vmatprep.mubr.f32.mxu0 0.0
        %3974 = vmatmul.mubr.f32.gmra.mxu0 %v3812
        %v3975 = vpop.f32.mrf.mxu0
        %v3976 = vadd.f32 %v2909, %v3975
        %v3977 = vpop.f32.mrf.mxu0
        %3978 = vmatprep.mubr.f32.mxu0 0.0
        %3979 = vmatmul.mubr.f32.gmra.mxu0 %v3815
        %v3980 = vpop.f32.mrf.mxu0
        %v3981 = vadd.f32 %v2910, %v3980
        %v3982 = vpop.f32.mrf.mxu0
        %3983 = vmatprep.mubr.f32.mxu0 0.0
        %3984 = vmatmul.mubr.f32.gmra.mxu0 %v3818
        %v3985 = vpop.f32.mrf.mxu0
        %v3986 = vadd.f32 %v2911, %v3985
        %v3987 = vpop.f32.mrf.mxu0
        %3988 = vmatprep.mubr.f32.mxu0 0.0
        %3989 = vmatmul.mubr.f32.gmra.mxu0 %v3821
        %v3990 = vpop.f32.mrf.mxu0
        %v3991 = vadd.f32 %v2912, %v3990
        %v3992 = vpop.f32.mrf.mxu0
        %3993 = vmatprep.mubr.f32.mxu0 0.0
        %3994 = vmatmul.mubr.f32.gmra.mxu0 %v3824
        %v3995 = vpop.f32.mrf.mxu0
        %v3996 = vadd.f32 %v2913, %v3995
        %v3997 = vpop.f32.mrf.mxu0
        %3998 = vmatprep.mubr.f32.mxu0 0.0
        %3999 = vmatmul.mubr.f32.gmra.mxu0 %v3827
        %v4000 = vpop.f32.mrf.mxu0
        %v4001 = vadd.f32 %v2914, %v4000
        %v4002 = vpop.f32.mrf.mxu0
        %4003 = vmatprep.mubr.f32.mxu0 0.0
        %4004 = vmatmul.mubr.f32.gmra.mxu0 %v3830
        %v4005 = vpop.f32.mrf.mxu0
        %v4006 = vadd.f32 %v2915, %v4005
        %v4007 = vpop.f32.mrf.mxu0
        %4008 = vdwg.mxu0
        %4009 = vmax.xlane.f32.xlu0 %v3112
        %v4010 = vpop.xlane.xlu0 %4009
        %4011 = vmax.xlane.f32.xlu0 %v3117
        %v4012 = vpop.xlane.xlu0 %4011
        %4013 = vmax.xlane.f32.xlu0 %v3122
        %v4014 = vpop.xlane.xlu0 %4013
        %4015 = vmax.xlane.f32.xlu0 %v3127
        %v4016 = vpop.xlane.xlu0 %4015
        %4017 = vmax.xlane.f32.xlu0 %v3132
        %v4018 = vpop.xlane.xlu0 %4017
        %4019 = vmax.xlane.f32.xlu0 %v3137
        %v4020 = vpop.xlane.xlu0 %4019
        %4021 = vmax.xlane.f32.xlu0 %v3142
        %v4022 = vpop.xlane.xlu0 %4021
        %4023 = vmax.xlane.f32.xlu0 %v3147
        %v4024 = vpop.xlane.xlu0 %4023
        %4025 = vmax.xlane.f32.xlu0 %v3152
        %v4026 = vpop.xlane.xlu0 %4025
        %4027 = vmax.xlane.f32.xlu0 %v3157
        %v4028 = vpop.xlane.xlu0 %4027
        %4029 = vmax.xlane.f32.xlu0 %v3162
        %v4030 = vpop.xlane.xlu0 %4029
        %4031 = vmax.xlane.f32.xlu0 %v3167
        %v4032 = vpop.xlane.xlu0 %4031
        %4033 = vmax.xlane.f32.xlu0 %v3172
        %v4034 = vpop.xlane.xlu0 %4033
        %4035 = vmax.xlane.f32.xlu0 %v3177
        %v4036 = vpop.xlane.xlu0 %4035
        %4037 = vmax.xlane.f32.xlu0 %v3182
        %v4038 = vpop.xlane.xlu0 %4037
        %4039 = vmax.xlane.f32.xlu0 %v3187
        %v4040 = vpop.xlane.xlu0 %4039
        %4041 = vmax.xlane.f32.xlu0 %v3385
        %v4042 = vpop.xlane.xlu0 %4041
        %4043 = vmax.xlane.f32.xlu0 %v3390
        %v4044 = vpop.xlane.xlu0 %4043
        %4045 = vmax.xlane.f32.xlu0 %v3395
        %v4046 = vpop.xlane.xlu0 %4045
        %4047 = vmax.xlane.f32.xlu0 %v3400
        %v4048 = vpop.xlane.xlu0 %4047
        %4049 = vmax.xlane.f32.xlu0 %v3405
        %v4050 = vpop.xlane.xlu0 %4049
        %4051 = vmax.xlane.f32.xlu0 %v3410
        %v4052 = vpop.xlane.xlu0 %4051
        %4053 = vmax.xlane.f32.xlu0 %v3415
        %v4054 = vpop.xlane.xlu0 %4053
        %4055 = vmax.xlane.f32.xlu0 %v3420
        %v4056 = vpop.xlane.xlu0 %4055
        %4057 = vmax.xlane.f32.xlu0 %v3425
        %v4058 = vpop.xlane.xlu0 %4057
        %4059 = vmax.xlane.f32.xlu0 %v3430
        %v4060 = vpop.xlane.xlu0 %4059
        %4061 = vmax.xlane.f32.xlu0 %v3435
        %v4062 = vpop.xlane.xlu0 %4061
        %4063 = vmax.xlane.f32.xlu0 %v3440
        %v4064 = vpop.xlane.xlu0 %4063
        %4065 = vmax.xlane.f32.xlu0 %v3445
        %v4066 = vpop.xlane.xlu0 %4065
        %4067 = vmax.xlane.f32.xlu0 %v3450
        %v4068 = vpop.xlane.xlu0 %4067
        %4069 = vmax.xlane.f32.xlu0 %v3455
        %v4070 = vpop.xlane.xlu0 %4069
        %4071 = vmax.xlane.f32.xlu0 %v3460
        %v4072 = vpop.xlane.xlu0 %4071
        %4073 = vmax.xlane.f32.xlu0 %v3658
        %v4074 = vpop.xlane.xlu0 %4073
        %4075 = vmax.xlane.f32.xlu0 %v3663
        %v4076 = vpop.xlane.xlu0 %4075
        %4077 = vmax.xlane.f32.xlu0 %v3668
        %v4078 = vpop.xlane.xlu0 %4077
        %4079 = vmax.xlane.f32.xlu0 %v3673
        %v4080 = vpop.xlane.xlu0 %4079
        %4081 = vmax.xlane.f32.xlu0 %v3678
        %v4082 = vpop.xlane.xlu0 %4081
        %4083 = vmax.xlane.f32.xlu0 %v3683
        %v4084 = vpop.xlane.xlu0 %4083
        %4085 = vmax.xlane.f32.xlu0 %v3688
        %v4086 = vpop.xlane.xlu0 %4085
        %4087 = vmax.xlane.f32.xlu0 %v3693
        %v4088 = vpop.xlane.xlu0 %4087
        %4089 = vmax.xlane.f32.xlu0 %v3698
        %v4090 = vpop.xlane.xlu0 %4089
        %4091 = vmax.xlane.f32.xlu0 %v3703
        %v4092 = vpop.xlane.xlu0 %4091
        %4093 = vmax.xlane.f32.xlu0 %v3708
        %v4094 = vpop.xlane.xlu0 %4093
        %4095 = vmax.xlane.f32.xlu0 %v3713
        %v4096 = vpop.xlane.xlu0 %4095
        %4097 = vmax.xlane.f32.xlu0 %v3718
        %v4098 = vpop.xlane.xlu0 %4097
        %4099 = vmax.xlane.f32.xlu0 %v3723
        %v4100 = vpop.xlane.xlu0 %4099
        %4101 = vmax.xlane.f32.xlu0 %v3728
        %v4102 = vpop.xlane.xlu0 %4101
        %4103 = vmax.xlane.f32.xlu0 %v3733
        %v4104 = vpop.xlane.xlu0 %4103
        %4105 = vmax.xlane.f32.xlu0 %v3931
        %v4106 = vpop.xlane.xlu0 %4105
        %4107 = vmax.xlane.f32.xlu0 %v3936
        %v4108 = vpop.xlane.xlu0 %4107
        %4109 = vmax.xlane.f32.xlu0 %v3941
        %v4110 = vpop.xlane.xlu0 %4109
        %4111 = vmax.xlane.f32.xlu0 %v3946
        %v4112 = vpop.xlane.xlu0 %4111
        %4113 = vmax.xlane.f32.xlu0 %v3951
        %v4114 = vpop.xlane.xlu0 %4113
        %4115 = vmax.xlane.f32.xlu0 %v3956
        %v4116 = vpop.xlane.xlu0 %4115
        %4117 = vmax.xlane.f32.xlu0 %v3961
        %v4118 = vpop.xlane.xlu0 %4117
        %4119 = vmax.xlane.f32.xlu0 %v3966
        %v4120 = vpop.xlane.xlu0 %4119
        %4121 = vmax.xlane.f32.xlu0 %v3971
        %v4122 = vpop.xlane.xlu0 %4121
        %4123 = vmax.xlane.f32.xlu0 %v3976
        %v4124 = vpop.xlane.xlu0 %4123
        %4125 = vmax.xlane.f32.xlu0 %v3981
        %v4126 = vpop.xlane.xlu0 %4125
        %4127 = vmax.xlane.f32.xlu0 %v3986
        %v4128 = vpop.xlane.xlu0 %4127
        %4129 = vmax.xlane.f32.xlu0 %v3991
        %v4130 = vpop.xlane.xlu0 %4129
        %4131 = vmax.xlane.f32.xlu0 %v3996
        %v4132 = vpop.xlane.xlu0 %4131
        %4133 = vmax.xlane.f32.xlu0 %v4001
        %v4134 = vpop.xlane.xlu0 %4133
        %4135 = vmax.xlane.f32.xlu0 %v4006
        %v4136 = vpop.xlane.xlu0 %4135
        %v4137 = vsub.f32 %v3112, %v4010
        %v4138 = vsub.f32 %v3117, %v4012
        %v4139 = vsub.f32 %v3122, %v4014
        %v4140 = vsub.f32 %v3127, %v4016
        %v4141 = vsub.f32 %v3132, %v4018
        %v4142 = vsub.f32 %v3137, %v4020
        %v4143 = vsub.f32 %v3142, %v4022
        %v4144 = vsub.f32 %v3147, %v4024
        %v4145 = vsub.f32 %v3152, %v4026
        %v4146 = vsub.f32 %v3157, %v4028
        %v4147 = vsub.f32 %v3162, %v4030
        %v4148 = vsub.f32 %v3167, %v4032
        %v4149 = vsub.f32 %v3172, %v4034
        %v4150 = vsub.f32 %v3177, %v4036
        %v4151 = vsub.f32 %v3182, %v4038
        %v4152 = vsub.f32 %v3187, %v4040
        %v4153 = vsub.f32 %v3385, %v4042
        %v4154 = vsub.f32 %v3390, %v4044
        %v4155 = vsub.f32 %v3395, %v4046
        %v4156 = vsub.f32 %v3400, %v4048
        %v4157 = vsub.f32 %v3405, %v4050
        %v4158 = vsub.f32 %v3410, %v4052
        %v4159 = vsub.f32 %v3415, %v4054
        %v4160 = vsub.f32 %v3420, %v4056
        %v4161 = vsub.f32 %v3425, %v4058
        %v4162 = vsub.f32 %v3430, %v4060
        %v4163 = vsub.f32 %v3435, %v4062
        %v4164 = vsub.f32 %v3440, %v4064
        %v4165 = vsub.f32 %v3445, %v4066
        %v4166 = vsub.f32 %v3450, %v4068
        %v4167 = vsub.f32 %v3455, %v4070
        %v4168 = vsub.f32 %v3460, %v4072
        %v4169 = vsub.f32 %v3658, %v4074
        %v4170 = vsub.f32 %v3663, %v4076
        %v4171 = vsub.f32 %v3668, %v4078
        %v4172 = vsub.f32 %v3673, %v4080
        %v4173 = vsub.f32 %v3678, %v4082
        %v4174 = vsub.f32 %v3683, %v4084
        %v4175 = vsub.f32 %v3688, %v4086
        %v4176 = vsub.f32 %v3693, %v4088
        %v4177 = vsub.f32 %v3698, %v4090
        %v4178 = vsub.f32 %v3703, %v4092
        %v4179 = vsub.f32 %v3708, %v4094
        %v4180 = vsub.f32 %v3713, %v4096
        %v4181 = vsub.f32 %v3718, %v4098
        %v4182 = vsub.f32 %v3723, %v4100
        %v4183 = vsub.f32 %v3728, %v4102
        %v4184 = vsub.f32 %v3733, %v4104
        %v4185 = vsub.f32 %v3931, %v4106
        %v4186 = vsub.f32 %v3936, %v4108
        %v4187 = vsub.f32 %v3941, %v4110
        %v4188 = vsub.f32 %v3946, %v4112
        %v4189 = vsub.f32 %v3951, %v4114
        %v4190 = vsub.f32 %v3956, %v4116
        %v4191 = vsub.f32 %v3961, %v4118
        %v4192 = vsub.f32 %v3966, %v4120
        %v4193 = vsub.f32 %v3971, %v4122
        %v4194 = vsub.f32 %v3976, %v4124
        %v4195 = vsub.f32 %v3981, %v4126
        %v4196 = vsub.f32 %v3986, %v4128
        %v4197 = vsub.f32 %v3991, %v4130
        %v4198 = vsub.f32 %v3996, %v4132
        %v4199 = vsub.f32 %v4001, %v4134
        %v4200 = vsub.f32 %v4006, %v4136
        %v4201 = vmul.f32 %v4137, 1.442695
        %v4202 = vpow.pop %v4201
        %v4203 = vmul.f32 %v4138, 1.442695
        %v4204 = vpow.pop %v4203
        %v4205 = vmul.f32 %v4139, 1.442695
        %v4206 = vpow.pop %v4205
        %v4207 = vmul.f32 %v4140, 1.442695
        %v4208 = vpow.pop %v4207
        %v4209 = vmul.f32 %v4141, 1.442695
        %v4210 = vpow.pop %v4209
        %v4211 = vmul.f32 %v4142, 1.442695
        %v4212 = vpow.pop %v4211
        %v4213 = vmul.f32 %v4143, 1.442695
        %v4214 = vpow.pop %v4213
        %v4215 = vmul.f32 %v4144, 1.442695
        %v4216 = vpow.pop %v4215
        %v4217 = vmul.f32 %v4145, 1.442695
        %v4218 = vpow.pop %v4217
        %v4219 = vmul.f32 %v4146, 1.442695
        %v4220 = vpow.pop %v4219
        %v4221 = vmul.f32 %v4147, 1.442695
        %v4222 = vpow.pop %v4221
        %v4223 = vmul.f32 %v4148, 1.442695
        %v4224 = vpow.pop %v4223
        %v4225 = vmul.f32 %v4149, 1.442695
        %v4226 = vpow.pop %v4225
        %v4227 = vmul.f32 %v4150, 1.442695
        %v4228 = vpow.pop %v4227
        %v4229 = vmul.f32 %v4151, 1.442695
        %v4230 = vpow.pop %v4229
        %v4231 = vmul.f32 %v4152, 1.442695
        %v4232 = vpow.pop %v4231
        %v4233 = vmul.f32 %v4153, 1.442695
        %v4234 = vpow.pop %v4233
        %v4235 = vmul.f32 %v4154, 1.442695
        %v4236 = vpow.pop %v4235
        %v4237 = vmul.f32 %v4155, 1.442695
        %v4238 = vpow.pop %v4237
        %v4239 = vmul.f32 %v4156, 1.442695
        %v4240 = vpow.pop %v4239
        %v4241 = vmul.f32 %v4157, 1.442695
        %v4242 = vpow.pop %v4241
        %v4243 = vmul.f32 %v4158, 1.442695
        %v4244 = vpow.pop %v4243
        %v4245 = vmul.f32 %v4159, 1.442695
        %v4246 = vpow.pop %v4245
        %v4247 = vmul.f32 %v4160, 1.442695
        %v4248 = vpow.pop %v4247
        %v4249 = vmul.f32 %v4161, 1.442695
        %v4250 = vpow.pop %v4249
        %v4251 = vmul.f32 %v4162, 1.442695
        %v4252 = vpow.pop %v4251
        %v4253 = vmul.f32 %v4163, 1.442695
        %v4254 = vpow.pop %v4253
        %v4255 = vmul.f32 %v4164, 1.442695
        %v4256 = vpow.pop %v4255
        %v4257 = vmul.f32 %v4165, 1.442695
        %v4258 = vpow.pop %v4257
        %v4259 = vmul.f32 %v4166, 1.442695
        %v4260 = vpow.pop %v4259
        %v4261 = vmul.f32 %v4167, 1.442695
        %v4262 = vpow.pop %v4261
        %v4263 = vmul.f32 %v4168, 1.442695
        %v4264 = vpow.pop %v4263
        %v4265 = vmul.f32 %v4169, 1.442695
        %v4266 = vpow.pop %v4265
        %v4267 = vmul.f32 %v4170, 1.442695
        %v4268 = vpow.pop %v4267
        %v4269 = vmul.f32 %v4171, 1.442695
        %v4270 = vpow.pop %v4269
        %v4271 = vmul.f32 %v4172, 1.442695
        %v4272 = vpow.pop %v4271
        %v4273 = vmul.f32 %v4173, 1.442695
        %v4274 = vpow.pop %v4273
        %v4275 = vmul.f32 %v4174, 1.442695
        %v4276 = vpow.pop %v4275
        %v4277 = vmul.f32 %v4175, 1.442695
        %v4278 = vpow.pop %v4277
        %v4279 = vmul.f32 %v4176, 1.442695
        %v4280 = vpow.pop %v4279
        %v4281 = vmul.f32 %v4177, 1.442695
        %v4282 = vpow.pop %v4281
        %v4283 = vmul.f32 %v4178, 1.442695
        %v4284 = vpow.pop %v4283
        %v4285 = vmul.f32 %v4179, 1.442695
        %v4286 = vpow.pop %v4285
        %v4287 = vmul.f32 %v4180, 1.442695
        %v4288 = vpow.pop %v4287
        %v4289 = vmul.f32 %v4181, 1.442695
        %v4290 = vpow.pop %v4289
        %v4291 = vmul.f32 %v4182, 1.442695
        %v4292 = vpow.pop %v4291
        %v4293 = vmul.f32 %v4183, 1.442695
        %v4294 = vpow.pop %v4293
        %v4295 = vmul.f32 %v4184, 1.442695
        %v4296 = vpow.pop %v4295
        %v4297 = vmul.f32 %v4185, 1.442695
        %v4298 = vpow.pop %v4297
        %v4299 = vmul.f32 %v4186, 1.442695
        %v4300 = vpow.pop %v4299
        %v4301 = vmul.f32 %v4187, 1.442695
        %v4302 = vpow.pop %v4301
        %v4303 = vmul.f32 %v4188, 1.442695
        %v4304 = vpow.pop %v4303
        %v4305 = vmul.f32 %v4189, 1.442695
        %v4306 = vpow.pop %v4305
        %v4307 = vmul.f32 %v4190, 1.442695
        %v4308 = vpow.pop %v4307
        %v4309 = vmul.f32 %v4191, 1.442695
        %v4310 = vpow.pop %v4309
        %v4311 = vmul.f32 %v4192, 1.442695
        %v4312 = vpow.pop %v4311
        %v4313 = vmul.f32 %v4193, 1.442695
        %v4314 = vpow.pop %v4313
        %v4315 = vmul.f32 %v4194, 1.442695
        %v4316 = vpow.pop %v4315
        %v4317 = vmul.f32 %v4195, 1.442695
        %v4318 = vpow.pop %v4317
        %v4319 = vmul.f32 %v4196, 1.442695
        %v4320 = vpow.pop %v4319
        %v4321 = vmul.f32 %v4197, 1.442695
        %v4322 = vpow.pop %v4321
        %v4323 = vmul.f32 %v4198, 1.442695
        %v4324 = vpow.pop %v4323
        %v4325 = vmul.f32 %v4199, 1.442695
        %v4326 = vpow.pop %v4325
        %v4327 = vmul.f32 %v4200, 1.442695
        %v4328 = vpow.pop %v4327
        %4329 = vadd.xlane.f32.xlu0 %v4202
        %v4330 = vpop.xlane.xlu0 %4329
        %4331 = vadd.xlane.f32.xlu0 %v4204
        %v4332 = vpop.xlane.xlu0 %4331
        %4333 = vadd.xlane.f32.xlu0 %v4206
        %v4334 = vpop.xlane.xlu0 %4333
        %4335 = vadd.xlane.f32.xlu0 %v4208
        %v4336 = vpop.xlane.xlu0 %4335
        %4337 = vadd.xlane.f32.xlu0 %v4210
        %v4338 = vpop.xlane.xlu0 %4337
        %4339 = vadd.xlane.f32.xlu0 %v4212
        %v4340 = vpop.xlane.xlu0 %4339
        %4341 = vadd.xlane.f32.xlu0 %v4214
        %v4342 = vpop.xlane.xlu0 %4341
        %4343 = vadd.xlane.f32.xlu0 %v4216
        %v4344 = vpop.xlane.xlu0 %4343
        %4345 = vadd.xlane.f32.xlu0 %v4218
        %v4346 = vpop.xlane.xlu0 %4345
        %4347 = vadd.xlane.f32.xlu0 %v4220
        %v4348 = vpop.xlane.xlu0 %4347
        %4349 = vadd.xlane.f32.xlu0 %v4222
        %v4350 = vpop.xlane.xlu0 %4349
        %4351 = vadd.xlane.f32.xlu0 %v4224
        %v4352 = vpop.xlane.xlu0 %4351
        %4353 = vadd.xlane.f32.xlu0 %v4226
        %v4354 = vpop.xlane.xlu0 %4353
        %4355 = vadd.xlane.f32.xlu0 %v4228
        %v4356 = vpop.xlane.xlu0 %4355
        %4357 = vadd.xlane.f32.xlu0 %v4230
        %v4358 = vpop.xlane.xlu0 %4357
        %4359 = vadd.xlane.f32.xlu0 %v4232
        %v4360 = vpop.xlane.xlu0 %4359
        %4361 = vadd.xlane.f32.xlu0 %v4234
        %v4362 = vpop.xlane.xlu0 %4361
        %4363 = vadd.xlane.f32.xlu0 %v4236
        %v4364 = vpop.xlane.xlu0 %4363
        %4365 = vadd.xlane.f32.xlu0 %v4238
        %v4366 = vpop.xlane.xlu0 %4365
        %4367 = vadd.xlane.f32.xlu0 %v4240
        %v4368 = vpop.xlane.xlu0 %4367
        %4369 = vadd.xlane.f32.xlu0 %v4242
        %v4370 = vpop.xlane.xlu0 %4369
        %4371 = vadd.xlane.f32.xlu0 %v4244
        %v4372 = vpop.xlane.xlu0 %4371
        %4373 = vadd.xlane.f32.xlu0 %v4246
        %v4374 = vpop.xlane.xlu0 %4373
        %4375 = vadd.xlane.f32.xlu0 %v4248
        %v4376 = vpop.xlane.xlu0 %4375
        %4377 = vadd.xlane.f32.xlu0 %v4250
        %v4378 = vpop.xlane.xlu0 %4377
        %4379 = vadd.xlane.f32.xlu0 %v4252
        %v4380 = vpop.xlane.xlu0 %4379
        %4381 = vadd.xlane.f32.xlu0 %v4254
        %v4382 = vpop.xlane.xlu0 %4381
        %4383 = vadd.xlane.f32.xlu0 %v4256
        %v4384 = vpop.xlane.xlu0 %4383
        %4385 = vadd.xlane.f32.xlu0 %v4258
        %v4386 = vpop.xlane.xlu0 %4385
        %4387 = vadd.xlane.f32.xlu0 %v4260
        %v4388 = vpop.xlane.xlu0 %4387
        %4389 = vadd.xlane.f32.xlu0 %v4262
        %v4390 = vpop.xlane.xlu0 %4389
        %4391 = vadd.xlane.f32.xlu0 %v4264
        %v4392 = vpop.xlane.xlu0 %4391
        %4393 = vadd.xlane.f32.xlu0 %v4266
        %v4394 = vpop.xlane.xlu0 %4393
        %4395 = vadd.xlane.f32.xlu0 %v4268
        %v4396 = vpop.xlane.xlu0 %4395
        %4397 = vadd.xlane.f32.xlu0 %v4270
        %v4398 = vpop.xlane.xlu0 %4397
        %4399 = vadd.xlane.f32.xlu0 %v4272
        %v4400 = vpop.xlane.xlu0 %4399
        %4401 = vadd.xlane.f32.xlu0 %v4274
        %v4402 = vpop.xlane.xlu0 %4401
        %4403 = vadd.xlane.f32.xlu0 %v4276
        %v4404 = vpop.xlane.xlu0 %4403
        %4405 = vadd.xlane.f32.xlu0 %v4278
        %v4406 = vpop.xlane.xlu0 %4405
        %4407 = vadd.xlane.f32.xlu0 %v4280
        %v4408 = vpop.xlane.xlu0 %4407
        %4409 = vadd.xlane.f32.xlu0 %v4282
        %v4410 = vpop.xlane.xlu0 %4409
        %4411 = vadd.xlane.f32.xlu0 %v4284
        %v4412 = vpop.xlane.xlu0 %4411
        %4413 = vadd.xlane.f32.xlu0 %v4286
        %v4414 = vpop.xlane.xlu0 %4413
        %4415 = vadd.xlane.f32.xlu0 %v4288
        %v4416 = vpop.xlane.xlu0 %4415
        %4417 = vadd.xlane.f32.xlu0 %v4290
        %v4418 = vpop.xlane.xlu0 %4417
        %4419 = vadd.xlane.f32.xlu0 %v4292
        %v4420 = vpop.xlane.xlu0 %4419
        %4421 = vadd.xlane.f32.xlu0 %v4294
        %v4422 = vpop.xlane.xlu0 %4421
        %4423 = vadd.xlane.f32.xlu0 %v4296
        %v4424 = vpop.xlane.xlu0 %4423
        %4425 = vadd.xlane.f32.xlu0 %v4298
        %v4426 = vpop.xlane.xlu0 %4425
        %4427 = vadd.xlane.f32.xlu0 %v4300
        %v4428 = vpop.xlane.xlu0 %4427
        %4429 = vadd.xlane.f32.xlu0 %v4302
        %v4430 = vpop.xlane.xlu0 %4429
        %4431 = vadd.xlane.f32.xlu0 %v4304
        %v4432 = vpop.xlane.xlu0 %4431
        %4433 = vadd.xlane.f32.xlu0 %v4306
        %v4434 = vpop.xlane.xlu0 %4433
        %4435 = vadd.xlane.f32.xlu0 %v4308
        %v4436 = vpop.xlane.xlu0 %4435
        %4437 = vadd.xlane.f32.xlu0 %v4310
        %v4438 = vpop.xlane.xlu0 %4437
        %4439 = vadd.xlane.f32.xlu0 %v4312
        %v4440 = vpop.xlane.xlu0 %4439
        %4441 = vadd.xlane.f32.xlu0 %v4314
        %v4442 = vpop.xlane.xlu0 %4441
        %4443 = vadd.xlane.f32.xlu0 %v4316
        %v4444 = vpop.xlane.xlu0 %4443
        %4445 = vadd.xlane.f32.xlu0 %v4318
        %v4446 = vpop.xlane.xlu0 %4445
        %4447 = vadd.xlane.f32.xlu0 %v4320
        %v4448 = vpop.xlane.xlu0 %4447
        %4449 = vadd.xlane.f32.xlu0 %v4322
        %v4450 = vpop.xlane.xlu0 %4449
        %4451 = vadd.xlane.f32.xlu0 %v4324
        %v4452 = vpop.xlane.xlu0 %4451
        %4453 = vadd.xlane.f32.xlu0 %v4326
        %v4454 = vpop.xlane.xlu0 %4453
        %4455 = vadd.xlane.f32.xlu0 %v4328
        %v4456 = vpop.xlane.xlu0 %4455
        %v4457 = vrcp.pop %v4330
        %v4458 = vrcp.pop %v4332
        %v4459 = vrcp.pop %v4334
        %v4460 = vrcp.pop %v4336
        %v4461 = vrcp.pop %v4338
        %v4462 = vrcp.pop %v4340
        %v4463 = vrcp.pop %v4342
        %v4464 = vrcp.pop %v4344
        %v4465 = vrcp.pop %v4346
        %v4466 = vrcp.pop %v4348
        %v4467 = vrcp.pop %v4350
        %v4468 = vrcp.pop %v4352
        %v4469 = vrcp.pop %v4354
        %v4470 = vrcp.pop %v4356
        %v4471 = vrcp.pop %v4358
        %v4472 = vrcp.pop %v4360
        %v4473 = vrcp.pop %v4362
        %v4474 = vrcp.pop %v4364
        %v4475 = vrcp.pop %v4366
        %v4476 = vrcp.pop %v4368
        %v4477 = vrcp.pop %v4370
        %v4478 = vrcp.pop %v4372
        %v4479 = vrcp.pop %v4374
        %v4480 = vrcp.pop %v4376
        %v4481 = vrcp.pop %v4378
        %v4482 = vrcp.pop %v4380
        %v4483 = vrcp.pop %v4382
        %v4484 = vrcp.pop %v4384
        %v4485 = vrcp.pop %v4386
        %v4486 = vrcp.pop %v4388
        %v4487 = vrcp.pop %v4390
        %v4488 = vrcp.pop %v4392
        %v4489 = vrcp.pop %v4394
        %v4490 = vrcp.pop %v4396
        %v4491 = vrcp.pop %v4398
        %v4492 = vrcp.pop %v4400
        %v4493 = vrcp.pop %v4402
        %v4494 = vrcp.pop %v4404
        %v4495 = vrcp.pop %v4406
        %v4496 = vrcp.pop %v4408
        %v4497 = vrcp.pop %v4410
        %v4498 = vrcp.pop %v4412
        %v4499 = vrcp.pop %v4414
        %v4500 = vrcp.pop %v4416
        %v4501 = vrcp.pop %v4418
        %v4502 = vrcp.pop %v4420
        %v4503 = vrcp.pop %v4422
        %v4504 = vrcp.pop %v4424
        %v4505 = vrcp.pop %v4426
        %v4506 = vrcp.pop %v4428
        %v4507 = vrcp.pop %v4430
        %v4508 = vrcp.pop %v4432
        %v4509 = vrcp.pop %v4434
        %v4510 = vrcp.pop %v4436
        %v4511 = vrcp.pop %v4438
        %v4512 = vrcp.pop %v4440
        %v4513 = vrcp.pop %v4442
        %v4514 = vrcp.pop %v4444
        %v4515 = vrcp.pop %v4446
        %v4516 = vrcp.pop %v4448
        %v4517 = vrcp.pop %v4450
        %v4518 = vrcp.pop %v4452
        %v4519 = vrcp.pop %v4454
        %v4520 = vrcp.pop %v4456
        %v4521 = vmul.f32 %v4202, %v4457
        %v4522 = vmul.f32 %v4204, %v4458
        %v4523 = vmul.f32 %v4206, %v4459
        %v4524 = vmul.f32 %v4208, %v4460
        %v4525 = vmul.f32 %v4210, %v4461
        %v4526 = vmul.f32 %v4212, %v4462
        %v4527 = vmul.f32 %v4214, %v4463
        %v4528 = vmul.f32 %v4216, %v4464
        %v4529 = vmul.f32 %v4218, %v4465
        %v4530 = vmul.f32 %v4220, %v4466
        %v4531 = vmul.f32 %v4222, %v4467
        %v4532 = vmul.f32 %v4224, %v4468
        %v4533 = vmul.f32 %v4226, %v4469
        %v4534 = vmul.f32 %v4228, %v4470
        %v4535 = vmul.f32 %v4230, %v4471
        %v4536 = vmul.f32 %v4232, %v4472
        %v4537 = vmul.f32 %v4234, %v4473
        %v4538 = vmul.f32 %v4236, %v4474
        %v4539 = vmul.f32 %v4238, %v4475
        %v4540 = vmul.f32 %v4240, %v4476
        %v4541 = vmul.f32 %v4242, %v4477
        %v4542 = vmul.f32 %v4244, %v4478
        %v4543 = vmul.f32 %v4246, %v4479
        %v4544 = vmul.f32 %v4248, %v4480
        %v4545 = vmul.f32 %v4250, %v4481
        %v4546 = vmul.f32 %v4252, %v4482
        %v4547 = vmul.f32 %v4254, %v4483
        %v4548 = vmul.f32 %v4256, %v4484
        %v4549 = vmul.f32 %v4258, %v4485
        %v4550 = vmul.f32 %v4260, %v4486
        %v4551 = vmul.f32 %v4262, %v4487
        %v4552 = vmul.f32 %v4264, %v4488
        %v4553 = vmul.f32 %v4266, %v4489
        %v4554 = vmul.f32 %v4268, %v4490
        %v4555 = vmul.f32 %v4270, %v4491
        %v4556 = vmul.f32 %v4272, %v4492
        %v4557 = vmul.f32 %v4274, %v4493
        %v4558 = vmul.f32 %v4276, %v4494
        %v4559 = vmul.f32 %v4278, %v4495
        %v4560 = vmul.f32 %v4280, %v4496
        %v4561 = vmul.f32 %v4282, %v4497
        %v4562 = vmul.f32 %v4284, %v4498
        %v4563 = vmul.f32 %v4286, %v4499
        %v4564 = vmul.f32 %v4288, %v4500
        %v4565 = vmul.f32 %v4290, %v4501
        %v4566 = vmul.f32 %v4292, %v4502
        %v4567 = vmul.f32 %v4294, %v4503
        %v4568 = vmul.f32 %v4296, %v4504
        %v4569 = vmul.f32 %v4298, %v4505
        %v4570 = vmul.f32 %v4300, %v4506
        %v4571 = vmul.f32 %v4302, %v4507
        %v4572 = vmul.f32 %v4304, %v4508
        %v4573 = vmul.f32 %v4306, %v4509
        %v4574 = vmul.f32 %v4308, %v4510
        %v4575 = vmul.f32 %v4310, %v4511
        %v4576 = vmul.f32 %v4312, %v4512
        %v4577 = vmul.f32 %v4314, %v4513
        %v4578 = vmul.f32 %v4316, %v4514
        %v4579 = vmul.f32 %v4318, %v4515
        %v4580 = vmul.f32 %v4320, %v4516
        %v4581 = vmul.f32 %v4322, %v4517
        %v4582 = vmul.f32 %v4324, %v4518
        %v4583 = vmul.f32 %v4326, %v4519
        %v4584 = vmul.f32 %v4328, %v4520
        %4585 = vrot.lane.b32.xlu0 %v562, 64
        %v4586 = vpop.permute.xlu0 %4585
        %4587 = vrot.lane.b32.xlu0 %v567, 64
        %v4588 = vpop.permute.xlu0 %4587
        %4589 = vrot.lane.b32.xlu0 %v572, 64
        %v4590 = vpop.permute.xlu0 %4589
        %4591 = vrot.lane.b32.xlu0 %v577, 64
        %v4592 = vpop.permute.xlu0 %4591
        %4593 = vrot.lane.b32.xlu0 %v582, 64
        %v4594 = vpop.permute.xlu0 %4593
        %4595 = vrot.lane.b32.xlu0 %v587, 64
        %v4596 = vpop.permute.xlu0 %4595
        %4597 = vrot.lane.b32.xlu0 %v592, 64
        %v4598 = vpop.permute.xlu0 %4597
        %4599 = vrot.lane.b32.xlu0 %v597, 64
        %v4600 = vpop.permute.xlu0 %4599
        %4601 = vrot.lane.b32.xlu0 %v602, 64
        %v4602 = vpop.permute.xlu0 %4601
        %4603 = vrot.lane.b32.xlu0 %v607, 64
        %v4604 = vpop.permute.xlu0 %4603
        %4605 = vrot.lane.b32.xlu0 %v612, 64
        %v4606 = vpop.permute.xlu0 %4605
        %4607 = vrot.lane.b32.xlu0 %v617, 64
        %v4608 = vpop.permute.xlu0 %4607
        %4609 = vrot.lane.b32.xlu0 %v622, 64
        %v4610 = vpop.permute.xlu0 %4609
        %4611 = vrot.lane.b32.xlu0 %v627, 64
        %v4612 = vpop.permute.xlu0 %4611
        %4613 = vrot.lane.b32.xlu0 %v632, 64
        %v4614 = vpop.permute.xlu0 %4613
        %4615 = vrot.lane.b32.xlu0 %v637, 64
        %v4616 = vpop.permute.xlu0 %4615
        %4633 = vmatprep.subr.mxu0 0.0
        %4634 = vmatpush1.msra.mxu0 %v4616
        %4635 = vmatprep.subr.mxu0 0.0
        %4636 = vmatpush1.msra.mxu0 %v4614
        %4637 = vmatprep.subr.mxu0 0.0
        %4638 = vmatpush1.msra.mxu0 %v4612
        %4639 = vmatprep.subr.mxu0 0.0
        %4640 = vmatpush1.msra.mxu0 %v4610
        %4641 = vmatprep.subr.mxu0 0.0
        %4642 = vmatpush1.msra.mxu0 %v4608
        %4643 = vmatprep.subr.mxu0 0.0
        %4644 = vmatpush1.msra.mxu0 %v4606
        %4645 = vmatprep.subr.mxu0 0.0
        %4646 = vmatpush1.msra.mxu0 %v4604
        %4647 = vmatprep.subr.mxu0 0.0
        %4648 = vmatpush1.msra.mxu0 %v4602
        %4649 = vmatprep.subr.mxu0 0.0
        %4650 = vmatpush1.msra.mxu0 %v4600
        %4651 = vmatprep.subr.mxu0 0.0
        %4652 = vmatpush1.msra.mxu0 %v4598
        %4653 = vmatprep.subr.mxu0 0.0
        %4654 = vmatpush1.msra.mxu0 %v4596
        %4655 = vmatprep.subr.mxu0 0.0
        %4656 = vmatpush1.msra.mxu0 %v4594
        %4657 = vmatprep.subr.mxu0 0.0
        %4658 = vmatpush1.msra.mxu0 %v4592
        %4659 = vmatprep.subr.mxu0 0.0
        %4660 = vmatpush1.msra.mxu0 %v4590
        %4661 = vmatprep.subr.mxu0 0.0
        %4662 = vmatpush1.msra.mxu0 %v4588
        %4663 = vmatprep.subr.mxu0 0.0
        %4664 = vmatpush1.msra.mxu0 %v4586
        %4665 = vmatprep.subr.mxu0 0.0
        %4666 = vmatpush2.msra.mxu0 0.0
        %4667 = vmatprep.subr.mxu0 0.0
        %4668 = vmatpush2.msra.mxu0 0.0
        %4669 = vmatprep.subr.mxu0 0.0
        %4670 = vmatpush2.msra.mxu0 0.0
        %4671 = vmatprep.subr.mxu0 0.0
        %4672 = vmatpush2.msra.mxu0 0.0
        %4673 = vmatprep.subr.mxu0 0.0
        %4674 = vmatpush2.msra.mxu0 0.0
        %4675 = vmatprep.subr.mxu0 0.0
        %4676 = vmatpush2.msra.mxu0 0.0
        %4677 = vmatprep.subr.mxu0 0.0
        %4678 = vmatpush2.msra.mxu0 0.0
        %4679 = vmatprep.subr.mxu0 0.0
        %4680 = vmatpush2.msra.mxu0 0.0
        %4681 = vmatprep.subr.mxu0 0.0
        %4682 = vmatpush2.msra.mxu0 0.0
        %4683 = vmatprep.subr.mxu0 0.0
        %4684 = vmatpush2.msra.mxu0 0.0
        %4685 = vmatprep.subr.mxu0 0.0
        %4686 = vmatpush2.msra.mxu0 0.0
        %4687 = vmatprep.subr.mxu0 0.0
        %4688 = vmatpush2.msra.mxu0 0.0
        %4689 = vmatprep.subr.mxu0 0.0
        %4690 = vmatpush2.msra.mxu0 0.0
        %4691 = vmatprep.subr.mxu0 0.0
        %4692 = vmatpush2.msra.mxu0 0.0
        %4693 = vmatprep.subr.mxu0 0.0
        %4694 = vmatpush2.msra.mxu0 0.0
        %4695 = vmatprep.subr.mxu0 0.0
        %4696 = vmatpush2.msra.mxu0 0.0
        %4697 = vmatprep.mubr.f32.mxu0 0.0
        %4698 = vmatmul.mubr.f32.gmra.mxu0 %v4521
        %v4699 = vpop.f32.mrf.mxu0
        %v4700 = vadd.f32 0.0, %v4699
        %v4701 = vpop.f32.mrf.mxu0
        %4702 = vmatprep.mubr.f32.mxu0 0.0
        %4703 = vmatmul.mubr.f32.gmra.mxu0 %v4522
        %v4704 = vpop.f32.mrf.mxu0
        %v4705 = vadd.f32 0.0, %v4704
        %v4706 = vpop.f32.mrf.mxu0
        %4707 = vmatprep.mubr.f32.mxu0 0.0
        %4708 = vmatmul.mubr.f32.gmra.mxu0 %v4523
        %v4709 = vpop.f32.mrf.mxu0
        %v4710 = vadd.f32 0.0, %v4709
        %v4711 = vpop.f32.mrf.mxu0
        %4712 = vmatprep.mubr.f32.mxu0 0.0
        %4713 = vmatmul.mubr.f32.gmra.mxu0 %v4524
        %v4714 = vpop.f32.mrf.mxu0
        %v4715 = vadd.f32 0.0, %v4714
        %v4716 = vpop.f32.mrf.mxu0
        %4717 = vmatprep.mubr.f32.mxu0 0.0
        %4718 = vmatmul.mubr.f32.gmra.mxu0 %v4525
        %v4719 = vpop.f32.mrf.mxu0
        %v4720 = vadd.f32 0.0, %v4719
        %v4721 = vpop.f32.mrf.mxu0
        %4722 = vmatprep.mubr.f32.mxu0 0.0
        %4723 = vmatmul.mubr.f32.gmra.mxu0 %v4526
        %v4724 = vpop.f32.mrf.mxu0
        %v4725 = vadd.f32 0.0, %v4724
        %v4726 = vpop.f32.mrf.mxu0
        %4727 = vmatprep.mubr.f32.mxu0 0.0
        %4728 = vmatmul.mubr.f32.gmra.mxu0 %v4527
        %v4729 = vpop.f32.mrf.mxu0
        %v4730 = vadd.f32 0.0, %v4729
        %v4731 = vpop.f32.mrf.mxu0
        %4732 = vmatprep.mubr.f32.mxu0 0.0
        %4733 = vmatmul.mubr.f32.gmra.mxu0 %v4528
        %v4734 = vpop.f32.mrf.mxu0
        %v4735 = vadd.f32 0.0, %v4734
        %v4736 = vpop.f32.mrf.mxu0
        %4737 = vmatprep.mubr.f32.mxu0 0.0
        %4738 = vmatmul.mubr.f32.gmra.mxu0 %v4529
        %v4739 = vpop.f32.mrf.mxu0
        %v4740 = vadd.f32 0.0, %v4739
        %v4741 = vpop.f32.mrf.mxu0
        %4742 = vmatprep.mubr.f32.mxu0 0.0
        %4743 = vmatmul.mubr.f32.gmra.mxu0 %v4530
        %v4744 = vpop.f32.mrf.mxu0
        %v4745 = vadd.f32 0.0, %v4744
        %v4746 = vpop.f32.mrf.mxu0
        %4747 = vmatprep.mubr.f32.mxu0 0.0
        %4748 = vmatmul.mubr.f32.gmra.mxu0 %v4531
        %v4749 = vpop.f32.mrf.mxu0
        %v4750 = vadd.f32 0.0, %v4749
        %v4751 = vpop.f32.mrf.mxu0
        %4752 = vmatprep.mubr.f32.mxu0 0.0
        %4753 = vmatmul.mubr.f32.gmra.mxu0 %v4532
        %v4754 = vpop.f32.mrf.mxu0
        %v4755 = vadd.f32 0.0, %v4754
        %v4756 = vpop.f32.mrf.mxu0
        %4757 = vmatprep.mubr.f32.mxu0 0.0
        %4758 = vmatmul.mubr.f32.gmra.mxu0 %v4533
        %v4759 = vpop.f32.mrf.mxu0
        %v4760 = vadd.f32 0.0, %v4759
        %v4761 = vpop.f32.mrf.mxu0
        %4762 = vmatprep.mubr.f32.mxu0 0.0
        %4763 = vmatmul.mubr.f32.gmra.mxu0 %v4534
        %v4764 = vpop.f32.mrf.mxu0
        %v4765 = vadd.f32 0.0, %v4764
        %v4766 = vpop.f32.mrf.mxu0
        %4767 = vmatprep.mubr.f32.mxu0 0.0
        %4768 = vmatmul.mubr.f32.gmra.mxu0 %v4535
        %v4769 = vpop.f32.mrf.mxu0
        %v4770 = vadd.f32 0.0, %v4769
        %v4771 = vpop.f32.mrf.mxu0
        %4772 = vmatprep.mubr.f32.mxu0 0.0
        %4773 = vmatmul.mubr.f32.gmra.mxu0 %v4536
        %v4774 = vpop.f32.mrf.mxu0
        %v4775 = vadd.f32 0.0, %v4774
        %v4776 = vpop.f32.mrf.mxu0
        %4777 = vdwg.mxu0
        %4778 = vrot.lane.b32.xlu0 %v707, 64
        %v4779 = vpop.permute.xlu0 %4778
        %4780 = vrot.lane.b32.xlu0 %v712, 64
        %v4781 = vpop.permute.xlu0 %4780
        %4782 = vrot.lane.b32.xlu0 %v717, 64
        %v4783 = vpop.permute.xlu0 %4782
        %4784 = vrot.lane.b32.xlu0 %v722, 64
        %v4785 = vpop.permute.xlu0 %4784
        %4786 = vrot.lane.b32.xlu0 %v727, 64
        %v4787 = vpop.permute.xlu0 %4786
        %4788 = vrot.lane.b32.xlu0 %v732, 64
        %v4789 = vpop.permute.xlu0 %4788
        %4790 = vrot.lane.b32.xlu0 %v737, 64
        %v4791 = vpop.permute.xlu0 %4790
        %4792 = vrot.lane.b32.xlu0 %v742, 64
        %v4793 = vpop.permute.xlu0 %4792
        %4794 = vrot.lane.b32.xlu0 %v747, 64
        %v4795 = vpop.permute.xlu0 %4794
        %4796 = vrot.lane.b32.xlu0 %v752, 64
        %v4797 = vpop.permute.xlu0 %4796
        %4798 = vrot.lane.b32.xlu0 %v757, 64
        %v4799 = vpop.permute.xlu0 %4798
        %4800 = vrot.lane.b32.xlu0 %v762, 64
        %v4801 = vpop.permute.xlu0 %4800
        %4802 = vrot.lane.b32.xlu0 %v767, 64
        %v4803 = vpop.permute.xlu0 %4802
        %4804 = vrot.lane.b32.xlu0 %v772, 64
        %v4805 = vpop.permute.xlu0 %4804
        %4806 = vrot.lane.b32.xlu0 %v777, 64
        %v4807 = vpop.permute.xlu0 %4806
        %4808 = vrot.lane.b32.xlu0 %v782, 64
        %v4809 = vpop.permute.xlu0 %4808
        %4826 = vmatprep.subr.mxu0 0.0
        %4827 = vmatpush1.msra.mxu0 %v4809
        %4828 = vmatprep.subr.mxu0 0.0
        %4829 = vmatpush1.msra.mxu0 %v4807
        %4830 = vmatprep.subr.mxu0 0.0
        %4831 = vmatpush1.msra.mxu0 %v4805
        %4832 = vmatprep.subr.mxu0 0.0
        %4833 = vmatpush1.msra.mxu0 %v4803
        %4834 = vmatprep.subr.mxu0 0.0
        %4835 = vmatpush1.msra.mxu0 %v4801
        %4836 = vmatprep.subr.mxu0 0.0
        %4837 = vmatpush1.msra.mxu0 %v4799
        %4838 = vmatprep.subr.mxu0 0.0
        %4839 = vmatpush1.msra.mxu0 %v4797
        %4840 = vmatprep.subr.mxu0 0.0
        %4841 = vmatpush1.msra.mxu0 %v4795
        %4842 = vmatprep.subr.mxu0 0.0
        %4843 = vmatpush1.msra.mxu0 %v4793
        %4844 = vmatprep.subr.mxu0 0.0
        %4845 = vmatpush1.msra.mxu0 %v4791
        %4846 = vmatprep.subr.mxu0 0.0
        %4847 = vmatpush1.msra.mxu0 %v4789
        %4848 = vmatprep.subr.mxu0 0.0
        %4849 = vmatpush1.msra.mxu0 %v4787
        %4850 = vmatprep.subr.mxu0 0.0
        %4851 = vmatpush1.msra.mxu0 %v4785
        %4852 = vmatprep.subr.mxu0 0.0
        %4853 = vmatpush1.msra.mxu0 %v4783
        %4854 = vmatprep.subr.mxu0 0.0
        %4855 = vmatpush1.msra.mxu0 %v4781
        %4856 = vmatprep.subr.mxu0 0.0
        %4857 = vmatpush1.msra.mxu0 %v4779
        %4858 = vmatprep.subr.mxu0 0.0
        %4859 = vmatpush2.msra.mxu0 0.0
        %4860 = vmatprep.subr.mxu0 0.0
        %4861 = vmatpush2.msra.mxu0 0.0
        %4862 = vmatprep.subr.mxu0 0.0
        %4863 = vmatpush2.msra.mxu0 0.0
        %4864 = vmatprep.subr.mxu0 0.0
        %4865 = vmatpush2.msra.mxu0 0.0
        %4866 = vmatprep.subr.mxu0 0.0
        %4867 = vmatpush2.msra.mxu0 0.0
        %4868 = vmatprep.subr.mxu0 0.0
        %4869 = vmatpush2.msra.mxu0 0.0
        %4870 = vmatprep.subr.mxu0 0.0
        %4871 = vmatpush2.msra.mxu0 0.0
        %4872 = vmatprep.subr.mxu0 0.0
        %4873 = vmatpush2.msra.mxu0 0.0
        %4874 = vmatprep.subr.mxu0 0.0
        %4875 = vmatpush2.msra.mxu0 0.0
        %4876 = vmatprep.subr.mxu0 0.0
        %4877 = vmatpush2.msra.mxu0 0.0
        %4878 = vmatprep.subr.mxu0 0.0
        %4879 = vmatpush2.msra.mxu0 0.0
        %4880 = vmatprep.subr.mxu0 0.0
        %4881 = vmatpush2.msra.mxu0 0.0
        %4882 = vmatprep.subr.mxu0 0.0
        %4883 = vmatpush2.msra.mxu0 0.0
        %4884 = vmatprep.subr.mxu0 0.0
        %4885 = vmatpush2.msra.mxu0 0.0
        %4886 = vmatprep.subr.mxu0 0.0
        %4887 = vmatpush2.msra.mxu0 0.0
        %4888 = vmatprep.subr.mxu0 0.0
        %4889 = vmatpush2.msra.mxu0 0.0
        %4890 = vmatprep.mubr.f32.mxu0 0.0
        %4891 = vmatmul.mubr.f32.gmra.mxu0 %v4537
        %v4892 = vpop.f32.mrf.mxu0
        %v4893 = vadd.f32 0.0, %v4892
        %v4894 = vpop.f32.mrf.mxu0
        %4895 = vmatprep.mubr.f32.mxu0 0.0
        %4896 = vmatmul.mubr.f32.gmra.mxu0 %v4538
        %v4897 = vpop.f32.mrf.mxu0
        %v4898 = vadd.f32 0.0, %v4897
        %v4899 = vpop.f32.mrf.mxu0
        %4900 = vmatprep.mubr.f32.mxu0 0.0
        %4901 = vmatmul.mubr.f32.gmra.mxu0 %v4539
        %v4902 = vpop.f32.mrf.mxu0
        %v4903 = vadd.f32 0.0, %v4902
        %v4904 = vpop.f32.mrf.mxu0
        %4905 = vmatprep.mubr.f32.mxu0 0.0
        %4906 = vmatmul.mubr.f32.gmra.mxu0 %v4540
        %v4907 = vpop.f32.mrf.mxu0
        %v4908 = vadd.f32 0.0, %v4907
        %v4909 = vpop.f32.mrf.mxu0
        %4910 = vmatprep.mubr.f32.mxu0 0.0
        %4911 = vmatmul.mubr.f32.gmra.mxu0 %v4541
        %v4912 = vpop.f32.mrf.mxu0
        %v4913 = vadd.f32 0.0, %v4912
        %v4914 = vpop.f32.mrf.mxu0
        %4915 = vmatprep.mubr.f32.mxu0 0.0
        %4916 = vmatmul.mubr.f32.gmra.mxu0 %v4542
        %v4917 = vpop.f32.mrf.mxu0
        %v4918 = vadd.f32 0.0, %v4917
        %v4919 = vpop.f32.mrf.mxu0
        %4920 = vmatprep.mubr.f32.mxu0 0.0
        %4921 = vmatmul.mubr.f32.gmra.mxu0 %v4543
        %v4922 = vpop.f32.mrf.mxu0
        %v4923 = vadd.f32 0.0, %v4922
        %v4924 = vpop.f32.mrf.mxu0
        %4925 = vmatprep.mubr.f32.mxu0 0.0
        %4926 = vmatmul.mubr.f32.gmra.mxu0 %v4544
        %v4927 = vpop.f32.mrf.mxu0
        %v4928 = vadd.f32 0.0, %v4927
        %v4929 = vpop.f32.mrf.mxu0
        %4930 = vmatprep.mubr.f32.mxu0 0.0
        %4931 = vmatmul.mubr.f32.gmra.mxu0 %v4545
        %v4932 = vpop.f32.mrf.mxu0
        %v4933 = vadd.f32 0.0, %v4932
        %v4934 = vpop.f32.mrf.mxu0
        %4935 = vmatprep.mubr.f32.mxu0 0.0
        %4936 = vmatmul.mubr.f32.gmra.mxu0 %v4546
        %v4937 = vpop.f32.mrf.mxu0
        %v4938 = vadd.f32 0.0, %v4937
        %v4939 = vpop.f32.mrf.mxu0
        %4940 = vmatprep.mubr.f32.mxu0 0.0
        %4941 = vmatmul.mubr.f32.gmra.mxu0 %v4547
        %v4942 = vpop.f32.mrf.mxu0
        %v4943 = vadd.f32 0.0, %v4942
        %v4944 = vpop.f32.mrf.mxu0
        %4945 = vmatprep.mubr.f32.mxu0 0.0
        %4946 = vmatmul.mubr.f32.gmra.mxu0 %v4548
        %v4947 = vpop.f32.mrf.mxu0
        %v4948 = vadd.f32 0.0, %v4947
        %v4949 = vpop.f32.mrf.mxu0
        %4950 = vmatprep.mubr.f32.mxu0 0.0
        %4951 = vmatmul.mubr.f32.gmra.mxu0 %v4549
        %v4952 = vpop.f32.mrf.mxu0
        %v4953 = vadd.f32 0.0, %v4952
        %v4954 = vpop.f32.mrf.mxu0
        %4955 = vmatprep.mubr.f32.mxu0 0.0
        %4956 = vmatmul.mubr.f32.gmra.mxu0 %v4550
        %v4957 = vpop.f32.mrf.mxu0
        %v4958 = vadd.f32 0.0, %v4957
        %v4959 = vpop.f32.mrf.mxu0
        %4960 = vmatprep.mubr.f32.mxu0 0.0
        %4961 = vmatmul.mubr.f32.gmra.mxu0 %v4551
        %v4962 = vpop.f32.mrf.mxu0
        %v4963 = vadd.f32 0.0, %v4962
        %v4964 = vpop.f32.mrf.mxu0
        %4965 = vmatprep.mubr.f32.mxu0 0.0
        %4966 = vmatmul.mubr.f32.gmra.mxu0 %v4552
        %v4967 = vpop.f32.mrf.mxu0
        %v4968 = vadd.f32 0.0, %v4967
        %v4969 = vpop.f32.mrf.mxu0
        %4970 = vdwg.mxu0
        %4971 = vrot.lane.b32.xlu0 %v852, 64
        %v4972 = vpop.permute.xlu0 %4971
        %4973 = vrot.lane.b32.xlu0 %v857, 64
        %v4974 = vpop.permute.xlu0 %4973
        %4975 = vrot.lane.b32.xlu0 %v862, 64
        %v4976 = vpop.permute.xlu0 %4975
        %4977 = vrot.lane.b32.xlu0 %v867, 64
        %v4978 = vpop.permute.xlu0 %4977
        %4979 = vrot.lane.b32.xlu0 %v872, 64
        %v4980 = vpop.permute.xlu0 %4979
        %4981 = vrot.lane.b32.xlu0 %v877, 64
        %v4982 = vpop.permute.xlu0 %4981
        %4983 = vrot.lane.b32.xlu0 %v882, 64
        %v4984 = vpop.permute.xlu0 %4983
        %4985 = vrot.lane.b32.xlu0 %v887, 64
        %v4986 = vpop.permute.xlu0 %4985
        %4987 = vrot.lane.b32.xlu0 %v892, 64
        %v4988 = vpop.permute.xlu0 %4987
        %4989 = vrot.lane.b32.xlu0 %v897, 64
        %v4990 = vpop.permute.xlu0 %4989
        %4991 = vrot.lane.b32.xlu0 %v902, 64
        %v4992 = vpop.permute.xlu0 %4991
        %4993 = vrot.lane.b32.xlu0 %v907, 64
        %v4994 = vpop.permute.xlu0 %4993
        %4995 = vrot.lane.b32.xlu0 %v912, 64
        %v4996 = vpop.permute.xlu0 %4995
        %4997 = vrot.lane.b32.xlu0 %v917, 64
        %v4998 = vpop.permute.xlu0 %4997
        %4999 = vrot.lane.b32.xlu0 %v922, 64
        %v5000 = vpop.permute.xlu0 %4999
        %5001 = vrot.lane.b32.xlu0 %v927, 64
        %v5002 = vpop.permute.xlu0 %5001
        %5019 = vmatprep.subr.mxu0 0.0
        %5020 = vmatpush1.msra.mxu0 %v5002
        %5021 = vmatprep.subr.mxu0 0.0
        %5022 = vmatpush1.msra.mxu0 %v5000
        %5023 = vmatprep.subr.mxu0 0.0
        %5024 = vmatpush1.msra.mxu0 %v4998
        %5025 = vmatprep.subr.mxu0 0.0
        %5026 = vmatpush1.msra.mxu0 %v4996
        %5027 = vmatprep.subr.mxu0 0.0
        %5028 = vmatpush1.msra.mxu0 %v4994
        %5029 = vmatprep.subr.mxu0 0.0
        %5030 = vmatpush1.msra.mxu0 %v4992
        %5031 = vmatprep.subr.mxu0 0.0
        %5032 = vmatpush1.msra.mxu0 %v4990
        %5033 = vmatprep.subr.mxu0 0.0
        %5034 = vmatpush1.msra.mxu0 %v4988
        %5035 = vmatprep.subr.mxu0 0.0
        %5036 = vmatpush1.msra.mxu0 %v4986
        %5037 = vmatprep.subr.mxu0 0.0
        %5038 = vmatpush1.msra.mxu0 %v4984
        %5039 = vmatprep.subr.mxu0 0.0
        %5040 = vmatpush1.msra.mxu0 %v4982
        %5041 = vmatprep.subr.mxu0 0.0
        %5042 = vmatpush1.msra.mxu0 %v4980
        %5043 = vmatprep.subr.mxu0 0.0
        %5044 = vmatpush1.msra.mxu0 %v4978
        %5045 = vmatprep.subr.mxu0 0.0
        %5046 = vmatpush1.msra.mxu0 %v4976
        %5047 = vmatprep.subr.mxu0 0.0
        %5048 = vmatpush1.msra.mxu0 %v4974
        %5049 = vmatprep.subr.mxu0 0.0
        %5050 = vmatpush1.msra.mxu0 %v4972
        %5051 = vmatprep.subr.mxu0 0.0
        %5052 = vmatpush2.msra.mxu0 0.0
        %5053 = vmatprep.subr.mxu0 0.0
        %5054 = vmatpush2.msra.mxu0 0.0
        %5055 = vmatprep.subr.mxu0 0.0
        %5056 = vmatpush2.msra.mxu0 0.0
        %5057 = vmatprep.subr.mxu0 0.0
        %5058 = vmatpush2.msra.mxu0 0.0
        %5059 = vmatprep.subr.mxu0 0.0
        %5060 = vmatpush2.msra.mxu0 0.0
        %5061 = vmatprep.subr.mxu0 0.0
        %5062 = vmatpush2.msra.mxu0 0.0
        %5063 = vmatprep.subr.mxu0 0.0
        %5064 = vmatpush2.msra.mxu0 0.0
        %5065 = vmatprep.subr.mxu0 0.0
        %5066 = vmatpush2.msra.mxu0 0.0
        %5067 = vmatprep.subr.mxu0 0.0
        %5068 = vmatpush2.msra.mxu0 0.0
        %5069 = vmatprep.subr.mxu0 0.0
        %5070 = vmatpush2.msra.mxu0 0.0
        %5071 = vmatprep.subr.mxu0 0.0
        %5072 = vmatpush2.msra.mxu0 0.0
        %5073 = vmatprep.subr.mxu0 0.0
        %5074 = vmatpush2.msra.mxu0 0.0
        %5075 = vmatprep.subr.mxu0 0.0
        %5076 = vmatpush2.msra.mxu0 0.0
        %5077 = vmatprep.subr.mxu0 0.0
        %5078 = vmatpush2.msra.mxu0 0.0
        %5079 = vmatprep.subr.mxu0 0.0
        %5080 = vmatpush2.msra.mxu0 0.0
        %5081 = vmatprep.subr.mxu0 0.0
        %5082 = vmatpush2.msra.mxu0 0.0
        %5083 = vmatprep.mubr.f32.mxu0 0.0
        %5084 = vmatmul.mubr.f32.gmra.mxu0 %v4553
        %v5085 = vpop.f32.mrf.mxu0
        %v5086 = vadd.f32 0.0, %v5085
        %v5087 = vpop.f32.mrf.mxu0
        %5088 = vmatprep.mubr.f32.mxu0 0.0
        %5089 = vmatmul.mubr.f32.gmra.mxu0 %v4554
        %v5090 = vpop.f32.mrf.mxu0
        %v5091 = vadd.f32 0.0, %v5090
        %v5092 = vpop.f32.mrf.mxu0
        %5093 = vmatprep.mubr.f32.mxu0 0.0
        %5094 = vmatmul.mubr.f32.gmra.mxu0 %v4555
        %v5095 = vpop.f32.mrf.mxu0
        %v5096 = vadd.f32 0.0, %v5095
        %v5097 = vpop.f32.mrf.mxu0
        %5098 = vmatprep.mubr.f32.mxu0 0.0
        %5099 = vmatmul.mubr.f32.gmra.mxu0 %v4556
        %v5100 = vpop.f32.mrf.mxu0
        %v5101 = vadd.f32 0.0, %v5100
        %v5102 = vpop.f32.mrf.mxu0
        %5103 = vmatprep.mubr.f32.mxu0 0.0
        %5104 = vmatmul.mubr.f32.gmra.mxu0 %v4557
        %v5105 = vpop.f32.mrf.mxu0
        %v5106 = vadd.f32 0.0, %v5105
        %v5107 = vpop.f32.mrf.mxu0
        %5108 = vmatprep.mubr.f32.mxu0 0.0
        %5109 = vmatmul.mubr.f32.gmra.mxu0 %v4558
        %v5110 = vpop.f32.mrf.mxu0
        %v5111 = vadd.f32 0.0, %v5110
        %v5112 = vpop.f32.mrf.mxu0
        %5113 = vmatprep.mubr.f32.mxu0 0.0
        %5114 = vmatmul.mubr.f32.gmra.mxu0 %v4559
        %v5115 = vpop.f32.mrf.mxu0
        %v5116 = vadd.f32 0.0, %v5115
        %v5117 = vpop.f32.mrf.mxu0
        %5118 = vmatprep.mubr.f32.mxu0 0.0
        %5119 = vmatmul.mubr.f32.gmra.mxu0 %v4560
        %v5120 = vpop.f32.mrf.mxu0
        %v5121 = vadd.f32 0.0, %v5120
        %v5122 = vpop.f32.mrf.mxu0
        %5123 = vmatprep.mubr.f32.mxu0 0.0
        %5124 = vmatmul.mubr.f32.gmra.mxu0 %v4561
        %v5125 = vpop.f32.mrf.mxu0
        %v5126 = vadd.f32 0.0, %v5125
        %v5127 = vpop.f32.mrf.mxu0
        %5128 = vmatprep.mubr.f32.mxu0 0.0
        %5129 = vmatmul.mubr.f32.gmra.mxu0 %v4562
        %v5130 = vpop.f32.mrf.mxu0
        %v5131 = vadd.f32 0.0, %v5130
        %v5132 = vpop.f32.mrf.mxu0
        %5133 = vmatprep.mubr.f32.mxu0 0.0
        %5134 = vmatmul.mubr.f32.gmra.mxu0 %v4563
        %v5135 = vpop.f32.mrf.mxu0
        %v5136 = vadd.f32 0.0, %v5135
        %v5137 = vpop.f32.mrf.mxu0
        %5138 = vmatprep.mubr.f32.mxu0 0.0
        %5139 = vmatmul.mubr.f32.gmra.mxu0 %v4564
        %v5140 = vpop.f32.mrf.mxu0
        %v5141 = vadd.f32 0.0, %v5140
        %v5142 = vpop.f32.mrf.mxu0
        %5143 = vmatprep.mubr.f32.mxu0 0.0
        %5144 = vmatmul.mubr.f32.gmra.mxu0 %v4565
        %v5145 = vpop.f32.mrf.mxu0
        %v5146 = vadd.f32 0.0, %v5145
        %v5147 = vpop.f32.mrf.mxu0
        %5148 = vmatprep.mubr.f32.mxu0 0.0
        %5149 = vmatmul.mubr.f32.gmra.mxu0 %v4566
        %v5150 = vpop.f32.mrf.mxu0
        %v5151 = vadd.f32 0.0, %v5150
        %v5152 = vpop.f32.mrf.mxu0
        %5153 = vmatprep.mubr.f32.mxu0 0.0
        %5154 = vmatmul.mubr.f32.gmra.mxu0 %v4567
        %v5155 = vpop.f32.mrf.mxu0
        %v5156 = vadd.f32 0.0, %v5155
        %v5157 = vpop.f32.mrf.mxu0
        %5158 = vmatprep.mubr.f32.mxu0 0.0
        %5159 = vmatmul.mubr.f32.gmra.mxu0 %v4568
        %v5160 = vpop.f32.mrf.mxu0
        %v5161 = vadd.f32 0.0, %v5160
        %v5162 = vpop.f32.mrf.mxu0
        %5163 = vdwg.mxu0
        %5164 = vrot.lane.b32.xlu0 %v997, 64
        %v5165 = vpop.permute.xlu0 %5164
        %5166 = vrot.lane.b32.xlu0 %v1002, 64
        %v5167 = vpop.permute.xlu0 %5166
        %5168 = vrot.lane.b32.xlu0 %v1007, 64
        %v5169 = vpop.permute.xlu0 %5168
        %5170 = vrot.lane.b32.xlu0 %v1012, 64
        %v5171 = vpop.permute.xlu0 %5170
        %5172 = vrot.lane.b32.xlu0 %v1017, 64
        %v5173 = vpop.permute.xlu0 %5172
        %5174 = vrot.lane.b32.xlu0 %v1022, 64
        %v5175 = vpop.permute.xlu0 %5174
        %5176 = vrot.lane.b32.xlu0 %v1027, 64
        %v5177 = vpop.permute.xlu0 %5176
        %5178 = vrot.lane.b32.xlu0 %v1032, 64
        %v5179 = vpop.permute.xlu0 %5178
        %5180 = vrot.lane.b32.xlu0 %v1037, 64
        %v5181 = vpop.permute.xlu0 %5180
        %5182 = vrot.lane.b32.xlu0 %v1042, 64
        %v5183 = vpop.permute.xlu0 %5182
        %5184 = vrot.lane.b32.xlu0 %v1047, 64
        %v5185 = vpop.permute.xlu0 %5184
        %5186 = vrot.lane.b32.xlu0 %v1052, 64
        %v5187 = vpop.permute.xlu0 %5186
        %5188 = vrot.lane.b32.xlu0 %v1057, 64
        %v5189 = vpop.permute.xlu0 %5188
        %5190 = vrot.lane.b32.xlu0 %v1062, 64
        %v5191 = vpop.permute.xlu0 %5190
        %5192 = vrot.lane.b32.xlu0 %v1067, 64
        %v5193 = vpop.permute.xlu0 %5192
        %5194 = vrot.lane.b32.xlu0 %v1072, 64
        %v5195 = vpop.permute.xlu0 %5194
        %5212 = vmatprep.subr.mxu0 0.0
        %5213 = vmatpush1.msra.mxu0 %v5195
        %5214 = vmatprep.subr.mxu0 0.0
        %5215 = vmatpush1.msra.mxu0 %v5193
        %5216 = vmatprep.subr.mxu0 0.0
        %5217 = vmatpush1.msra.mxu0 %v5191
        %5218 = vmatprep.subr.mxu0 0.0
        %5219 = vmatpush1.msra.mxu0 %v5189
        %5220 = vmatprep.subr.mxu0 0.0
        %5221 = vmatpush1.msra.mxu0 %v5187
        %5222 = vmatprep.subr.mxu0 0.0
        %5223 = vmatpush1.msra.mxu0 %v5185
        %5224 = vmatprep.subr.mxu0 0.0
        %5225 = vmatpush1.msra.mxu0 %v5183
        %5226 = vmatprep.subr.mxu0 0.0
        %5227 = vmatpush1.msra.mxu0 %v5181
        %5228 = vmatprep.subr.mxu0 0.0
        %5229 = vmatpush1.msra.mxu0 %v5179
        %5230 = vmatprep.subr.mxu0 0.0
        %5231 = vmatpush1.msra.mxu0 %v5177
        %5232 = vmatprep.subr.mxu0 0.0
        %5233 = vmatpush1.msra.mxu0 %v5175
        %5234 = vmatprep.subr.mxu0 0.0
        %5235 = vmatpush1.msra.mxu0 %v5173
        %5236 = vmatprep.subr.mxu0 0.0
        %5237 = vmatpush1.msra.mxu0 %v5171
        %5238 = vmatprep.subr.mxu0 0.0
        %5239 = vmatpush1.msra.mxu0 %v5169
        %5240 = vmatprep.subr.mxu0 0.0
        %5241 = vmatpush1.msra.mxu0 %v5167
        %5242 = vmatprep.subr.mxu0 0.0
        %5243 = vmatpush1.msra.mxu0 %v5165
        %5244 = vmatprep.subr.mxu0 0.0
        %5245 = vmatpush2.msra.mxu0 0.0
        %5246 = vmatprep.subr.mxu0 0.0
        %5247 = vmatpush2.msra.mxu0 0.0
        %5248 = vmatprep.subr.mxu0 0.0
        %5249 = vmatpush2.msra.mxu0 0.0
        %5250 = vmatprep.subr.mxu0 0.0
        %5251 = vmatpush2.msra.mxu0 0.0
        %5252 = vmatprep.subr.mxu0 0.0
        %5253 = vmatpush2.msra.mxu0 0.0
        %5254 = vmatprep.subr.mxu0 0.0
        %5255 = vmatpush2.msra.mxu0 0.0
        %5256 = vmatprep.subr.mxu0 0.0
        %5257 = vmatpush2.msra.mxu0 0.0
        %5258 = vmatprep.subr.mxu0 0.0
        %5259 = vmatpush2.msra.mxu0 0.0
        %5260 = vmatprep.subr.mxu0 0.0
        %5261 = vmatpush2.msra.mxu0 0.0
        %5262 = vmatprep.subr.mxu0 0.0
        %5263 = vmatpush2.msra.mxu0 0.0
        %5264 = vmatprep.subr.mxu0 0.0
        %5265 = vmatpush2.msra.mxu0 0.0
        %5266 = vmatprep.subr.mxu0 0.0
        %5267 = vmatpush2.msra.mxu0 0.0
        %5268 = vmatprep.subr.mxu0 0.0
        %5269 = vmatpush2.msra.mxu0 0.0
        %5270 = vmatprep.subr.mxu0 0.0
        %5271 = vmatpush2.msra.mxu0 0.0
        %5272 = vmatprep.subr.mxu0 0.0
        %5273 = vmatpush2.msra.mxu0 0.0
        %5274 = vmatprep.subr.mxu0 0.0
        %5275 = vmatpush2.msra.mxu0 0.0
        %5276 = vmatprep.mubr.f32.mxu0 0.0
        %5277 = vmatmul.mubr.f32.gmra.mxu0 %v4569
        %v5278 = vpop.f32.mrf.mxu0
        %v5279 = vadd.f32 0.0, %v5278
        %v5280 = vpop.f32.mrf.mxu0
        %5281 = vmatprep.mubr.f32.mxu0 0.0
        %5282 = vmatmul.mubr.f32.gmra.mxu0 %v4570
        %v5283 = vpop.f32.mrf.mxu0
        %v5284 = vadd.f32 0.0, %v5283
        %v5285 = vpop.f32.mrf.mxu0
        %5286 = vmatprep.mubr.f32.mxu0 0.0
        %5287 = vmatmul.mubr.f32.gmra.mxu0 %v4571
        %v5288 = vpop.f32.mrf.mxu0
        %v5289 = vadd.f32 0.0, %v5288
        %v5290 = vpop.f32.mrf.mxu0
        %5291 = vmatprep.mubr.f32.mxu0 0.0
        %5292 = vmatmul.mubr.f32.gmra.mxu0 %v4572
        %v5293 = vpop.f32.mrf.mxu0
        %v5294 = vadd.f32 0.0, %v5293
        %v5295 = vpop.f32.mrf.mxu0
        %5296 = vmatprep.mubr.f32.mxu0 0.0
        %5297 = vmatmul.mubr.f32.gmra.mxu0 %v4573
        %v5298 = vpop.f32.mrf.mxu0
        %v5299 = vadd.f32 0.0, %v5298
        %v5300 = vpop.f32.mrf.mxu0
        %5301 = vmatprep.mubr.f32.mxu0 0.0
        %5302 = vmatmul.mubr.f32.gmra.mxu0 %v4574
        %v5303 = vpop.f32.mrf.mxu0
        %v5304 = vadd.f32 0.0, %v5303
        %v5305 = vpop.f32.mrf.mxu0
        %5306 = vmatprep.mubr.f32.mxu0 0.0
        %5307 = vmatmul.mubr.f32.gmra.mxu0 %v4575
        %v5308 = vpop.f32.mrf.mxu0
        %v5309 = vadd.f32 0.0, %v5308
        %v5310 = vpop.f32.mrf.mxu0
        %5311 = vmatprep.mubr.f32.mxu0 0.0
        %5312 = vmatmul.mubr.f32.gmra.mxu0 %v4576
        %v5313 = vpop.f32.mrf.mxu0
        %v5314 = vadd.f32 0.0, %v5313
        %v5315 = vpop.f32.mrf.mxu0
        %5316 = vmatprep.mubr.f32.mxu0 0.0
        %5317 = vmatmul.mubr.f32.gmra.mxu0 %v4577
        %v5318 = vpop.f32.mrf.mxu0
        %v5319 = vadd.f32 0.0, %v5318
        %v5320 = vpop.f32.mrf.mxu0
        %5321 = vmatprep.mubr.f32.mxu0 0.0
        %5322 = vmatmul.mubr.f32.gmra.mxu0 %v4578
        %v5323 = vpop.f32.mrf.mxu0
        %v5324 = vadd.f32 0.0, %v5323
        %v5325 = vpop.f32.mrf.mxu0
        %5326 = vmatprep.mubr.f32.mxu0 0.0
        %5327 = vmatmul.mubr.f32.gmra.mxu0 %v4579
        %v5328 = vpop.f32.mrf.mxu0
        %v5329 = vadd.f32 0.0, %v5328
        %v5330 = vpop.f32.mrf.mxu0
        %5331 = vmatprep.mubr.f32.mxu0 0.0
        %5332 = vmatmul.mubr.f32.gmra.mxu0 %v4580
        %v5333 = vpop.f32.mrf.mxu0
        %v5334 = vadd.f32 0.0, %v5333
        %v5335 = vpop.f32.mrf.mxu0
        %5336 = vmatprep.mubr.f32.mxu0 0.0
        %5337 = vmatmul.mubr.f32.gmra.mxu0 %v4581
        %v5338 = vpop.f32.mrf.mxu0
        %v5339 = vadd.f32 0.0, %v5338
        %v5340 = vpop.f32.mrf.mxu0
        %5341 = vmatprep.mubr.f32.mxu0 0.0
        %5342 = vmatmul.mubr.f32.gmra.mxu0 %v4582
        %v5343 = vpop.f32.mrf.mxu0
        %v5344 = vadd.f32 0.0, %v5343
        %v5345 = vpop.f32.mrf.mxu0
        %5346 = vmatprep.mubr.f32.mxu0 0.0
        %5347 = vmatmul.mubr.f32.gmra.mxu0 %v4583
        %v5348 = vpop.f32.mrf.mxu0
        %v5349 = vadd.f32 0.0, %v5348
        %v5350 = vpop.f32.mrf.mxu0
        %5351 = vmatprep.mubr.f32.mxu0 0.0
        %5352 = vmatmul.mubr.f32.gmra.mxu0 %v4584
        %v5353 = vpop.f32.mrf.mxu0
        %v5354 = vadd.f32 0.0, %v5353
        %v5355 = vpop.f32.mrf.mxu0
        %5356 = vdwg.mxu0
        %5373 = vrot.lane.b32.xlu0 %v4893, 32
        %v5374 = vpop.permute.xlu0 %5373
        %5375 = vrot.lane.b32.xlu0 %v4898, 32
        %v5376 = vpop.permute.xlu0 %5375
        %5377 = vrot.lane.b32.xlu0 %v4903, 32
        %v5378 = vpop.permute.xlu0 %5377
        %5379 = vrot.lane.b32.xlu0 %v4908, 32
        %v5380 = vpop.permute.xlu0 %5379
        %5381 = vrot.lane.b32.xlu0 %v4913, 32
        %v5382 = vpop.permute.xlu0 %5381
        %5383 = vrot.lane.b32.xlu0 %v4918, 32
        %v5384 = vpop.permute.xlu0 %5383
        %5385 = vrot.lane.b32.xlu0 %v4923, 32
        %v5386 = vpop.permute.xlu0 %5385
        %5387 = vrot.lane.b32.xlu0 %v4928, 32
        %v5388 = vpop.permute.xlu0 %5387
        %5389 = vrot.lane.b32.xlu0 %v4933, 32
        %v5390 = vpop.permute.xlu0 %5389
        %5391 = vrot.lane.b32.xlu0 %v4938, 32
        %v5392 = vpop.permute.xlu0 %5391
        %5393 = vrot.lane.b32.xlu0 %v4943, 32
        %v5394 = vpop.permute.xlu0 %5393
        %5395 = vrot.lane.b32.xlu0 %v4948, 32
        %v5396 = vpop.permute.xlu0 %5395
        %5397 = vrot.lane.b32.xlu0 %v4953, 32
        %v5398 = vpop.permute.xlu0 %5397
        %5399 = vrot.lane.b32.xlu0 %v4958, 32
        %v5400 = vpop.permute.xlu0 %5399
        %5401 = vrot.lane.b32.xlu0 %v4963, 32
        %v5402 = vpop.permute.xlu0 %5401
        %5403 = vrot.lane.b32.xlu0 %v4968, 32
        %v5404 = vpop.permute.xlu0 %5403
        %5437 = vrot.lane.b32.xlu0 %v5086, 64
        %v5438 = vpop.permute.xlu0 %5437
        %5439 = vrot.lane.b32.xlu0 %v5091, 64
        %v5440 = vpop.permute.xlu0 %5439
        %5441 = vrot.lane.b32.xlu0 %v5096, 64
        %v5442 = vpop.permute.xlu0 %5441
        %5443 = vrot.lane.b32.xlu0 %v5101, 64
        %v5444 = vpop.permute.xlu0 %5443
        %5445 = vrot.lane.b32.xlu0 %v5106, 64
        %v5446 = vpop.permute.xlu0 %5445
        %5447 = vrot.lane.b32.xlu0 %v5111, 64
        %v5448 = vpop.permute.xlu0 %5447
        %5449 = vrot.lane.b32.xlu0 %v5116, 64
        %v5450 = vpop.permute.xlu0 %5449
        %5451 = vrot.lane.b32.xlu0 %v5121, 64
        %v5452 = vpop.permute.xlu0 %5451
        %5453 = vrot.lane.b32.xlu0 %v5126, 64
        %v5454 = vpop.permute.xlu0 %5453
        %5455 = vrot.lane.b32.xlu0 %v5131, 64
        %v5456 = vpop.permute.xlu0 %5455
        %5457 = vrot.lane.b32.xlu0 %v5136, 64
        %v5458 = vpop.permute.xlu0 %5457
        %5459 = vrot.lane.b32.xlu0 %v5141, 64
        %v5460 = vpop.permute.xlu0 %5459
        %5461 = vrot.lane.b32.xlu0 %v5146, 64
        %v5462 = vpop.permute.xlu0 %5461
        %5463 = vrot.lane.b32.xlu0 %v5151, 64
        %v5464 = vpop.permute.xlu0 %5463
        %5465 = vrot.lane.b32.xlu0 %v5156, 64
        %v5466 = vpop.permute.xlu0 %5465
        %5467 = vrot.lane.b32.xlu0 %v5161, 64
        %v5468 = vpop.permute.xlu0 %5467
        %5501 = vrot.lane.b32.xlu0 %v5279, 96
        %v5502 = vpop.permute.xlu0 %5501
        %5503 = vrot.lane.b32.xlu0 %v5284, 96
        %v5504 = vpop.permute.xlu0 %5503
        %5505 = vrot.lane.b32.xlu0 %v5289, 96
        %v5506 = vpop.permute.xlu0 %5505
        %5507 = vrot.lane.b32.xlu0 %v5294, 96
        %v5508 = vpop.permute.xlu0 %5507
        %5509 = vrot.lane.b32.xlu0 %v5299, 96
        %v5510 = vpop.permute.xlu0 %5509
        %5511 = vrot.lane.b32.xlu0 %v5304, 96
        %v5512 = vpop.permute.xlu0 %5511
        %5513 = vrot.lane.b32.xlu0 %v5309, 96
        %v5514 = vpop.permute.xlu0 %5513
        %5515 = vrot.lane.b32.xlu0 %v5314, 96
        %v5516 = vpop.permute.xlu0 %5515
        %5517 = vrot.lane.b32.xlu0 %v5319, 96
        %v5518 = vpop.permute.xlu0 %5517
        %5519 = vrot.lane.b32.xlu0 %v5324, 96
        %v5520 = vpop.permute.xlu0 %5519
        %5521 = vrot.lane.b32.xlu0 %v5329, 96
        %v5522 = vpop.permute.xlu0 %5521
        %5523 = vrot.lane.b32.xlu0 %v5334, 96
        %v5524 = vpop.permute.xlu0 %5523
        %5525 = vrot.lane.b32.xlu0 %v5339, 96
        %v5526 = vpop.permute.xlu0 %5525
        %5527 = vrot.lane.b32.xlu0 %v5344, 96
        %v5528 = vpop.permute.xlu0 %5527
        %5529 = vrot.lane.b32.xlu0 %v5349, 96
        %v5530 = vpop.permute.xlu0 %5529
        %5531 = vrot.lane.b32.xlu0 %v5354, 96
        %v5532 = vpop.permute.xlu0 %5531
        %v5549 = vsel %vm2964, %v4700, %v5374
        %v5550 = vsel %vm2964, %v4705, %v5376
        %v5551 = vsel %vm2964, %v4710, %v5378
        %v5552 = vsel %vm2964, %v4715, %v5380
        %v5553 = vsel %vm2964, %v4720, %v5382
        %v5554 = vsel %vm2964, %v4725, %v5384
        %v5555 = vsel %vm2964, %v4730, %v5386
        %v5556 = vsel %vm2964, %v4735, %v5388
        %v5557 = vsel %vm2964, %v4740, %v5390
        %v5558 = vsel %vm2964, %v4745, %v5392
        %v5559 = vsel %vm2964, %v4750, %v5394
        %v5560 = vsel %vm2964, %v4755, %v5396
        %v5561 = vsel %vm2964, %v4760, %v5398
        %v5562 = vsel %vm2964, %v4765, %v5400
        %v5563 = vsel %vm2964, %v4770, %v5402
        %v5564 = vsel %vm2964, %v4775, %v5404
        %vm5565 = vcmask 523264
        %v5566 = vsel %vm5565, %v5549, %v5438
        %v5567 = vsel %vm5565, %v5550, %v5440
        %v5568 = vsel %vm5565, %v5551, %v5442
        %v5569 = vsel %vm5565, %v5552, %v5444
        %v5570 = vsel %vm5565, %v5553, %v5446
        %v5571 = vsel %vm5565, %v5554, %v5448
        %v5572 = vsel %vm5565, %v5555, %v5450
        %v5573 = vsel %vm5565, %v5556, %v5452
        %v5574 = vsel %vm5565, %v5557, %v5454
        %v5575 = vsel %vm5565, %v5558, %v5456
        %v5576 = vsel %vm5565, %v5559, %v5458
        %v5577 = vsel %vm5565, %v5560, %v5460
        %v5578 = vsel %vm5565, %v5561, %v5462
        %v5579 = vsel %vm5565, %v5562, %v5464
        %v5580 = vsel %vm5565, %v5563, %v5466
        %v5581 = vsel %vm5565, %v5564, %v5468
        %vm5582 = vcmask 785408
        %v5583 = vsel %vm5582, %v5566, %v5502
        %v5584 = vsel %vm5582, %v5567, %v5504
        %v5585 = vsel %vm5582, %v5568, %v5506
        %v5586 = vsel %vm5582, %v5569, %v5508
        %v5587 = vsel %vm5582, %v5570, %v5510
        %v5588 = vsel %vm5582, %v5571, %v5512
        %v5589 = vsel %vm5582, %v5572, %v5514
        %v5590 = vsel %vm5582, %v5573, %v5516
        %v5591 = vsel %vm5582, %v5574, %v5518
        %v5592 = vsel %vm5582, %v5575, %v5520
        %v5593 = vsel %vm5582, %v5576, %v5522
        %v5594 = vsel %vm5582, %v5577, %v5524
        %v5595 = vsel %vm5582, %v5578, %v5526
        %v5596 = vsel %vm5582, %v5579, %v5528
        %v5597 = vsel %vm5582, %v5580, %v5530
        %v5598 = vsel %vm5582, %v5581, %v5532
        %v5599 = vld [vmem:[%s5] sm:$0xff]
        %v5600 = vld [vmem:[%s5 + $0x8] sm:$0xff]
        %v5601 = vld [vmem:[%s5 + $0x10] sm:$0xff]
        %v5602 = vld [vmem:[%s5 + $0x18] sm:$0xff]
        %v5603 = vld [vmem:[%s5 + $0x20] sm:$0xff]
        %v5604 = vld [vmem:[%s5 + $0x28] sm:$0xff]
        %v5605 = vld [vmem:[%s5 + $0x30] sm:$0xff]
        %v5606 = vld [vmem:[%s5 + $0x38] sm:$0xff]
        %v5607 = vld [vmem:[%s5 + $0x40] sm:$0xff]
        %v5608 = vld [vmem:[%s5 + $0x48] sm:$0xff]
        %v5609 = vld [vmem:[%s5 + $0x50] sm:$0xff]
        %v5610 = vld [vmem:[%s5 + $0x58] sm:$0xff]
        %v5611 = vld [vmem:[%s5 + $0x60] sm:$0xff]
        %v5612 = vld [vmem:[%s5 + $0x68] sm:$0xff]
        %v5613 = vld [vmem:[%s5 + $0x70] sm:$0xff]
        %v5614 = vld [vmem:[%s5 + $0x78] sm:$0xff]
        %5615 = vmatprep.subr.mxu0 0.0
        %5616 = vmatpush1.msra.mxu0 %v5614
        %5617 = vmatprep.subr.mxu0 0.0
        %5618 = vmatpush1.msra.mxu0 %v5613
        %5619 = vmatprep.subr.mxu0 0.0
        %5620 = vmatpush1.msra.mxu0 %v5612
        %5621 = vmatprep.subr.mxu0 0.0
        %5622 = vmatpush1.msra.mxu0 %v5611
        %5623 = vmatprep.subr.mxu0 0.0
        %5624 = vmatpush1.msra.mxu0 %v5610
        %5625 = vmatprep.subr.mxu0 0.0
        %5626 = vmatpush1.msra.mxu0 %v5609
        %5627 = vmatprep.subr.mxu0 0.0
        %5628 = vmatpush1.msra.mxu0 %v5608
        %5629 = vmatprep.subr.mxu0 0.0
        %5630 = vmatpush1.msra.mxu0 %v5607
        %5631 = vmatprep.subr.mxu0 0.0
        %5632 = vmatpush1.msra.mxu0 %v5606
        %5633 = vmatprep.subr.mxu0 0.0
        %5634 = vmatpush1.msra.mxu0 %v5605
        %5635 = vmatprep.subr.mxu0 0.0
        %5636 = vmatpush1.msra.mxu0 %v5604
        %5637 = vmatprep.subr.mxu0 0.0
        %5638 = vmatpush1.msra.mxu0 %v5603
        %5639 = vmatprep.subr.mxu0 0.0
        %5640 = vmatpush1.msra.mxu0 %v5602
        %5641 = vmatprep.subr.mxu0 0.0
        %5642 = vmatpush1.msra.mxu0 %v5601
        %5643 = vmatprep.subr.mxu0 0.0
        %5644 = vmatpush1.msra.mxu0 %v5600
        %5645 = vmatprep.subr.mxu0 0.0
        %5646 = vmatpush1.msra.mxu0 %v5599
        %5647 = vmatprep.subr.mxu0 0.0
        %5648 = vmatpush2.msra.mxu0 0.0
        %5649 = vmatprep.subr.mxu0 0.0
        %5650 = vmatpush2.msra.mxu0 0.0
        %5651 = vmatprep.subr.mxu0 0.0
        %5652 = vmatpush2.msra.mxu0 0.0
        %5653 = vmatprep.subr.mxu0 0.0
        %5654 = vmatpush2.msra.mxu0 0.0
        %5655 = vmatprep.subr.mxu0 0.0
        %5656 = vmatpush2.msra.mxu0 0.0
        %5657 = vmatprep.subr.mxu0 0.0
        %5658 = vmatpush2.msra.mxu0 0.0
        %5659 = vmatprep.subr.mxu0 0.0
        %5660 = vmatpush2.msra.mxu0 0.0
        %5661 = vmatprep.subr.mxu0 0.0
        %5662 = vmatpush2.msra.mxu0 0.0
        %5663 = vmatprep.subr.mxu0 0.0
        %5664 = vmatpush2.msra.mxu0 0.0
        %5665 = vmatprep.subr.mxu0 0.0
        %5666 = vmatpush2.msra.mxu0 0.0
        %5667 = vmatprep.subr.mxu0 0.0
        %5668 = vmatpush2.msra.mxu0 0.0
        %5669 = vmatprep.subr.mxu0 0.0
        %5670 = vmatpush2.msra.mxu0 0.0
        %5671 = vmatprep.subr.mxu0 0.0
        %5672 = vmatpush2.msra.mxu0 0.0
        %5673 = vmatprep.subr.mxu0 0.0
        %5674 = vmatpush2.msra.mxu0 0.0
        %5675 = vmatprep.subr.mxu0 0.0
        %5676 = vmatpush2.msra.mxu0 0.0
        %5677 = vmatprep.subr.mxu0 0.0
        %5678 = vmatpush2.msra.mxu0 0.0
        %5679 = vmatprep.mubr.f32.mxu0 0.0
        %5680 = vmatmul.mubr.f32.gmra.mxu0 %v5583
        %v5681 = vpop.f32.mrf.mxu0
        %v5682 = vadd.f32 0.0, %v5681
        %v5683 = vpop.f32.mrf.mxu0
        %5684 = vmatprep.mubr.f32.mxu0 0.0
        %5685 = vmatmul.mubr.f32.gmra.mxu0 %v5584
        %v5686 = vpop.f32.mrf.mxu0
        %v5687 = vadd.f32 0.0, %v5686
        %v5688 = vpop.f32.mrf.mxu0
        %5689 = vmatprep.mubr.f32.mxu0 0.0
        %5690 = vmatmul.mubr.f32.gmra.mxu0 %v5585
        %v5691 = vpop.f32.mrf.mxu0
        %v5692 = vadd.f32 0.0, %v5691
        %v5693 = vpop.f32.mrf.mxu0
        %5694 = vmatprep.mubr.f32.mxu0 0.0
        %5695 = vmatmul.mubr.f32.gmra.mxu0 %v5586
        %v5696 = vpop.f32.mrf.mxu0
        %v5697 = vadd.f32 0.0, %v5696
        %v5698 = vpop.f32.mrf.mxu0
        %5699 = vmatprep.mubr.f32.mxu0 0.0
        %5700 = vmatmul.mubr.f32.gmra.mxu0 %v5587
        %v5701 = vpop.f32.mrf.mxu0
        %v5702 = vadd.f32 0.0, %v5701
        %v5703 = vpop.f32.mrf.mxu0
        %5704 = vmatprep.mubr.f32.mxu0 0.0
        %5705 = vmatmul.mubr.f32.gmra.mxu0 %v5588
        %v5706 = vpop.f32.mrf.mxu0
        %v5707 = vadd.f32 0.0, %v5706
        %v5708 = vpop.f32.mrf.mxu0
        %5709 = vmatprep.mubr.f32.mxu0 0.0
        %5710 = vmatmul.mubr.f32.gmra.mxu0 %v5589
        %v5711 = vpop.f32.mrf.mxu0
        %v5712 = vadd.f32 0.0, %v5711
        %v5713 = vpop.f32.mrf.mxu0
        %5714 = vmatprep.mubr.f32.mxu0 0.0
        %5715 = vmatmul.mubr.f32.gmra.mxu0 %v5590
        %v5716 = vpop.f32.mrf.mxu0
        %v5717 = vadd.f32 0.0, %v5716
        %v5718 = vpop.f32.mrf.mxu0
        %5719 = vmatprep.mubr.f32.mxu0 0.0
        %5720 = vmatmul.mubr.f32.gmra.mxu0 %v5591
        %v5721 = vpop.f32.mrf.mxu0
        %v5722 = vadd.f32 0.0, %v5721
        %v5723 = vpop.f32.mrf.mxu0
        %5724 = vmatprep.mubr.f32.mxu0 0.0
        %5725 = vmatmul.mubr.f32.gmra.mxu0 %v5592
        %v5726 = vpop.f32.mrf.mxu0
        %v5727 = vadd.f32 0.0, %v5726
        %v5728 = vpop.f32.mrf.mxu0
        %5729 = vmatprep.mubr.f32.mxu0 0.0
        %5730 = vmatmul.mubr.f32.gmra.mxu0 %v5593
        %v5731 = vpop.f32.mrf.mxu0
        %v5732 = vadd.f32 0.0, %v5731
        %v5733 = vpop.f32.mrf.mxu0
        %5734 = vmatprep.mubr.f32.mxu0 0.0
        %5735 = vmatmul.mubr.f32.gmra.mxu0 %v5594
        %v5736 = vpop.f32.mrf.mxu0
        %v5737 = vadd.f32 0.0, %v5736
        %v5738 = vpop.f32.mrf.mxu0
        %5739 = vmatprep.mubr.f32.mxu0 0.0
        %5740 = vmatmul.mubr.f32.gmra.mxu0 %v5595
        %v5741 = vpop.f32.mrf.mxu0
        %v5742 = vadd.f32 0.0, %v5741
        %v5743 = vpop.f32.mrf.mxu0
        %5744 = vmatprep.mubr.f32.mxu0 0.0
        %5745 = vmatmul.mubr.f32.gmra.mxu0 %v5596
        %v5746 = vpop.f32.mrf.mxu0
        %v5747 = vadd.f32 0.0, %v5746
        %v5748 = vpop.f32.mrf.mxu0
        %5749 = vmatprep.mubr.f32.mxu0 0.0
        %5750 = vmatmul.mubr.f32.gmra.mxu0 %v5597
        %v5751 = vpop.f32.mrf.mxu0
        %v5752 = vadd.f32 0.0, %v5751
        %v5753 = vpop.f32.mrf.mxu0
        %5754 = vmatprep.mubr.f32.mxu0 0.0
        %5755 = vmatmul.mubr.f32.gmra.mxu0 %v5598
        %v5756 = vpop.f32.mrf.mxu0
        %v5757 = vadd.f32 0.0, %v5756
        %v5758 = vpop.f32.mrf.mxu0
        %5759 = vdwg.mxu0
        %5760 = vst [vmem:[%s411] sm:$0xff] %v5682
        %5761 = vst [vmem:[%s411 + $0x8] sm:$0xff] %v5687
        %5762 = vst [vmem:[%s411 + $0x10] sm:$0xff] %v5692
        %5763 = vst [vmem:[%s411 + $0x18] sm:$0xff] %v5697
        %5764 = vst [vmem:[%s411 + $0x20] sm:$0xff] %v5702
        %5765 = vst [vmem:[%s411 + $0x28] sm:$0xff] %v5707
        %5766 = vst [vmem:[%s411 + $0x30] sm:$0xff] %v5712
        %5767 = vst [vmem:[%s411 + $0x38] sm:$0xff] %v5717
        %5768 = vst [vmem:[%s411 + $0x40] sm:$0xff] %v5722
        %5769 = vst [vmem:[%s411 + $0x48] sm:$0xff] %v5727
        %5770 = vst [vmem:[%s411 + $0x50] sm:$0xff] %v5732
        %5771 = vst [vmem:[%s411 + $0x58] sm:$0xff] %v5737
        %5772 = vst [vmem:[%s411 + $0x60] sm:$0xff] %v5742
        %5773 = vst [vmem:[%s411 + $0x68] sm:$0xff] %v5747
        %5774 = vst [vmem:[%s411 + $0x70] sm:$0xff] %v5752
        %5775 = vst [vmem:[%s411 + $0x78] sm:$0xff] %v5757
        %s5776 = sand.u32 %s187, 1
        %s5777 = scalar_lea.sflag [#allocation4], %s5776
        %s5778 = sand.u32 %s187, 1
        %s5779 = smul.addr %s5778, 128
        %s5780 = scalar_lea.vmem [#allocation6], %s5779
        // Predicated region
        $region87: #{tpu_custom_call.1} parent=77 // pred_check
          %p5781 = pneg %p197
        $region88: #{tpu_custom_call.1} parent=77 // pred_check_branch
          %5783 = sbr.rel (%p5781) target = $region90
        $region89: #{tpu_custom_call.1} parent=77 // pred_region
          %s5784 = smul.u32 16, %s28
          %s5786 = ssub.s32 2048, 2048
          %5787 = vsyncadd %s5777, %s5786
          %s5788 = smul.addr %s27, 32
          %s5789 = sadd.s32 %s5784, %s5788
          %s5790 = smul.addr %s5789, 128
          %s5791 = scalar_lea.hbm %s6, %s5790
          %s5792 = sshll.u32 %s5780, 4
          %s5793 = int_to_ptr.vmem [resolvable:$true] %s5792
          %5798 = dma.vmem_to_hbm [thread:$0]  %s5793, 2048, %s5791, %s5777, 128, 128, 8
        $region90: #{tpu_custom_call.1} parent=77 // pred_fallthru
          _
      $region78: #{tpu_custom_call.1} parent=5 // pred_fallthru
        _
      %p5799 = scmp.le.s32.totalorder 2, %s18
      // Predicated region
      $region91: #{tpu_custom_call.1} parent=5 // pred_check
        %p5800 = pneg %p5799
      $region92: #{tpu_custom_call.1} parent=5 // pred_check_branch
        %5802 = sbr.rel (%p5800) target = $region94
      $region93: #{tpu_custom_call.1} parent=5 // pred_region
        %s5803 = ssub.s32 %s18, 2
        // Predicated region
        $region95: #{tpu_custom_call.1} parent=93 // pred_check
          %p5804 = pneg %p203
        $region96: #{tpu_custom_call.1} parent=93 // pred_check_branch
          %5806 = sbr.rel (%p5804) target = $region98
        $region97: #{tpu_custom_call.1} parent=93 // pred_region
          %s5807 = sand.u32 %s188, 1
          %s5808 = scalar_lea.sflag [#allocation4], %s5807
          %s5809 = sand.u32 %s188, 1
          %s5810 = smul.addr %s5809, 128
          %s5811 = scalar_lea.vmem [#allocation6], %s5810
          %5812 = dma.done %s5808, 2048
        $region98: #{tpu_custom_call.1} parent=93 // pred_fallthru
          _
      $region94: #{tpu_custom_call.1} parent=5 // pred_fallthru
        _
    $region6: #{tpu_custom_call.1} parent=1 // loop_footer
      %s22 = sadd.s32 1, %s18
    $region7: #{tpu_custom_call.1} parent=1 // loop_footer_branch
      %17 = sbr.rel target = $region3
    $region8: #{tpu_custom_call.1} parent=1 // loop_exit
      _
    %5813 = vsyncpa [#allocation3], 1
    %s5814 = scalar_lea.sflag [#allocation3], 1
    %5815 = vsyncpa %s5814, 1
    %5816 = vsyncpa [#allocation4], 1
    %s5817 = scalar_lea.sflag [#allocation4], 1
    %5818 = vsyncpa %s5817, 1

</llo_original>
